<compile_context>
chip_gen: v7x
topology: tpu7x:2x2x1
jax: 0.10.0
libtpu: 0.0.40
codegen_flags: <defaults>
</compile_context>

<pallas_src>
import math
import functools

import jax
import jax.numpy as jnp
from jax.experimental import pallas as pl
from jax.experimental.pallas import tpu as pltpu


# ----------------------------------------------------------------------------
# In-kernel math helpers
# ----------------------------------------------------------------------------
def _gelu(x):
    # tanh-approx GELU: tanh goes to the EUP slot instead of a long VALU
    # polynomial; ~1e-3 max abs deviation from exact-erf GELU.
    c = 0.7978845608028654  # sqrt(2/pi)
    return 0.5 * x * (1.0 + jnp.tanh(c * (x + 0.044715 * x * x * x)))


# ----------------------------------------------------------------------------
# Fused Linear -> GELU -> Linear kernel (optionally pre-LN / +vec / padded out)
# ----------------------------------------------------------------------------
def fused_mlp(x, w1, b1, w2, b2, *, ln=None, add_vec=None, pad_out=False,
              tm_max=256):
    """y = (x|LN(x)) @ w1 + b1 -> GELU -> @ w2 + b2 (+ add_vec), row-tiled.

    If pad_out and N < 128, the second linear is zero-padded to 128 output
    lanes inside the kernel (lane-dense stores) and sliced back in XLA.
    """
    M, K = x.shape
    Hd = w1.shape[1]
    N = w2.shape[1]

    Np = N
    if pad_out and N < 128:
        Np = 128
        w2 = jnp.pad(w2, ((0, 0), (0, Np - N)))
        b2 = jnp.pad(b2, ((0, Np - N),))
        if add_vec is not None:
            add_vec = jnp.pad(add_vec, ((0, Np - N),))

    # Row tile: >= 2 grid steps when possible (v7x has 2 TensorCores),
    # multiple of 8 rows, capped by tm_max for VMEM.
    if M <= 8:
        tm = M
    else:
        tm = min(tm_max, max(8, ((M + 15) // 16) * 8))
    grid = (pl.cdiv(M, tm),)

    inputs = [x,
              w1.astype(jnp.bfloat16), b1.reshape(1, Hd),
              w2.astype(jnp.bfloat16), b2.reshape(1, Np)]
    in_specs = [
        pl.BlockSpec((tm, K), lambda i: (i, 0)),
        pl.BlockSpec((K, Hd), lambda i: (0, 0)),
        pl.BlockSpec((1, Hd), lambda i: (0, 0)),
        pl.BlockSpec((Hd, Np), lambda i: (0, 0)),
        pl.BlockSpec((1, Np), lambda i: (0, 0)),
    ]
    use_ln = ln is not None
    use_add = add_vec is not None
    if use_ln:
        g, b = ln
        inputs += [g.reshape(1, K), b.reshape(1, K)]
        in_specs += [pl.BlockSpec((1, K), lambda i: (0, 0)),
                     pl.BlockSpec((1, K), lambda i: (0, 0))]
    if use_add:
        inputs += [add_vec.reshape(1, Np)]
        in_specs += [pl.BlockSpec((1, Np), lambda i: (0, 0))]

    def kernel(*refs):
        x_ref, w1_ref, b1_ref, w2_ref, b2_ref = refs[:5]
        rest = list(refs[5:])
        o_ref = rest.pop()                       # output ref is last
        xx = x_ref[...]
        if use_ln:
            g_ref = rest.pop(0)
            be_ref = rest.pop(0)
            xx = xx.astype(jnp.float32)
            mu = jnp.mean(xx, axis=-1, keepdims=True)
            var = jnp.mean((xx - mu) ** 2, axis=-1, keepdims=True)
            xx = (xx - mu) * jax.lax.rsqrt(var + 1e-5) * g_ref[...] + be_ref[...]
        h = jnp.dot(xx.astype(jnp.bfloat16), w1_ref[...],
                    preferred_element_type=jnp.float32) + b1_ref[...]
        h = _gelu(h)
        y = jnp.dot(h.astype(jnp.bfloat16), w2_ref[...],
                    preferred_element_type=jnp.float32) + b2_ref[...]
        if use_add:
            av_ref = rest.pop(0)
            y = y + av_ref[...]
        o_ref[...] = y

    out = pl.pallas_call(
        kernel,
        out_shape=jax.ShapeDtypeStruct((M, Np), jnp.float32),
        grid=grid,
        in_specs=in_specs,
        out_specs=pl.BlockSpec((tm, Np), lambda i: (i, 0)),
        compiler_params=pltpu.CompilerParams(
            dimension_semantics=("parallel",)),
    )(*inputs)
    if Np != N:
        out = out[:, :N]
    return out


# ----------------------------------------------------------------------------
# Fully fused adaLN transformer stack: ONE pallas_call for all layers.
# grid = (B, n_layer); residual [S,D] stays resident in VMEM across layers.
# ----------------------------------------------------------------------------
def transformer_stack(tokens, mods, bias, wqkv, bqkv, wproj, bproj,
                      wfc1, bfc1, wfc2, bfc2, *, B, S, D, H, L, eps=1e-5):
    hd = D // H
    scale = 1.0 / math.sqrt(hd)

    def kernel(tok_ref, mods_ref, bias_ref, wqkv_ref, bqkv_ref,
               wp_ref, bp_ref, wfc1_ref, bfc1_ref, wfc2_ref, bfc2_ref,
               o_ref):
        l = pl.program_id(1)

        @pl.when(l == 0)
        def _():
            o_ref[...] = tok_ref[...]            # seed residual stream

        h = o_ref[0]                             # [S, D] f32, resident across l

        # Hoisted adaLN modulation: six [1, D] vectors for this (layer, batch).
        mv = mods_ref[0]                         # [6, D]
        sh1, sc1, g1 = mv[0:1, :], mv[1:2, :], mv[2:3, :]
        sh2, sc2, g2 = mv[3:4, :], mv[4:5, :], mv[5:6, :]

        def modln(xx, sh, sc):
            mu = jnp.mean(xx, axis=-1, keepdims=True)
            var = jnp.mean((xx - mu) ** 2, axis=-1, keepdims=True)
            return (xx - mu) * jax.lax.rsqrt(var + eps) * (1.0 + sc) + sh

        # ------------------ attention branch ------------------
        xn = modln(h, sh1, sc1).astype(jnp.bfloat16)
        # ONE fused QKV matmul (K = D contraction) instead of 3H tiny ones.
        qkv = jnp.dot(xn, wqkv_ref[0],
                      preferred_element_type=jnp.float32) + bqkv_ref[0]  # [S,3D]
        heads = []
        for hh in range(H):                      # static unroll over heads
            q = qkv[:, hh * hd:(hh + 1) * hd]
            k = qkv[:, D + hh * hd:D + (hh + 1) * hd]
            v = qkv[:, 2 * D + hh * hd:2 * D + (hh + 1) * hd]
            s = jax.lax.dot_general(
                q.astype(jnp.bfloat16), k.astype(jnp.bfloat16),
                (((1,), (1,)), ((), ())),
                preferred_element_type=jnp.float32) * scale
            s = s + bias_ref[hh]                 # bias already includes mask
            m = jnp.max(s, axis=-1, keepdims=True)
            p = jnp.exp(s - m)
            p = p * pl.reciprocal(jnp.sum(p, axis=-1, keepdims=True),
                                  approx=True)
            heads.append(jnp.dot(p.astype(jnp.bfloat16),
                                 v.astype(jnp.bfloat16),
                                 preferred_element_type=jnp.float32))
        attn = jnp.concatenate(heads, axis=-1)   # [S, D]
        # ONE output projection (K = D) instead of H K=hd projections.
        attn = jnp.dot(attn.astype(jnp.bfloat16), wp_ref[0],
                       preferred_element_type=jnp.float32) + bp_ref[0]
        h = h + g1 * attn                        # gated residual add

        # ------------------ MLP branch ------------------
        xn2 = modln(h, sh2, sc2).astype(jnp.bfloat16)
        m1 = _gelu(jnp.dot(xn2, wfc1_ref[0],
                           preferred_element_type=jnp.float32) + bfc1_ref[0])
        m2 = jnp.dot(m1.astype(jnp.bfloat16), wfc2_ref[0],
                     preferred_element_type=jnp.float32) + bfc2_ref[0]
        o_ref[0] = h + g2 * m2

    in_specs = [
        pl.BlockSpec((1, S, D), lambda b, l: (b, 0, 0)),          # residual in
        pl.BlockSpec((1, 6, D), lambda b, l: (l * B + b, 0, 0)),  # adaLN mods
        pl.BlockSpec((H, S, S), lambda b, l: (l, 0, 0)),          # bias+mask
        pl.BlockSpec((1, D, 3 * D), lambda b, l: (l, 0, 0)),      # Wqkv (bf16)
        pl.BlockSpec((1, 1, 3 * D), lambda b, l: (l, 0, 0)),      # bqkv
        pl.BlockSpec((1, D, D), lambda b, l: (l, 0, 0)),          # Wproj (bf16)
        pl.BlockSpec((1, 1, D), lambda b, l: (l, 0, 0)),          # bproj
        pl.BlockSpec((1, D, 4 * D), lambda b, l: (l, 0, 0)),      # Wfc1 (bf16)
        pl.BlockSpec((1, 1, 4 * D), lambda b, l: (l, 0, 0)),      # bfc1
        pl.BlockSpec((1, 4 * D, D), lambda b, l: (l, 0, 0)),      # Wfc2 (bf16)
        pl.BlockSpec((1, 1, D), lambda b, l: (l, 0, 0)),          # bfc2
    ]

    return pl.pallas_call(
        kernel,
        out_shape=jax.ShapeDtypeStruct((B, S, D), jnp.float32),
        grid=(B, L),
        in_specs=in_specs,
        out_specs=pl.BlockSpec((1, S, D), lambda b, l: (b, 0, 0)),
        input_output_aliases={0: 0},             # residual in-place in HBM
        compiler_params=pltpu.CompilerParams(
            dimension_semantics=("parallel", "arbitrary"),
            vmem_limit_bytes=64 * 1024 * 1024),
    )(tokens, mods, bias, wqkv, bqkv, wproj, bproj, wfc1, bfc1, wfc2, bfc2)


# ----------------------------------------------------------------------------
# Plain-JAX glue
# ----------------------------------------------------------------------------
def sinusoidal_pos_emb(t, dim):
    assert dim % 2 == 0 and dim >= 4, "sinusoidal embedding needs even dim >= 4"
    half = dim // 2
    emb = math.log(10000.0) / (half - 1)
    freqs = jnp.exp(-emb * jnp.arange(half, dtype=jnp.float32))
    args = t.astype(jnp.float32)[:, None] * freqs[None, :]
    return jnp.concatenate([jnp.sin(args), jnp.cos(args)], axis=-1)


def init_params(key, *, features_dim, action_dim, hidden_dim, D, n_head,
                n_layer, S):
    keys = iter(jax.random.split(key, 64))

    def dense(fan_in, fan_out):
        w = 0.02 * jax.random.normal(next(keys), (fan_in, fan_out), jnp.float32)
        b = jnp.zeros((fan_out,), jnp.float32)
        return (w, b)

    time_dim = D * 4
    p = {
        "t1": dense(D, time_dim), "t2": dense(time_dim, D),
        "pp1": dense(features_dim, hidden_dim), "pp2": dense(hidden_dim, D),
        "ap1": dense(action_dim, hidden_dim), "ap2": dense(hidden_dim, D),
        "pd1": dense(D, hidden_dim), "pd2": dense(hidden_dim, features_dim),
        "ad1": dense(D, hidden_dim), "ad2": dense(hidden_dim, action_dim),
        "particle_encoding": 0.02 * jax.random.normal(next(keys), (1, 1, 1, D),
                                                      jnp.float32),
        "action_encoding": 0.02 * jax.random.normal(next(keys), (1, 1, D),
                                                    jnp.float32),
        "ln_f_g": jnp.ones((D,), jnp.float32),
        "ln_f_b": jnp.zeros((D,), jnp.float32),
    }
    layers = []
    for _ in range(n_layer):
        layers.append({
            "ada": dense(D, 6 * D),
            "qkv": dense(D, 3 * D),
            "proj": dense(D, D),
            "fc1": dense(D, 4 * D),
            "fc2": dense(4 * D, D),
            "attn_bias": 0.02 * jax.random.normal(next(keys), (n_head, S, S),
                                                  jnp.float32),
        })
    p["layers"] = layers
    return p


def adaln_pint_forward(params, x, time, *, features_dim, action_dim, D, n_head):
    B, T, _ = x.shape
    A, Fd = action_dim, features_dim
    bf = jnp.bfloat16

    actions = x[:, :, :A]                                    # [B,T,A]
    xp = x[:, :, A:].reshape(B, T, -1, Fd)                   # [B,T,P,Fd]
    P = xp.shape[2]
    E = 1 + P
    S = E * T
    H = n_head

    # --- fused encoders (bf16 activations in): Linear->GELU->Linear (+enc) --
    ap = fused_mlp(actions.reshape(B * T, A).astype(bf),
                   *params["ap1"], *params["ap2"],
                   add_vec=params["action_encoding"].reshape(-1)
                   ).reshape(B, T, D)
    sp = fused_mlp(xp.reshape(B * T * P, Fd).astype(bf),
                   *params["pp1"], *params["pp2"],
                   add_vec=params["particle_encoding"].reshape(-1)
                   ).reshape(B, T, P, D)

    # --- time embedding -----------------------------------------------------
    sin_emb = sinusoidal_pos_emb(time, D)                    # [B,D]
    t_embed = fused_mlp(sin_emb, *params["t1"], *params["t2"])  # [B,D]

    x_cat = jnp.concatenate([ap[:, :, None, :], sp], axis=2)     # [B,T,E,D]
    x_proj = x_cat + t_embed[:, None, None, :]
    tokens = jnp.transpose(x_proj, (0, 2, 1, 3)).reshape(B, S, D)  # entity-major

    # causal-in-time mask, folded into the learned bias ONCE on the host side
    tvec = jnp.arange(S, dtype=jnp.int32) % T
    mask = jnp.where(tvec[None, :] <= tvec[:, None], 0.0, -1e9).astype(jnp.float32)

    layers = params["layers"]
    L = len(layers)

    # --- hoisted adaLN modulation: one XLA matmul over all layers & batch ---
    silu_t = t_embed * jax.nn.sigmoid(t_embed)               # [B,D]
    wada = jnp.stack([lp["ada"][0] for lp in layers])        # [L,D,6D]
    bada = jnp.stack([lp["ada"][1] for lp in layers])        # [L,6D]
    mods = (jnp.einsum("bd,lde->lbe", silu_t, wada) + bada[:, None, :])
    mods = mods.reshape(L * B, 6, D)                         # [(l,b),6,D]

    bias = (jnp.stack([lp["attn_bias"] for lp in layers])
            + mask[None, None]).reshape(L * H, S, S)         # bias + mask

    wqkv = jnp.stack([lp["qkv"][0] for lp in layers]).astype(bf)   # [L,D,3D]
    bqkv = jnp.stack([lp["qkv"][1] for lp in layers]).reshape(L, 1, 3 * D)
    wproj = jnp.stack([lp["proj"][0] for lp in layers]).astype(bf)  # [L,D,D]
    bproj = jnp.stack([lp["proj"][1] for lp in layers]).reshape(L, 1, D)
    wfc1 = jnp.stack([lp["fc1"][0] for lp in layers]).astype(bf)    # [L,D,4D]
    bfc1 = jnp.stack([lp["fc1"][1] for lp in layers]).reshape(L, 1, 4 * D)
    wfc2 = jnp.stack([lp["fc2"][0] for lp in layers]).astype(bf)    # [L,4D,D]
    bfc2 = jnp.stack([lp["fc2"][1] for lp in layers]).reshape(L, 1, D)

    h = transformer_stack(tokens, mods, bias, wqkv, bqkv, wproj, bproj,
                          wfc1, bfc1, wfc2, bfc2,
                          B=B, S=S, D=D, H=H, L=L)

    # decoders: final LayerNorm folded in; outputs written lane-dense (padded)
    out = jnp.transpose(h.reshape(B, E, T, D), (0, 2, 1, 3))     # [B,T,E,D]
    act_tok = out[:, :, 0, :].reshape(B * T, D)
    part_tok = out[:, :, 1:, :].reshape(B * T * P, D)
    ln = (params["ln_f_g"], params["ln_f_b"])
    a_dec = fused_mlp(act_tok, *params["ad1"], *params["ad2"],
                      ln=ln, pad_out=True).reshape(B, T, A)
    p_dec = fused_mlp(part_tok, *params["pd1"], *params["pd2"],
                      ln=ln, pad_out=True).reshape(B, T, P * Fd)
    return jnp.concatenate([a_dec, p_dec], axis=-1)              # [B,T,A+P*Fd]


# ----------------------------------------------------------------------------
# Demo
# ----------------------------------------------------------------------------
if __name__ == "__main__":
    features_dim, action_dim = 2, 3
    hidden_dim, projection_dim = 32, 32
    n_head, n_layer = 4, 2
    T = 8                       # block_size / horizon
    n_particles = 2             # max_particles
    B = 2
    E = 1 + n_particles
    S = E * T

    key = jax.random.PRNGKey(0)
    kp, kx, kt = jax.random.split(key, 3)

    params = init_params(
        kp, features_dim=features_dim, action_dim=action_dim,
        hidden_dim=hidden_dim, D=projection_dim,
        n_head=n_head, n_layer=n_layer, S=S)

    feat = action_dim + n_particles * features_dim          # 3 + 2*2 = 7
    x = jax.random.normal(kx, (B, T, feat), jnp.float32)
    time = jax.random.randint(kt, (B,), 0, 50).astype(jnp.float32)

    fwd = jax.jit(functools.partial(
        adaln_pint_forward,
        features_dim=features_dim, action_dim=action_dim,
        D=projection_dim, n_head=n_head))

    out = fwd(params, x, time)
    out = jax.block_until_ready(out)

    assert out.shape == (B, T, feat), out.shape
    assert bool(jnp.all(jnp.isfinite(out)))
    print("KERNEL_OK")
</pallas_src>

<mosaic_0001>
module attributes {stable_mosaic.version = 11 : i64} {
  func.func @kernel(%arg0: i32, %arg1: memref<8x3xbf16, #tpu.memory_space<vmem>>, %arg2: memref<3x32xbf16, #tpu.memory_space<vmem>>, %arg3: memref<1x32xf32, #tpu.memory_space<vmem>>, %arg4: memref<32x32xbf16, #tpu.memory_space<vmem>>, %arg5: memref<1x32xf32, #tpu.memory_space<vmem>>, %arg6: memref<1x32xf32, #tpu.memory_space<vmem>>, %arg7: memref<8x32xf32, #tpu.memory_space<vmem>>) attributes {dimension_semantics = [#tpu.dimension_semantics<parallel>], iteration_bounds = array<i64: 2>, scalar_prefetch = 0 : i64, scratch_operands = 0 : i64, tpu.core_type = #tpu.core_type<tc>, window_params = [{transform_indices = @transform_0, window_bounds = array<i64: 8, 3>}, {pipeline_mode = #tpu.pipeline_mode<synchronous>, transform_indices = @transform_1, window_bounds = array<i64: 3, 32>}, {pipeline_mode = #tpu.pipeline_mode<synchronous>, transform_indices = @transform_2, window_bounds = array<i64: 1, 32>}, {pipeline_mode = #tpu.pipeline_mode<synchronous>, transform_indices = @transform_3, window_bounds = array<i64: 32, 32>}, {pipeline_mode = #tpu.pipeline_mode<synchronous>, transform_indices = @transform_4, window_bounds = array<i64: 1, 32>}, {pipeline_mode = #tpu.pipeline_mode<synchronous>, transform_indices = @transform_5, window_bounds = array<i64: 1, 32>}, {transform_indices = @transform_6, window_bounds = array<i64: 8, 32>}]} {
    %c0 = arith.constant 0 : index
    %c0_0 = arith.constant 0 : index
    %0 = vector.load %arg1[%c0, %c0_0] : memref<8x3xbf16, #tpu.memory_space<vmem>>, vector<8x3xbf16>
    %c0_1 = arith.constant 0 : index
    %c0_2 = arith.constant 0 : index
    %1 = vector.load %arg2[%c0_1, %c0_2] : memref<3x32xbf16, #tpu.memory_space<vmem>>, vector<3x32xbf16>
    %cst = arith.constant dense<0.000000e+00> : vector<8x32xf32>
    %2 = tpu.matmul %0, %1, %cst {dimension_numbers = #tpu.dot_dimension_numbers<[1], [0], [0], [1], [0, 0, 1, 1], [], []>} : vector<8x3xbf16>, vector<3x32xbf16>, vector<8x32xf32> -> vector<8x32xf32>
    %c0_3 = arith.constant 0 : index
    %c0_4 = arith.constant 0 : index
    %3 = vector.load %arg3[%c0_3, %c0_4] : memref<1x32xf32, #tpu.memory_space<vmem>>, vector<1x32xf32>
    %4 = vector.broadcast %3 : vector<1x32xf32> to vector<8x32xf32>
    %5 = arith.addf %2, %4 : vector<8x32xf32>
    %cst_5 = arith.constant 5.000000e-01 : f32
    %6 = vector.broadcast %cst_5 : f32 to vector<8x32xf32>
    %7 = arith.mulf %6, %5 : vector<8x32xf32>
    %cst_6 = arith.constant 4.471500e-02 : f32
    %8 = vector.broadcast %cst_6 : f32 to vector<8x32xf32>
    %9 = arith.mulf %8, %5 : vector<8x32xf32>
    %10 = arith.mulf %9, %5 : vector<8x32xf32>
    %11 = arith.mulf %10, %5 : vector<8x32xf32>
    %12 = arith.addf %5, %11 : vector<8x32xf32>
    %cst_7 = arith.constant 0.797884583 : f32
    %13 = vector.broadcast %cst_7 : f32 to vector<8x32xf32>
    %14 = arith.mulf %13, %12 : vector<8x32xf32>
    %15 = math.tanh %14 : vector<8x32xf32>
    %cst_8 = arith.constant 1.000000e+00 : f32
    %16 = vector.broadcast %cst_8 : f32 to vector<8x32xf32>
    %17 = arith.addf %16, %15 : vector<8x32xf32>
    %18 = arith.mulf %7, %17 : vector<8x32xf32>
    %19 = arith.truncf %18 : vector<8x32xf32> to vector<8x32xbf16>
    %c0_9 = arith.constant 0 : index
    %c0_10 = arith.constant 0 : index
    %20 = vector.load %arg4[%c0_9, %c0_10] : memref<32x32xbf16, #tpu.memory_space<vmem>>, vector<32x32xbf16>
    %cst_11 = arith.constant dense<0.000000e+00> : vector<8x32xf32>
    %21 = tpu.matmul %19, %20, %cst_11 {dimension_numbers = #tpu.dot_dimension_numbers<[1], [0], [0], [1], [0, 0, 1, 1], [], []>} : vector<8x32xbf16>, vector<32x32xbf16>, vector<8x32xf32> -> vector<8x32xf32>
    %c0_12 = arith.constant 0 : index
    %c0_13 = arith.constant 0 : index
    %22 = vector.load %arg5[%c0_12, %c0_13] : memref<1x32xf32, #tpu.memory_space<vmem>>, vector<1x32xf32>
    %23 = vector.broadcast %22 : vector<1x32xf32> to vector<8x32xf32>
    %24 = arith.addf %21, %23 : vector<8x32xf32>
    %c0_14 = arith.constant 0 : index
    %c0_15 = arith.constant 0 : index
    %25 = vector.load %arg6[%c0_14, %c0_15] : memref<1x32xf32, #tpu.memory_space<vmem>>, vector<1x32xf32>
    %26 = vector.broadcast %25 : vector<1x32xf32> to vector<8x32xf32>
    %27 = arith.addf %24, %26 : vector<8x32xf32>
    %c0_16 = arith.constant 0 : index
    %c0_17 = arith.constant 0 : index
    %28 = vector.load %arg7[%c0_16, %c0_17] : memref<8x32xf32, #tpu.memory_space<vmem>>, vector<8x32xf32>
    tpu.vector_store %arg7[%c0_16, %c0_17], %27 {strides = array<i32>} : memref<8x32xf32, #tpu.memory_space<vmem>>, vector<8x32xf32>,
    return
  }
  func.func @transform_0(%arg0: i32) -> (i32, i32) {
    %c0_i32 = arith.constant 0 : i32
    %c0_i32_0 = arith.constant 0 : i32
    return %arg0, %c0_i32 : i32, i32
  }
  func.func @transform_1(%arg0: i32) -> (i32, i32) {
    %c0_i32 = arith.constant 0 : i32
    %c0_i32_0 = arith.constant 0 : i32
    %c0_i32_1 = arith.constant 0 : i32
    return %c0_i32, %c0_i32_0 : i32, i32
  }
  func.func @transform_2(%arg0: i32) -> (i32, i32) {
    %c0_i32 = arith.constant 0 : i32
    %c0_i32_0 = arith.constant 0 : i32
    %c0_i32_1 = arith.constant 0 : i32
    return %c0_i32, %c0_i32_0 : i32, i32
  }
  func.func @transform_3(%arg0: i32) -> (i32, i32) {
    %c0_i32 = arith.constant 0 : i32
    %c0_i32_0 = arith.constant 0 : i32
    %c0_i32_1 = arith.constant 0 : i32
    return %c0_i32, %c0_i32_0 : i32, i32
  }
  func.func @transform_4(%arg0: i32) -> (i32, i32) {
    %c0_i32 = arith.constant 0 : i32
    %c0_i32_0 = arith.constant 0 : i32
    %c0_i32_1 = arith.constant 0 : i32
    return %c0_i32, %c0_i32_0 : i32, i32
  }
  func.func @transform_5(%arg0: i32) -> (i32, i32) {
    %c0_i32 = arith.constant 0 : i32
    %c0_i32_0 = arith.constant 0 : i32
    %c0_i32_1 = arith.constant 0 : i32
    return %c0_i32, %c0_i32_0 : i32, i32
  }
  func.func @transform_6(%arg0: i32) -> (i32, i32) {
    %c0_i32 = arith.constant 0 : i32
    %c0_i32_0 = arith.constant 0 : i32
    return %arg0, %c0_i32 : i32, i32
  }
}

module attributes {stable_mosaic.version = 11 : i64} {
  func.func @kernel(%arg0: i32, %arg1: memref<16x2xbf16, #tpu.memory_space<vmem>>, %arg2: memref<2x32xbf16, #tpu.memory_space<vmem>>, %arg3: memref<1x32xf32, #tpu.memory_space<vmem>>, %arg4: memref<32x32xbf16, #tpu.memory_space<vmem>>, %arg5: memref<1x32xf32, #tpu.memory_space<vmem>>, %arg6: memref<1x32xf32, #tpu.memory_space<vmem>>, %arg7: memref<16x32xf32, #tpu.memory_space<vmem>>) attributes {dimension_semantics = [#tpu.dimension_semantics<parallel>], iteration_bounds = array<i64: 2>, scalar_prefetch = 0 : i64, scratch_operands = 0 : i64, tpu.core_type = #tpu.core_type<tc>, window_params = [{transform_indices = @transform_0, window_bounds = array<i64: 16, 2>}, {pipeline_mode = #tpu.pipeline_mode<synchronous>, transform_indices = @transform_1, window_bounds = array<i64: 2, 32>}, {pipeline_mode = #tpu.pipeline_mode<synchronous>, transform_indices = @transform_2, window_bounds = array<i64: 1, 32>}, {pipeline_mode = #tpu.pipeline_mode<synchronous>, transform_indices = @transform_3, window_bounds = array<i64: 32, 32>}, {pipeline_mode = #tpu.pipeline_mode<synchronous>, transform_indices = @transform_4, window_bounds = array<i64: 1, 32>}, {pipeline_mode = #tpu.pipeline_mode<synchronous>, transform_indices = @transform_5, window_bounds = array<i64: 1, 32>}, {transform_indices = @transform_6, window_bounds = array<i64: 16, 32>}]} {
    %c0 = arith.constant 0 : index
    %c0_0 = arith.constant 0 : index
    %0 = vector.load %arg1[%c0, %c0_0] : memref<16x2xbf16, #tpu.memory_space<vmem>>, vector<16x2xbf16>
    %c0_1 = arith.constant 0 : index
    %c0_2 = arith.constant 0 : index
    %1 = vector.load %arg2[%c0_1, %c0_2] : memref<2x32xbf16, #tpu.memory_space<vmem>>, vector<2x32xbf16>
    %cst = arith.constant dense<0.000000e+00> : vector<16x32xf32>
    %2 = tpu.matmul %0, %1, %cst {dimension_numbers = #tpu.dot_dimension_numbers<[1], [0], [0], [1], [0, 0, 1, 1], [], []>} : vector<16x2xbf16>, vector<2x32xbf16>, vector<16x32xf32> -> vector<16x32xf32>
    %c0_3 = arith.constant 0 : index
    %c0_4 = arith.constant 0 : index
    %3 = vector.load %arg3[%c0_3, %c0_4] : memref<1x32xf32, #tpu.memory_space<vmem>>, vector<1x32xf32>
    %4 = vector.broadcast %3 : vector<1x32xf32> to vector<16x32xf32>
    %5 = arith.addf %2, %4 : vector<16x32xf32>
    %cst_5 = arith.constant 5.000000e-01 : f32
    %6 = vector.broadcast %cst_5 : f32 to vector<16x32xf32>
    %7 = arith.mulf %6, %5 : vector<16x32xf32>
    %cst_6 = arith.constant 4.471500e-02 : f32
    %8 = vector.broadcast %cst_6 : f32 to vector<16x32xf32>
    %9 = arith.mulf %8, %5 : vector<16x32xf32>
    %10 = arith.mulf %9, %5 : vector<16x32xf32>
    %11 = arith.mulf %10, %5 : vector<16x32xf32>
    %12 = arith.addf %5, %11 : vector<16x32xf32>
    %cst_7 = arith.constant 0.797884583 : f32
    %13 = vector.broadcast %cst_7 : f32 to vector<16x32xf32>
    %14 = arith.mulf %13, %12 : vector<16x32xf32>
    %15 = math.tanh %14 : vector<16x32xf32>
    %cst_8 = arith.constant 1.000000e+00 : f32
    %16 = vector.broadcast %cst_8 : f32 to vector<16x32xf32>
    %17 = arith.addf %16, %15 : vector<16x32xf32>
    %18 = arith.mulf %7, %17 : vector<16x32xf32>
    %19 = arith.truncf %18 : vector<16x32xf32> to vector<16x32xbf16>
    %c0_9 = arith.constant 0 : index
    %c0_10 = arith.constant 0 : index
    %20 = vector.load %arg4[%c0_9, %c0_10] : memref<32x32xbf16, #tpu.memory_space<vmem>>, vector<32x32xbf16>
    %cst_11 = arith.constant dense<0.000000e+00> : vector<16x32xf32>
    %21 = tpu.matmul %19, %20, %cst_11 {dimension_numbers = #tpu.dot_dimension_numbers<[1], [0], [0], [1], [0, 0, 1, 1], [], []>} : vector<16x32xbf16>, vector<32x32xbf16>, vector<16x32xf32> -> vector<16x32xf32>
    %c0_12 = arith.constant 0 : index
    %c0_13 = arith.constant 0 : index
    %22 = vector.load %arg5[%c0_12, %c0_13] : memref<1x32xf32, #tpu.memory_space<vmem>>, vector<1x32xf32>
    %23 = vector.broadcast %22 : vector<1x32xf32> to vector<16x32xf32>
    %24 = arith.addf %21, %23 : vector<16x32xf32>
    %c0_14 = arith.constant 0 : index
    %c0_15 = arith.constant 0 : index
    %25 = vector.load %arg6[%c0_14, %c0_15] : memref<1x32xf32, #tpu.memory_space<vmem>>, vector<1x32xf32>
    %26 = vector.broadcast %25 : vector<1x32xf32> to vector<16x32xf32>
    %27 = arith.addf %24, %26 : vector<16x32xf32>
    %c0_16 = arith.constant 0 : index
    %c0_17 = arith.constant 0 : index
    %28 = vector.load %arg7[%c0_16, %c0_17] : memref<16x32xf32, #tpu.memory_space<vmem>>, vector<16x32xf32>
    tpu.vector_store %arg7[%c0_16, %c0_17], %27 {strides = array<i32>} : memref<16x32xf32, #tpu.memory_space<vmem>>, vector<16x32xf32>,
    return
  }
  func.func @transform_0(%arg0: i32) -> (i32, i32) {
    %c0_i32 = arith.constant 0 : i32
    %c0_i32_0 = arith.constant 0 : i32
    return %arg0, %c0_i32 : i32, i32
  }
  func.func @transform_1(%arg0: i32) -> (i32, i32) {
    %c0_i32 = arith.constant 0 : i32
    %c0_i32_0 = arith.constant 0 : i32
    %c0_i32_1 = arith.constant 0 : i32
    return %c0_i32, %c0_i32_0 : i32, i32
  }
  func.func @transform_2(%arg0: i32) -> (i32, i32) {
    %c0_i32 = arith.constant 0 : i32
    %c0_i32_0 = arith.constant 0 : i32
    %c0_i32_1 = arith.constant 0 : i32
    return %c0_i32, %c0_i32_0 : i32, i32
  }
  func.func @transform_3(%arg0: i32) -> (i32, i32) {
    %c0_i32 = arith.constant 0 : i32
    %c0_i32_0 = arith.constant 0 : i32
    %c0_i32_1 = arith.constant 0 : i32
    return %c0_i32, %c0_i32_0 : i32, i32
  }
  func.func @transform_4(%arg0: i32) -> (i32, i32) {
    %c0_i32 = arith.constant 0 : i32
    %c0_i32_0 = arith.constant 0 : i32
    %c0_i32_1 = arith.constant 0 : i32
    return %c0_i32, %c0_i32_0 : i32, i32
  }
  func.func @transform_5(%arg0: i32) -> (i32, i32) {
    %c0_i32 = arith.constant 0 : i32
    %c0_i32_0 = arith.constant 0 : i32
    %c0_i32_1 = arith.constant 0 : i32
    return %c0_i32, %c0_i32_0 : i32, i32
  }
  func.func @transform_6(%arg0: i32) -> (i32, i32) {
    %c0_i32 = arith.constant 0 : i32
    %c0_i32_0 = arith.constant 0 : i32
    return %arg0, %c0_i32 : i32, i32
  }
}

module attributes {stable_mosaic.version = 11 : i64} {
  func.func @kernel(%arg0: i32, %arg1: memref<2x32xf32, #tpu.memory_space<vmem>>, %arg2: memref<32x128xbf16, #tpu.memory_space<vmem>>, %arg3: memref<1x128xf32, #tpu.memory_space<vmem>>, %arg4: memref<128x32xbf16, #tpu.memory_space<vmem>>, %arg5: memref<1x32xf32, #tpu.memory_space<vmem>>, %arg6: memref<2x32xf32, #tpu.memory_space<vmem>>) attributes {dimension_semantics = [#tpu.dimension_semantics<parallel>], iteration_bounds = array<i64: 1>, scalar_prefetch = 0 : i64, scratch_operands = 0 : i64, tpu.core_type = #tpu.core_type<tc>, window_params = [{transform_indices = @transform_0, window_bounds = array<i64: 2, 32>}, {pipeline_mode = #tpu.pipeline_mode<synchronous>, transform_indices = @transform_1, window_bounds = array<i64: 32, 128>}, {pipeline_mode = #tpu.pipeline_mode<synchronous>, transform_indices = @transform_2, window_bounds = array<i64: 1, 128>}, {pipeline_mode = #tpu.pipeline_mode<synchronous>, transform_indices = @transform_3, window_bounds = array<i64: 128, 32>}, {pipeline_mode = #tpu.pipeline_mode<synchronous>, transform_indices = @transform_4, window_bounds = array<i64: 1, 32>}, {transform_indices = @transform_5, window_bounds = array<i64: 2, 32>}]} {
    %c0 = arith.constant 0 : index
    %c0_0 = arith.constant 0 : index
    %0 = vector.load %arg1[%c0, %c0_0] : memref<2x32xf32, #tpu.memory_space<vmem>>, vector<2x32xf32>
    %1 = arith.truncf %0 : vector<2x32xf32> to vector<2x32xbf16>
    %c0_1 = arith.constant 0 : index
    %c0_2 = arith.constant 0 : index
    %2 = vector.load %arg2[%c0_1, %c0_2] : memref<32x128xbf16, #tpu.memory_space<vmem>>, vector<32x128xbf16>
    %cst = arith.constant dense<0.000000e+00> : vector<2x128xf32>
    %3 = tpu.matmul %1, %2, %cst {dimension_numbers = #tpu.dot_dimension_numbers<[1], [0], [0], [1], [0, 0, 1, 1], [], []>} : vector<2x32xbf16>, vector<32x128xbf16>, vector<2x128xf32> -> vector<2x128xf32>
    %c0_3 = arith.constant 0 : index
    %c0_4 = arith.constant 0 : index
    %4 = vector.load %arg3[%c0_3, %c0_4] : memref<1x128xf32, #tpu.memory_space<vmem>>, vector<1x128xf32>
    %5 = vector.broadcast %4 : vector<1x128xf32> to vector<2x128xf32>
    %6 = arith.addf %3, %5 : vector<2x128xf32>
    %cst_5 = arith.constant 5.000000e-01 : f32
    %7 = vector.broadcast %cst_5 : f32 to vector<2x128xf32>
    %8 = arith.mulf %7, %6 : vector<2x128xf32>
    %cst_6 = arith.constant 4.471500e-02 : f32
    %9 = vector.broadcast %cst_6 : f32 to vector<2x128xf32>
    %10 = arith.mulf %9, %6 : vector<2x128xf32>
    %11 = arith.mulf %10, %6 : vector<2x128xf32>
    %12 = arith.mulf %11, %6 : vector<2x128xf32>
    %13 = arith.addf %6, %12 : vector<2x128xf32>
    %cst_7 = arith.constant 0.797884583 : f32
    %14 = vector.broadcast %cst_7 : f32 to vector<2x128xf32>
    %15 = arith.mulf %14, %13 : vector<2x128xf32>
    %16 = math.tanh %15 : vector<2x128xf32>
    %cst_8 = arith.constant 1.000000e+00 : f32
    %17 = vector.broadcast %cst_8 : f32 to vector<2x128xf32>
    %18 = arith.addf %17, %16 : vector<2x128xf32>
    %19 = arith.mulf %8, %18 : vector<2x128xf32>
    %20 = arith.truncf %19 : vector<2x128xf32> to vector<2x128xbf16>
    %c0_9 = arith.constant 0 : index
    %c0_10 = arith.constant 0 : index
    %21 = vector.load %arg4[%c0_9, %c0_10] : memref<128x32xbf16, #tpu.memory_space<vmem>>, vector<128x32xbf16>
    %cst_11 = arith.constant dense<0.000000e+00> : vector<2x32xf32>
    %22 = tpu.matmul %20, %21, %cst_11 {dimension_numbers = #tpu.dot_dimension_numbers<[1], [0], [0], [1], [0, 0, 1, 1], [], []>} : vector<2x128xbf16>, vector<128x32xbf16>, vector<2x32xf32> -> vector<2x32xf32>
    %c0_12 = arith.constant 0 : index
    %c0_13 = arith.constant 0 : index
    %23 = vector.load %arg5[%c0_12, %c0_13] : memref<1x32xf32, #tpu.memory_space<vmem>>, vector<1x32xf32>
    %24 = vector.broadcast %23 : vector<1x32xf32> to vector<2x32xf32>
    %25 = arith.addf %22, %24 : vector<2x32xf32>
    %c0_14 = arith.constant 0 : index
    %c0_15 = arith.constant 0 : index
    %26 = vector.load %arg6[%c0_14, %c0_15] : memref<2x32xf32, #tpu.memory_space<vmem>>, vector<2x32xf32>
    tpu.vector_store %arg6[%c0_14, %c0_15], %25 {strides = array<i32>} : memref<2x32xf32, #tpu.memory_space<vmem>>, vector<2x32xf32>,
    return
  }
  func.func @transform_0(%arg0: i32) -> (i32, i32) {
    %c0_i32 = arith.constant 0 : i32
    %c0_i32_0 = arith.constant 0 : i32
    return %arg0, %c0_i32 : i32, i32
  }
  func.func @transform_1(%arg0: i32) -> (i32, i32) {
    %c0_i32 = arith.constant 0 : i32
    %c0_i32_0 = arith.constant 0 : i32
    %c0_i32_1 = arith.constant 0 : i32
    return %c0_i32, %c0_i32_0 : i32, i32
  }
  func.func @transform_2(%arg0: i32) -> (i32, i32) {
    %c0_i32 = arith.constant 0 : i32
    %c0_i32_0 = arith.constant 0 : i32
    %c0_i32_1 = arith.constant 0 : i32
    return %c0_i32, %c0_i32_0 : i32, i32
  }
  func.func @transform_3(%arg0: i32) -> (i32, i32) {
    %c0_i32 = arith.constant 0 : i32
    %c0_i32_0 = arith.constant 0 : i32
    %c0_i32_1 = arith.constant 0 : i32
    return %c0_i32, %c0_i32_0 : i32, i32
  }
  func.func @transform_4(%arg0: i32) -> (i32, i32) {
    %c0_i32 = arith.constant 0 : i32
    %c0_i32_0 = arith.constant 0 : i32
    %c0_i32_1 = arith.constant 0 : i32
    return %c0_i32, %c0_i32_0 : i32, i32
  }
  func.func @transform_5(%arg0: i32) -> (i32, i32) {
    %c0_i32 = arith.constant 0 : i32
    %c0_i32_0 = arith.constant 0 : i32
    return %arg0, %c0_i32 : i32, i32
  }
}

module attributes {stable_mosaic.version = 11 : i64} {
  func.func @kernel(%arg0: i32, %arg1: memref<16x32xf32, #tpu.memory_space<vmem>>, %arg2: memref<32x32xbf16, #tpu.memory_space<vmem>>, %arg3: memref<1x32xf32, #tpu.memory_space<vmem>>, %arg4: memref<32x128xbf16, #tpu.memory_space<vmem>>, %arg5: memref<1x128xf32, #tpu.memory_space<vmem>>, %arg6: memref<1x32xf32, #tpu.memory_space<vmem>>, %arg7: memref<1x32xf32, #tpu.memory_space<vmem>>, %arg8: memref<16x128xf32, #tpu.memory_space<vmem>>) attributes {dimension_semantics = [#tpu.dimension_semantics<parallel>], iteration_bounds = array<i64: 2>, scalar_prefetch = 0 : i64, scratch_operands = 0 : i64, tpu.core_type = #tpu.core_type<tc>, window_params = [{transform_indices = @transform_0, window_bounds = array<i64: 16, 32>}, {pipeline_mode = #tpu.pipeline_mode<synchronous>, transform_indices = @transform_1, window_bounds = array<i64: 32, 32>}, {pipeline_mode = #tpu.pipeline_mode<synchronous>, transform_indices = @transform_2, window_bounds = array<i64: 1, 32>}, {pipeline_mode = #tpu.pipeline_mode<synchronous>, transform_indices = @transform_3, window_bounds = array<i64: 32, 128>}, {pipeline_mode = #tpu.pipeline_mode<synchronous>, transform_indices = @transform_4, window_bounds = array<i64: 1, 128>}, {pipeline_mode = #tpu.pipeline_mode<synchronous>, transform_indices = @transform_5, window_bounds = array<i64: 1, 32>}, {pipeline_mode = #tpu.pipeline_mode<synchronous>, transform_indices = @transform_6, window_bounds = array<i64: 1, 32>}, {transform_indices = @transform_7, window_bounds = array<i64: 16, 128>}]} {
    %c0 = arith.constant 0 : index
    %c0_0 = arith.constant 0 : index
    %0 = vector.load %arg1[%c0, %c0_0] : memref<16x32xf32, #tpu.memory_space<vmem>>, vector<16x32xf32>
    %cst = arith.constant dense<0.000000e+00> : vector<16xf32>
    %1 = vector.multi_reduction <add>, %0, %cst [1] : vector<16x32xf32> to vector<16xf32>
    %2 = vector.shape_cast %1 : vector<16xf32> to vector<16x1xf32>
    %cst_1 = arith.constant 3.200000e+01 : f32
    %3 = vector.broadcast %cst_1 : f32 to vector<16x1xf32>
    %4 = arith.divf %2, %3 : vector<16x1xf32>
    %5 = vector.broadcast %4 : vector<16x1xf32> to vector<16x32xf32>
    %6 = arith.subf %0, %5 : vector<16x32xf32>
    %7 = arith.mulf %6, %6 : vector<16x32xf32>
    %cst_2 = arith.constant dense<0.000000e+00> : vector<16xf32>
    %8 = vector.multi_reduction <add>, %7, %cst_2 [1] : vector<16x32xf32> to vector<16xf32>
    %9 = vector.shape_cast %8 : vector<16xf32> to vector<16x1xf32>
    %cst_3 = arith.constant 3.200000e+01 : f32
    %10 = vector.broadcast %cst_3 : f32 to vector<16x1xf32>
    %11 = arith.divf %9, %10 : vector<16x1xf32>
    %12 = vector.broadcast %4 : vector<16x1xf32> to vector<16x32xf32>
    %13 = arith.subf %0, %12 : vector<16x32xf32>
    %cst_4 = arith.constant 9.99999974E-6 : f32
    %14 = vector.broadcast %cst_4 : f32 to vector<16x1xf32>
    %15 = arith.addf %11, %14 : vector<16x1xf32>
    %16 = math.rsqrt %15 : vector<16x1xf32>
    %17 = vector.broadcast %16 : vector<16x1xf32> to vector<16x32xf32>
    %18 = arith.mulf %13, %17 : vector<16x32xf32>
    %c0_5 = arith.constant 0 : index
    %c0_6 = arith.constant 0 : index
    %19 = vector.load %arg6[%c0_5, %c0_6] : memref<1x32xf32, #tpu.memory_space<vmem>>, vector<1x32xf32>
    %20 = vector.broadcast %19 : vector<1x32xf32> to vector<16x32xf32>
    %21 = arith.mulf %18, %20 : vector<16x32xf32>
    %c0_7 = arith.constant 0 : index
    %c0_8 = arith.constant 0 : index
    %22 = vector.load %arg7[%c0_7, %c0_8] : memref<1x32xf32, #tpu.memory_space<vmem>>, vector<1x32xf32>
    %23 = vector.broadcast %22 : vector<1x32xf32> to vector<16x32xf32>
    %24 = arith.addf %21, %23 : vector<16x32xf32>
    %25 = arith.truncf %24 : vector<16x32xf32> to vector<16x32xbf16>
    %c0_9 = arith.constant 0 : index
    %c0_10 = arith.constant 0 : index
    %26 = vector.load %arg2[%c0_9, %c0_10] : memref<32x32xbf16, #tpu.memory_space<vmem>>, vector<32x32xbf16>
    %cst_11 = arith.constant dense<0.000000e+00> : vector<16x32xf32>
    %27 = tpu.matmul %25, %26, %cst_11 {dimension_numbers = #tpu.dot_dimension_numbers<[1], [0], [0], [1], [0, 0, 1, 1], [], []>} : vector<16x32xbf16>, vector<32x32xbf16>, vector<16x32xf32> -> vector<16x32xf32>
    %c0_12 = arith.constant 0 : index
    %c0_13 = arith.constant 0 : index
    %28 = vector.load %arg3[%c0_12, %c0_13] : memref<1x32xf32, #tpu.memory_space<vmem>>, vector<1x32xf32>
    %29 = vector.broadcast %28 : vector<1x32xf32> to vector<16x32xf32>
    %30 = arith.addf %27, %29 : vector<16x32xf32>
    %cst_14 = arith.constant 5.000000e-01 : f32
    %31 = vector.broadcast %cst_14 : f32 to vector<16x32xf32>
    %32 = arith.mulf %31, %30 : vector<16x32xf32>
    %cst_15 = arith.constant 4.471500e-02 : f32
    %33 = vector.broadcast %cst_15 : f32 to vector<16x32xf32>
    %34 = arith.mulf %33, %30 : vector<16x32xf32>
    %35 = arith.mulf %34, %30 : vector<16x32xf32>
    %36 = arith.mulf %35, %30 : vector<16x32xf32>
    %37 = arith.addf %30, %36 : vector<16x32xf32>
    %cst_16 = arith.constant 0.797884583 : f32
    %38 = vector.broadcast %cst_16 : f32 to vector<16x32xf32>
    %39 = arith.mulf %38, %37 : vector<16x32xf32>
    %40 = math.tanh %39 : vector<16x32xf32>
    %cst_17 = arith.constant 1.000000e+00 : f32
    %41 = vector.broadcast %cst_17 : f32 to vector<16x32xf32>
    %42 = arith.addf %41, %40 : vector<16x32xf32>
    %43 = arith.mulf %32, %42 : vector<16x32xf32>
    %44 = arith.truncf %43 : vector<16x32xf32> to vector<16x32xbf16>
    %c0_18 = arith.constant 0 : index
    %c0_19 = arith.constant 0 : index
    %45 = vector.load %arg4[%c0_18, %c0_19] : memref<32x128xbf16, #tpu.memory_space<vmem>>, vector<32x128xbf16>
    %cst_20 = arith.constant dense<0.000000e+00> : vector<16x128xf32>
    %46 = tpu.matmul %44, %45, %cst_20 {dimension_numbers = #tpu.dot_dimension_numbers<[1], [0], [0], [1], [0, 0, 1, 1], [], []>} : vector<16x32xbf16>, vector<32x128xbf16>, vector<16x128xf32> -> vector<16x128xf32>
    %c0_21 = arith.constant 0 : index
    %c0_22 = arith.constant 0 : index
    %47 = vector.load %arg5[%c0_21, %c0_22] : memref<1x128xf32, #tpu.memory_space<vmem>>, vector<1x128xf32>
    %48 = vector.broadcast %47 : vector<1x128xf32> to vector<16x128xf32>
    %49 = arith.addf %46, %48 : vector<16x128xf32>
    %c0_23 = arith.constant 0 : index
    %c0_24 = arith.constant 0 : index
    %50 = vector.load %arg8[%c0_23, %c0_24] : memref<16x128xf32, #tpu.memory_space<vmem>>, vector<16x128xf32>
    tpu.vector_store %arg8[%c0_23, %c0_24], %49 {strides = array<i32>} : memref<16x128xf32, #tpu.memory_space<vmem>>, vector<16x128xf32>,
    return
  }
  func.func @transform_0(%arg0: i32) -> (i32, i32) {
    %c0_i32 = arith.constant 0 : i32
    %c0_i32_0 = arith.constant 0 : i32
    return %arg0, %c0_i32 : i32, i32
  }
  func.func @transform_1(%arg0: i32) -> (i32, i32) {
    %c0_i32 = arith.constant 0 : i32
    %c0_i32_0 = arith.constant 0 : i32
    %c0_i32_1 = arith.constant 0 : i32
    return %c0_i32, %c0_i32_0 : i32, i32
  }
  func.func @transform_2(%arg0: i32) -> (i32, i32) {
    %c0_i32 = arith.constant 0 : i32
    %c0_i32_0 = arith.constant 0 : i32
    %c0_i32_1 = arith.constant 0 : i32
    return %c0_i32, %c0_i32_0 : i32, i32
  }
  func.func @transform_3(%arg0: i32) -> (i32, i32) {
    %c0_i32 = arith.constant 0 : i32
    %c0_i32_0 = arith.constant 0 : i32
    %c0_i32_1 = arith.constant 0 : i32
    return %c0_i32, %c0_i32_0 : i32, i32
  }
  func.func @transform_4(%arg0: i32) -> (i32, i32) {
    %c0_i32 = arith.constant 0 : i32
    %c0_i32_0 = arith.constant 0 : i32
    %c0_i32_1 = arith.constant 0 : i32
    return %c0_i32, %c0_i32_0 : i32, i32
  }
  func.func @transform_5(%arg0: i32) -> (i32, i32) {
    %c0_i32 = arith.constant 0 : i32
    %c0_i32_0 = arith.constant 0 : i32
    %c0_i32_1 = arith.constant 0 : i32
    return %c0_i32, %c0_i32_0 : i32, i32
  }
  func.func @transform_6(%arg0: i32) -> (i32, i32) {
    %c0_i32 = arith.constant 0 : i32
    %c0_i32_0 = arith.constant 0 : i32
    %c0_i32_1 = arith.constant 0 : i32
    return %c0_i32, %c0_i32_0 : i32, i32
  }
  func.func @transform_7(%arg0: i32) -> (i32, i32) {
    %c0_i32 = arith.constant 0 : i32
    %c0_i32_0 = arith.constant 0 : i32
    return %arg0, %c0_i32 : i32, i32
  }
}

module attributes {stable_mosaic.version = 11 : i64} {
  func.func @kernel(%arg0: i32, %arg1: i32, %arg2: memref<1x24x32xf32, #tpu.memory_space<vmem>>, %arg3: memref<1x6x32xf32, #tpu.memory_space<vmem>>, %arg4: memref<4x24x24xf32, #tpu.memory_space<vmem>>, %arg5: memref<1x32x96xbf16, #tpu.memory_space<vmem>>, %arg6: memref<1x1x96xf32, #tpu.memory_space<vmem>>, %arg7: memref<1x32x32xbf16, #tpu.memory_space<vmem>>, %arg8: memref<1x1x32xf32, #tpu.memory_space<vmem>>, %arg9: memref<1x32x128xbf16, #tpu.memory_space<vmem>>, %arg10: memref<1x1x128xf32, #tpu.memory_space<vmem>>, %arg11: memref<1x128x32xbf16, #tpu.memory_space<vmem>>, %arg12: memref<1x1x32xf32, #tpu.memory_space<vmem>>, %arg13: memref<1x24x32xf32, #tpu.memory_space<vmem>>) attributes {dimension_semantics = [#tpu.dimension_semantics<parallel>, #tpu.dimension_semantics<arbitrary>], iteration_bounds = array<i64: 2, 2>, scalar_prefetch = 0 : i64, scratch_operands = 0 : i64, tpu.core_type = #tpu.core_type<tc>, window_params = [{transform_indices = @transform_0, window_bounds = array<i64: 1, 24, 32>}, {transform_indices = @transform_1, window_bounds = array<i64: 1, 6, 32>}, {transform_indices = @transform_2, window_bounds = array<i64: 4, 24, 24>}, {transform_indices = @transform_3, window_bounds = array<i64: 1, 32, 96>}, {transform_indices = @transform_4, window_bounds = array<i64: 1, 1, 96>}, {transform_indices = @transform_5, window_bounds = array<i64: 1, 32, 32>}, {transform_indices = @transform_6, window_bounds = array<i64: 1, 1, 32>}, {transform_indices = @transform_7, window_bounds = array<i64: 1, 32, 128>}, {transform_indices = @transform_8, window_bounds = array<i64: 1, 1, 128>}, {transform_indices = @transform_9, window_bounds = array<i64: 1, 128, 32>}, {transform_indices = @transform_10, window_bounds = array<i64: 1, 1, 32>}, {transform_indices = @transform_11, window_bounds = array<i64: 1, 24, 32>}]} {
    %c0_i32 = arith.constant 0 : i32
    %0 = arith.cmpi eq, %arg1, %c0_i32 : i32
    %1 = arith.extui %0 : i1 to i32
    %c0_i32_0 = arith.constant 0 : i32
    %2 = arith.cmpi ne, %1, %c0_i32_0 : i32
    scf.if %2 {
      %c0_81 = arith.constant 0 : index
      %c0_82 = arith.constant 0 : index
      %c0_83 = arith.constant 0 : index
      %212 = vector.load %arg2[%c0_81, %c0_82, %c0_83] : memref<1x24x32xf32, #tpu.memory_space<vmem>>, vector<1x24x32xf32>
      %c0_84 = arith.constant 0 : index
      %c0_85 = arith.constant 0 : index
      %c0_86 = arith.constant 0 : index
      %213 = vector.load %arg13[%c0_84, %c0_85, %c0_86] : memref<1x24x32xf32, #tpu.memory_space<vmem>>, vector<1x24x32xf32>
      tpu.vector_store %arg13[%c0_84, %c0_85, %c0_86], %212 {strides = array<i32>} : memref<1x24x32xf32, #tpu.memory_space<vmem>>, vector<1x24x32xf32>,
    } else {
    }
    %c0 = arith.constant 0 : index
    %c0_1 = arith.constant 0 : index
    %c0_2 = arith.constant 0 : index
    %3 = vector.load %arg13[%c0, %c0_1, %c0_2] : memref<1x24x32xf32, #tpu.memory_space<vmem>>, vector<1x24x32xf32>
    %4 = vector.shape_cast %3 : vector<1x24x32xf32> to vector<24x32xf32>
    %c0_3 = arith.constant 0 : index
    %c0_4 = arith.constant 0 : index
    %c0_5 = arith.constant 0 : index
    %5 = vector.load %arg3[%c0_3, %c0_4, %c0_5] : memref<1x6x32xf32, #tpu.memory_space<vmem>>, vector<1x6x32xf32>
    %6 = vector.shape_cast %5 : vector<1x6x32xf32> to vector<6x32xf32>
    %7 = vector.extract_strided_slice %6 {offsets = [0, 0], sizes = [1, 32], strides = [1, 1]} : vector<6x32xf32> to vector<1x32xf32>
    %8 = vector.extract_strided_slice %6 {offsets = [1, 0], sizes = [1, 32], strides = [1, 1]} : vector<6x32xf32> to vector<1x32xf32>
    %9 = vector.extract_strided_slice %6 {offsets = [2, 0], sizes = [1, 32], strides = [1, 1]} : vector<6x32xf32> to vector<1x32xf32>
    %10 = vector.extract_strided_slice %6 {offsets = [3, 0], sizes = [1, 32], strides = [1, 1]} : vector<6x32xf32> to vector<1x32xf32>
    %11 = vector.extract_strided_slice %6 {offsets = [4, 0], sizes = [1, 32], strides = [1, 1]} : vector<6x32xf32> to vector<1x32xf32>
    %12 = vector.extract_strided_slice %6 {offsets = [5, 0], sizes = [1, 32], strides = [1, 1]} : vector<6x32xf32> to vector<1x32xf32>
    %cst = arith.constant dense<0.000000e+00> : vector<24xf32>
    %13 = vector.multi_reduction <add>, %4, %cst [1] : vector<24x32xf32> to vector<24xf32>
    %14 = vector.shape_cast %13 : vector<24xf32> to vector<24x1xf32>
    %cst_6 = arith.constant 3.200000e+01 : f32
    %15 = vector.broadcast %cst_6 : f32 to vector<24x1xf32>
    %16 = arith.divf %14, %15 : vector<24x1xf32>
    %17 = vector.broadcast %16 : vector<24x1xf32> to vector<24x32xf32>
    %18 = arith.subf %4, %17 : vector<24x32xf32>
    %19 = arith.mulf %18, %18 : vector<24x32xf32>
    %cst_7 = arith.constant dense<0.000000e+00> : vector<24xf32>
    %20 = vector.multi_reduction <add>, %19, %cst_7 [1] : vector<24x32xf32> to vector<24xf32>
    %21 = vector.shape_cast %20 : vector<24xf32> to vector<24x1xf32>
    %cst_8 = arith.constant 3.200000e+01 : f32
    %22 = vector.broadcast %cst_8 : f32 to vector<24x1xf32>
    %23 = arith.divf %21, %22 : vector<24x1xf32>
    %24 = vector.broadcast %16 : vector<24x1xf32> to vector<24x32xf32>
    %25 = arith.subf %4, %24 : vector<24x32xf32>
    %cst_9 = arith.constant 9.99999974E-6 : f32
    %26 = vector.broadcast %cst_9 : f32 to vector<24x1xf32>
    %27 = arith.addf %23, %26 : vector<24x1xf32>
    %28 = math.rsqrt %27 : vector<24x1xf32>
    %29 = vector.broadcast %28 : vector<24x1xf32> to vector<24x32xf32>
    %30 = arith.mulf %25, %29 : vector<24x32xf32>
    %cst_10 = arith.constant 1.000000e+00 : f32
    %31 = vector.broadcast %cst_10 : f32 to vector<1x32xf32>
    %32 = arith.addf %31, %8 : vector<1x32xf32>
    %33 = vector.broadcast %32 : vector<1x32xf32> to vector<24x32xf32>
    %34 = arith.mulf %30, %33 : vector<24x32xf32>
    %35 = vector.broadcast %7 : vector<1x32xf32> to vector<24x32xf32>
    %36 = arith.addf %34, %35 : vector<24x32xf32>
    %37 = arith.truncf %36 : vector<24x32xf32> to vector<24x32xbf16>
    %c0_11 = arith.constant 0 : index
    %c0_12 = arith.constant 0 : index
    %c0_13 = arith.constant 0 : index
    %38 = vector.load %arg5[%c0_11, %c0_12, %c0_13] : memref<1x32x96xbf16, #tpu.memory_space<vmem>>, vector<1x32x96xbf16>
    %39 = vector.shape_cast %38 : vector<1x32x96xbf16> to vector<32x96xbf16>
    %cst_14 = arith.constant dense<0.000000e+00> : vector<24x96xf32>
    %40 = tpu.matmul %37, %39, %cst_14 {dimension_numbers = #tpu.dot_dimension_numbers<[1], [0], [0], [1], [0, 0, 1, 1], [], []>} : vector<24x32xbf16>, vector<32x96xbf16>, vector<24x96xf32> -> vector<24x96xf32>
    %c0_15 = arith.constant 0 : index
    %c0_16 = arith.constant 0 : index
    %c0_17 = arith.constant 0 : index
    %41 = vector.load %arg6[%c0_15, %c0_16, %c0_17] : memref<1x1x96xf32, #tpu.memory_space<vmem>>, vector<1x1x96xf32>
    %42 = vector.shape_cast %41 : vector<1x1x96xf32> to vector<1x96xf32>
    %43 = vector.broadcast %42 : vector<1x96xf32> to vector<24x96xf32>
    %44 = arith.addf %40, %43 : vector<24x96xf32>
    %45 = vector.extract_strided_slice %44 {offsets = [0, 0], sizes = [24, 8], strides = [1, 1]} : vector<24x96xf32> to vector<24x8xf32>
    %46 = vector.extract_strided_slice %44 {offsets = [0, 32], sizes = [24, 8], strides = [1, 1]} : vector<24x96xf32> to vector<24x8xf32>
    %47 = vector.extract_strided_slice %44 {offsets = [0, 64], sizes = [24, 8], strides = [1, 1]} : vector<24x96xf32> to vector<24x8xf32>
    %48 = arith.truncf %45 : vector<24x8xf32> to vector<24x8xbf16>
    %49 = arith.truncf %46 : vector<24x8xf32> to vector<24x8xbf16>
    %cst_18 = arith.constant dense<0.000000e+00> : vector<24x24xf32>
    %50 = tpu.matmul %48, %49, %cst_18 {dimension_numbers = #tpu.dot_dimension_numbers<[1], [1], [0], [0], [0, 0, 1, 0], [], []>} : vector<24x8xbf16>, vector<24x8xbf16>, vector<24x24xf32> -> vector<24x24xf32>
    %cst_19 = arith.constant 0.353553385 : f32
    %51 = vector.broadcast %cst_19 : f32 to vector<24x24xf32>
    %52 = arith.mulf %50, %51 : vector<24x24xf32>
    %c0_20 = arith.constant 0 : index
    %c0_21 = arith.constant 0 : index
    %c0_22 = arith.constant 0 : index
    %53 = vector.load %arg4[%c0_20, %c0_21, %c0_22] : memref<4x24x24xf32, #tpu.memory_space<vmem>>, vector<1x24x24xf32>
    %54 = vector.shape_cast %53 : vector<1x24x24xf32> to vector<24x24xf32>
    %55 = arith.addf %52, %54 : vector<24x24xf32>
    %cst_23 = arith.constant dense<0xFF800000> : vector<24xf32>
    %56 = vector.multi_reduction <maximumf>, %55, %cst_23 [1] : vector<24x24xf32> to vector<24xf32>
    %57 = vector.shape_cast %56 : vector<24xf32> to vector<24x1xf32>
    %58 = vector.broadcast %57 : vector<24x1xf32> to vector<24x24xf32>
    %59 = arith.subf %55, %58 : vector<24x24xf32>
    %60 = math.exp %59 : vector<24x24xf32>
    %cst_24 = arith.constant dense<0.000000e+00> : vector<24xf32>
    %61 = vector.multi_reduction <add>, %60, %cst_24 [1] : vector<24x24xf32> to vector<24xf32>
    %62 = vector.shape_cast %61 : vector<24xf32> to vector<24x1xf32>
    %63 = tpu.reciprocal %62 {approx = true} : vector<24x1xf32> -> vector<24x1xf32>
    %64 = vector.broadcast %63 : vector<24x1xf32> to vector<24x24xf32>
    %65 = arith.mulf %60, %64 : vector<24x24xf32>
    %66 = arith.truncf %65 : vector<24x24xf32> to vector<24x24xbf16>
    %67 = arith.truncf %47 : vector<24x8xf32> to vector<24x8xbf16>
    %cst_25 = arith.constant dense<0.000000e+00> : vector<24x8xf32>
    %68 = tpu.matmul %66, %67, %cst_25 {dimension_numbers = #tpu.dot_dimension_numbers<[1], [0], [0], [1], [0, 0, 1, 1], [], []>} : vector<24x24xbf16>, vector<24x8xbf16>, vector<24x8xf32> -> vector<24x8xf32>
    %69 = vector.extract_strided_slice %44 {offsets = [0, 8], sizes = [24, 8], strides = [1, 1]} : vector<24x96xf32> to vector<24x8xf32>
    %70 = vector.extract_strided_slice %44 {offsets = [0, 40], sizes = [24, 8], strides = [1, 1]} : vector<24x96xf32> to vector<24x8xf32>
    %71 = vector.extract_strided_slice %44 {offsets = [0, 72], sizes = [24, 8], strides = [1, 1]} : vector<24x96xf32> to vector<24x8xf32>
    %72 = arith.truncf %69 : vector<24x8xf32> to vector<24x8xbf16>
    %73 = arith.truncf %70 : vector<24x8xf32> to vector<24x8xbf16>
    %cst_26 = arith.constant dense<0.000000e+00> : vector<24x24xf32>
    %74 = tpu.matmul %72, %73, %cst_26 {dimension_numbers = #tpu.dot_dimension_numbers<[1], [1], [0], [0], [0, 0, 1, 0], [], []>} : vector<24x8xbf16>, vector<24x8xbf16>, vector<24x24xf32> -> vector<24x24xf32>
    %cst_27 = arith.constant 0.353553385 : f32
    %75 = vector.broadcast %cst_27 : f32 to vector<24x24xf32>
    %76 = arith.mulf %74, %75 : vector<24x24xf32>
    %c1 = arith.constant 1 : index
    %c0_28 = arith.constant 0 : index
    %c0_29 = arith.constant 0 : index
    %77 = vector.load %arg4[%c1, %c0_28, %c0_29] : memref<4x24x24xf32, #tpu.memory_space<vmem>>, vector<1x24x24xf32>
    %78 = vector.shape_cast %77 : vector<1x24x24xf32> to vector<24x24xf32>
    %79 = arith.addf %76, %78 : vector<24x24xf32>
    %cst_30 = arith.constant dense<0xFF800000> : vector<24xf32>
    %80 = vector.multi_reduction <maximumf>, %79, %cst_30 [1] : vector<24x24xf32> to vector<24xf32>
    %81 = vector.shape_cast %80 : vector<24xf32> to vector<24x1xf32>
    %82 = vector.broadcast %81 : vector<24x1xf32> to vector<24x24xf32>
    %83 = arith.subf %79, %82 : vector<24x24xf32>
    %84 = math.exp %83 : vector<24x24xf32>
    %cst_31 = arith.constant dense<0.000000e+00> : vector<24xf32>
    %85 = vector.multi_reduction <add>, %84, %cst_31 [1] : vector<24x24xf32> to vector<24xf32>
    %86 = vector.shape_cast %85 : vector<24xf32> to vector<24x1xf32>
    %87 = tpu.reciprocal %86 {approx = true} : vector<24x1xf32> -> vector<24x1xf32>
    %88 = vector.broadcast %87 : vector<24x1xf32> to vector<24x24xf32>
    %89 = arith.mulf %84, %88 : vector<24x24xf32>
    %90 = arith.truncf %89 : vector<24x24xf32> to vector<24x24xbf16>
    %91 = arith.truncf %71 : vector<24x8xf32> to vector<24x8xbf16>
    %cst_32 = arith.constant dense<0.000000e+00> : vector<24x8xf32>
    %92 = tpu.matmul %90, %91, %cst_32 {dimension_numbers = #tpu.dot_dimension_numbers<[1], [0], [0], [1], [0, 0, 1, 1], [], []>} : vector<24x24xbf16>, vector<24x8xbf16>, vector<24x8xf32> -> vector<24x8xf32>
    %93 = vector.extract_strided_slice %44 {offsets = [0, 16], sizes = [24, 8], strides = [1, 1]} : vector<24x96xf32> to vector<24x8xf32>
    %94 = vector.extract_strided_slice %44 {offsets = [0, 48], sizes = [24, 8], strides = [1, 1]} : vector<24x96xf32> to vector<24x8xf32>
    %95 = vector.extract_strided_slice %44 {offsets = [0, 80], sizes = [24, 8], strides = [1, 1]} : vector<24x96xf32> to vector<24x8xf32>
    %96 = arith.truncf %93 : vector<24x8xf32> to vector<24x8xbf16>
    %97 = arith.truncf %94 : vector<24x8xf32> to vector<24x8xbf16>
    %cst_33 = arith.constant dense<0.000000e+00> : vector<24x24xf32>
    %98 = tpu.matmul %96, %97, %cst_33 {dimension_numbers = #tpu.dot_dimension_numbers<[1], [1], [0], [0], [0, 0, 1, 0], [], []>} : vector<24x8xbf16>, vector<24x8xbf16>, vector<24x24xf32> -> vector<24x24xf32>
    %cst_34 = arith.constant 0.353553385 : f32
    %99 = vector.broadcast %cst_34 : f32 to vector<24x24xf32>
    %100 = arith.mulf %98, %99 : vector<24x24xf32>
    %c2 = arith.constant 2 : index
    %c0_35 = arith.constant 0 : index
    %c0_36 = arith.constant 0 : index
    %101 = vector.load %arg4[%c2, %c0_35, %c0_36] : memref<4x24x24xf32, #tpu.memory_space<vmem>>, vector<1x24x24xf32>
    %102 = vector.shape_cast %101 : vector<1x24x24xf32> to vector<24x24xf32>
    %103 = arith.addf %100, %102 : vector<24x24xf32>
    %cst_37 = arith.constant dense<0xFF800000> : vector<24xf32>
    %104 = vector.multi_reduction <maximumf>, %103, %cst_37 [1] : vector<24x24xf32> to vector<24xf32>
    %105 = vector.shape_cast %104 : vector<24xf32> to vector<24x1xf32>
    %106 = vector.broadcast %105 : vector<24x1xf32> to vector<24x24xf32>
    %107 = arith.subf %103, %106 : vector<24x24xf32>
    %108 = math.exp %107 : vector<24x24xf32>
    %cst_38 = arith.constant dense<0.000000e+00> : vector<24xf32>
    %109 = vector.multi_reduction <add>, %108, %cst_38 [1] : vector<24x24xf32> to vector<24xf32>
    %110 = vector.shape_cast %109 : vector<24xf32> to vector<24x1xf32>
    %111 = tpu.reciprocal %110 {approx = true} : vector<24x1xf32> -> vector<24x1xf32>
    %112 = vector.broadcast %111 : vector<24x1xf32> to vector<24x24xf32>
    %113 = arith.mulf %108, %112 : vector<24x24xf32>
    %114 = arith.truncf %113 : vector<24x24xf32> to vector<24x24xbf16>
    %115 = arith.truncf %95 : vector<24x8xf32> to vector<24x8xbf16>
    %cst_39 = arith.constant dense<0.000000e+00> : vector<24x8xf32>
    %116 = tpu.matmul %114, %115, %cst_39 {dimension_numbers = #tpu.dot_dimension_numbers<[1], [0], [0], [1], [0, 0, 1, 1], [], []>} : vector<24x24xbf16>, vector<24x8xbf16>, vector<24x8xf32> -> vector<24x8xf32>
    %117 = vector.extract_strided_slice %44 {offsets = [0, 24], sizes = [24, 8], strides = [1, 1]} : vector<24x96xf32> to vector<24x8xf32>
    %118 = vector.extract_strided_slice %44 {offsets = [0, 56], sizes = [24, 8], strides = [1, 1]} : vector<24x96xf32> to vector<24x8xf32>
    %119 = vector.extract_strided_slice %44 {offsets = [0, 88], sizes = [24, 8], strides = [1, 1]} : vector<24x96xf32> to vector<24x8xf32>
    %120 = arith.truncf %117 : vector<24x8xf32> to vector<24x8xbf16>
    %121 = arith.truncf %118 : vector<24x8xf32> to vector<24x8xbf16>
    %cst_40 = arith.constant dense<0.000000e+00> : vector<24x24xf32>
    %122 = tpu.matmul %120, %121, %cst_40 {dimension_numbers = #tpu.dot_dimension_numbers<[1], [1], [0], [0], [0, 0, 1, 0], [], []>} : vector<24x8xbf16>, vector<24x8xbf16>, vector<24x24xf32> -> vector<24x24xf32>
    %cst_41 = arith.constant 0.353553385 : f32
    %123 = vector.broadcast %cst_41 : f32 to vector<24x24xf32>
    %124 = arith.mulf %122, %123 : vector<24x24xf32>
    %c3 = arith.constant 3 : index
    %c0_42 = arith.constant 0 : index
    %c0_43 = arith.constant 0 : index
    %125 = vector.load %arg4[%c3, %c0_42, %c0_43] : memref<4x24x24xf32, #tpu.memory_space<vmem>>, vector<1x24x24xf32>
    %126 = vector.shape_cast %125 : vector<1x24x24xf32> to vector<24x24xf32>
    %127 = arith.addf %124, %126 : vector<24x24xf32>
    %cst_44 = arith.constant dense<0xFF800000> : vector<24xf32>
    %128 = vector.multi_reduction <maximumf>, %127, %cst_44 [1] : vector<24x24xf32> to vector<24xf32>
    %129 = vector.shape_cast %128 : vector<24xf32> to vector<24x1xf32>
    %130 = vector.broadcast %129 : vector<24x1xf32> to vector<24x24xf32>
    %131 = arith.subf %127, %130 : vector<24x24xf32>
    %132 = math.exp %131 : vector<24x24xf32>
    %cst_45 = arith.constant dense<0.000000e+00> : vector<24xf32>
    %133 = vector.multi_reduction <add>, %132, %cst_45 [1] : vector<24x24xf32> to vector<24xf32>
    %134 = vector.shape_cast %133 : vector<24xf32> to vector<24x1xf32>
    %135 = tpu.reciprocal %134 {approx = true} : vector<24x1xf32> -> vector<24x1xf32>
    %136 = vector.broadcast %135 : vector<24x1xf32> to vector<24x24xf32>
    %137 = arith.mulf %132, %136 : vector<24x24xf32>
    %138 = arith.truncf %137 : vector<24x24xf32> to vector<24x24xbf16>
    %139 = arith.truncf %119 : vector<24x8xf32> to vector<24x8xbf16>
    %cst_46 = arith.constant dense<0.000000e+00> : vector<24x8xf32>
    %140 = tpu.matmul %138, %139, %cst_46 {dimension_numbers = #tpu.dot_dimension_numbers<[1], [0], [0], [1], [0, 0, 1, 1], [], []>} : vector<24x24xbf16>, vector<24x8xbf16>, vector<24x8xf32> -> vector<24x8xf32>
    %141 = tpu.concatenate %68, %92, %116, %140 in 1 : vector<24x8xf32>, vector<24x8xf32>, vector<24x8xf32>, vector<24x8xf32> -> vector<24x32xf32>
    %142 = arith.truncf %141 : vector<24x32xf32> to vector<24x32xbf16>
    %c0_47 = arith.constant 0 : index
    %c0_48 = arith.constant 0 : index
    %c0_49 = arith.constant 0 : index
    %143 = vector.load %arg7[%c0_47, %c0_48, %c0_49] : memref<1x32x32xbf16, #tpu.memory_space<vmem>>, vector<1x32x32xbf16>
    %144 = vector.shape_cast %143 : vector<1x32x32xbf16> to vector<32x32xbf16>
    %cst_50 = arith.constant dense<0.000000e+00> : vector<24x32xf32>
    %145 = tpu.matmul %142, %144, %cst_50 {dimension_numbers = #tpu.dot_dimension_numbers<[1], [0], [0], [1], [0, 0, 1, 1], [], []>} : vector<24x32xbf16>, vector<32x32xbf16>, vector<24x32xf32> -> vector<24x32xf32>
    %c0_51 = arith.constant 0 : index
    %c0_52 = arith.constant 0 : index
    %c0_53 = arith.constant 0 : index
    %146 = vector.load %arg8[%c0_51, %c0_52, %c0_53] : memref<1x1x32xf32, #tpu.memory_space<vmem>>, vector<1x1x32xf32>
    %147 = vector.shape_cast %146 : vector<1x1x32xf32> to vector<1x32xf32>
    %148 = vector.broadcast %147 : vector<1x32xf32> to vector<24x32xf32>
    %149 = arith.addf %145, %148 : vector<24x32xf32>
    %150 = vector.broadcast %9 : vector<1x32xf32> to vector<24x32xf32>
    %151 = arith.mulf %150, %149 : vector<24x32xf32>
    %152 = arith.addf %4, %151 : vector<24x32xf32>
    %cst_54 = arith.constant dense<0.000000e+00> : vector<24xf32>
    %153 = vector.multi_reduction <add>, %152, %cst_54 [1] : vector<24x32xf32> to vector<24xf32>
    %154 = vector.shape_cast %153 : vector<24xf32> to vector<24x1xf32>
    %cst_55 = arith.constant 3.200000e+01 : f32
    %155 = vector.broadcast %cst_55 : f32 to vector<24x1xf32>
    %156 = arith.divf %154, %155 : vector<24x1xf32>
    %157 = vector.broadcast %156 : vector<24x1xf32> to vector<24x32xf32>
    %158 = arith.subf %152, %157 : vector<24x32xf32>
    %159 = arith.mulf %158, %158 : vector<24x32xf32>
    %cst_56 = arith.constant dense<0.000000e+00> : vector<24xf32>
    %160 = vector.multi_reduction <add>, %159, %cst_56 [1] : vector<24x32xf32> to vector<24xf32>
    %161 = vector.shape_cast %160 : vector<24xf32> to vector<24x1xf32>
    %cst_57 = arith.constant 3.200000e+01 : f32
    %162 = vector.broadcast %cst_57 : f32 to vector<24x1xf32>
    %163 = arith.divf %161, %162 : vector<24x1xf32>
    %164 = vector.broadcast %156 : vector<24x1xf32> to vector<24x32xf32>
    %165 = arith.subf %152, %164 : vector<24x32xf32>
    %cst_58 = arith.constant 9.99999974E-6 : f32
    %166 = vector.broadcast %cst_58 : f32 to vector<24x1xf32>
    %167 = arith.addf %163, %166 : vector<24x1xf32>
    %168 = math.rsqrt %167 : vector<24x1xf32>
    %169 = vector.broadcast %168 : vector<24x1xf32> to vector<24x32xf32>
    %170 = arith.mulf %165, %169 : vector<24x32xf32>
    %cst_59 = arith.constant 1.000000e+00 : f32
    %171 = vector.broadcast %cst_59 : f32 to vector<1x32xf32>
    %172 = arith.addf %171, %11 : vector<1x32xf32>
    %173 = vector.broadcast %172 : vector<1x32xf32> to vector<24x32xf32>
    %174 = arith.mulf %170, %173 : vector<24x32xf32>
    %175 = vector.broadcast %10 : vector<1x32xf32> to vector<24x32xf32>
    %176 = arith.addf %174, %175 : vector<24x32xf32>
    %177 = arith.truncf %176 : vector<24x32xf32> to vector<24x32xbf16>
    %c0_60 = arith.constant 0 : index
    %c0_61 = arith.constant 0 : index
    %c0_62 = arith.constant 0 : index
    %178 = vector.load %arg9[%c0_60, %c0_61, %c0_62] : memref<1x32x128xbf16, #tpu.memory_space<vmem>>, vector<1x32x128xbf16>
    %179 = vector.shape_cast %178 : vector<1x32x128xbf16> to vector<32x128xbf16>
    %cst_63 = arith.constant dense<0.000000e+00> : vector<24x128xf32>
    %180 = tpu.matmul %177, %179, %cst_63 {dimension_numbers = #tpu.dot_dimension_numbers<[1], [0], [0], [1], [0, 0, 1, 1], [], []>} : vector<24x32xbf16>, vector<32x128xbf16>, vector<24x128xf32> -> vector<24x128xf32>
    %c0_64 = arith.constant 0 : index
    %c0_65 = arith.constant 0 : index
    %c0_66 = arith.constant 0 : index
    %181 = vector.load %arg10[%c0_64, %c0_65, %c0_66] : memref<1x1x128xf32, #tpu.memory_space<vmem>>, vector<1x1x128xf32>
    %182 = vector.shape_cast %181 : vector<1x1x128xf32> to vector<1x128xf32>
    %183 = vector.broadcast %182 : vector<1x128xf32> to vector<24x128xf32>
    %184 = arith.addf %180, %183 : vector<24x128xf32>
    %cst_67 = arith.constant 5.000000e-01 : f32
    %185 = vector.broadcast %cst_67 : f32 to vector<24x128xf32>
    %186 = arith.mulf %185, %184 : vector<24x128xf32>
    %cst_68 = arith.constant 4.471500e-02 : f32
    %187 = vector.broadcast %cst_68 : f32 to vector<24x128xf32>
    %188 = arith.mulf %187, %184 : vector<24x128xf32>
    %189 = arith.mulf %188, %184 : vector<24x128xf32>
    %190 = arith.mulf %189, %184 : vector<24x128xf32>
    %191 = arith.addf %184, %190 : vector<24x128xf32>
    %cst_69 = arith.constant 0.797884583 : f32
    %192 = vector.broadcast %cst_69 : f32 to vector<24x128xf32>
    %193 = arith.mulf %192, %191 : vector<24x128xf32>
    %194 = math.tanh %193 : vector<24x128xf32>
    %cst_70 = arith.constant 1.000000e+00 : f32
    %195 = vector.broadcast %cst_70 : f32 to vector<24x128xf32>
    %196 = arith.addf %195, %194 : vector<24x128xf32>
    %197 = arith.mulf %186, %196 : vector<24x128xf32>
    %198 = arith.truncf %197 : vector<24x128xf32> to vector<24x128xbf16>
    %c0_71 = arith.constant 0 : index
    %c0_72 = arith.constant 0 : index
    %c0_73 = arith.constant 0 : index
    %199 = vector.load %arg11[%c0_71, %c0_72, %c0_73] : memref<1x128x32xbf16, #tpu.memory_space<vmem>>, vector<1x128x32xbf16>
    %200 = vector.shape_cast %199 : vector<1x128x32xbf16> to vector<128x32xbf16>
    %cst_74 = arith.constant dense<0.000000e+00> : vector<24x32xf32>
    %201 = tpu.matmul %198, %200, %cst_74 {dimension_numbers = #tpu.dot_dimension_numbers<[1], [0], [0], [1], [0, 0, 1, 1], [], []>} : vector<24x128xbf16>, vector<128x32xbf16>, vector<24x32xf32> -> vector<24x32xf32>
    %c0_75 = arith.constant 0 : index
    %c0_76 = arith.constant 0 : index
    %c0_77 = arith.constant 0 : index
    %202 = vector.load %arg12[%c0_75, %c0_76, %c0_77] : memref<1x1x32xf32, #tpu.memory_space<vmem>>, vector<1x1x32xf32>
    %203 = vector.shape_cast %202 : vector<1x1x32xf32> to vector<1x32xf32>
    %204 = vector.broadcast %203 : vector<1x32xf32> to vector<24x32xf32>
    %205 = arith.addf %201, %204 : vector<24x32xf32>
    %206 = vector.broadcast %12 : vector<1x32xf32> to vector<24x32xf32>
    %207 = arith.mulf %206, %205 : vector<24x32xf32>
    %208 = arith.addf %152, %207 : vector<24x32xf32>
    %c0_78 = arith.constant 0 : index
    %c0_79 = arith.constant 0 : index
    %c0_80 = arith.constant 0 : index
    %209 = vector.load %arg13[%c0_78, %c0_79, %c0_80] : memref<1x24x32xf32, #tpu.memory_space<vmem>>, vector<1x24x32xf32>
    %210 = vector.shape_cast %209 : vector<1x24x32xf32> to vector<24x32xf32>
    %211 = vector.shape_cast %208 : vector<24x32xf32> to vector<1x24x32xf32>
    tpu.vector_store %arg13[%c0_78, %c0_79, %c0_80], %211 {strides = array<i32>} : memref<1x24x32xf32, #tpu.memory_space<vmem>>, vector<1x24x32xf32>,
    return
  }
  func.func @transform_0(%arg0: i32, %arg1: i32) -> (i32, i32, i32) {
    %c0_i32 = arith.constant 0 : i32
    %c0_i32_0 = arith.constant 0 : i32
    %c0_i32_1 = arith.constant 0 : i32
    return %arg0, %c0_i32, %c0_i32_0 : i32, i32, i32
  }
  func.func @transform_1(%arg0: i32, %arg1: i32) -> (i32, i32, i32) {
    %c2_i32 = arith.constant 2 : i32
    %0 = arith.muli %arg1, %c2_i32 : i32
    %1 = arith.addi %0, %arg0 : i32
    %c0_i32 = arith.constant 0 : i32
    %c0_i32_0 = arith.constant 0 : i32
    %c0_i32_1 = arith.constant 0 : i32
    return %1, %c0_i32, %c0_i32_0 : i32, i32, i32
  }
  func.func @transform_2(%arg0: i32, %arg1: i32) -> (i32, i32, i32) {
    %c0_i32 = arith.constant 0 : i32
    %c0_i32_0 = arith.constant 0 : i32
    %c0_i32_1 = arith.constant 0 : i32
    return %arg1, %c0_i32, %c0_i32_0 : i32, i32, i32
  }
  func.func @transform_3(%arg0: i32, %arg1: i32) -> (i32, i32, i32) {
    %c0_i32 = arith.constant 0 : i32
    %c0_i32_0 = arith.constant 0 : i32
    %c0_i32_1 = arith.constant 0 : i32
    return %arg1, %c0_i32, %c0_i32_0 : i32, i32, i32
  }
  func.func @transform_4(%arg0: i32, %arg1: i32) -> (i32, i32, i32) {
    %c0_i32 = arith.constant 0 : i32
    %c0_i32_0 = arith.constant 0 : i32
    %c0_i32_1 = arith.constant 0 : i32
    return %arg1, %c0_i32, %c0_i32_0 : i32, i32, i32
  }
  func.func @transform_5(%arg0: i32, %arg1: i32) -> (i32, i32, i32) {
    %c0_i32 = arith.constant 0 : i32
    %c0_i32_0 = arith.constant 0 : i32
    %c0_i32_1 = arith.constant 0 : i32
    return %arg1, %c0_i32, %c0_i32_0 : i32, i32, i32
  }
  func.func @transform_6(%arg0: i32, %arg1: i32) -> (i32, i32, i32) {
    %c0_i32 = arith.constant 0 : i32
    %c0_i32_0 = arith.constant 0 : i32
    %c0_i32_1 = arith.constant 0 : i32
    return %arg1, %c0_i32, %c0_i32_0 : i32, i32, i32
  }
  func.func @transform_7(%arg0: i32, %arg1: i32) -> (i32, i32, i32) {
    %c0_i32 = arith.constant 0 : i32
    %c0_i32_0 = arith.constant 0 : i32
    %c0_i32_1 = arith.constant 0 : i32
    return %arg1, %c0_i32, %c0_i32_0 : i32, i32, i32
  }
  func.func @transform_8(%arg0: i32, %arg1: i32) -> (i32, i32, i32) {
    %c0_i32 = arith.constant 0 : i32
    %c0_i32_0 = arith.constant 0 : i32
    %c0_i32_1 = arith.constant 0 : i32
    return %arg1, %c0_i32, %c0_i32_0 : i32, i32, i32
  }
  func.func @transform_9(%arg0: i32, %arg1: i32) -> (i32, i32, i32) {
    %c0_i32 = arith.constant 0 : i32
    %c0_i32_0 = arith.constant 0 : i32
    %c0_i32_1 = arith.constant 0 : i32
    return %arg1, %c0_i32, %c0_i32_0 : i32, i32, i32
  }
  func.func @transform_10(%arg0: i32, %arg1: i32) -> (i32, i32, i32) {
    %c0_i32 = arith.constant 0 : i32
    %c0_i32_0 = arith.constant 0 : i32
    %c0_i32_1 = arith.constant 0 : i32
    return %arg1, %c0_i32, %c0_i32_0 : i32, i32, i32
  }
  func.func @transform_11(%arg0: i32, %arg1: i32) -> (i32, i32, i32) {
    %c0_i32 = arith.constant 0 : i32
    %c0_i32_0 = arith.constant 0 : i32
    %c0_i32_1 = arith.constant 0 : i32
    return %arg0, %c0_i32, %c0_i32_0 : i32, i32, i32
  }
}

module attributes {stable_mosaic.version = 11 : i64} {
  func.func @kernel(%arg0: i32, %arg1: memref<8x32xf32, #tpu.memory_space<vmem>>, %arg2: memref<32x32xbf16, #tpu.memory_space<vmem>>, %arg3: memref<1x32xf32, #tpu.memory_space<vmem>>, %arg4: memref<32x128xbf16, #tpu.memory_space<vmem>>, %arg5: memref<1x128xf32, #tpu.memory_space<vmem>>, %arg6: memref<1x32xf32, #tpu.memory_space<vmem>>, %arg7: memref<1x32xf32, #tpu.memory_space<vmem>>, %arg8: memref<8x128xf32, #tpu.memory_space<vmem>>) attributes {dimension_semantics = [#tpu.dimension_semantics<parallel>], iteration_bounds = array<i64: 2>, scalar_prefetch = 0 : i64, scratch_operands = 0 : i64, tpu.core_type = #tpu.core_type<tc>, window_params = [{transform_indices = @transform_0, window_bounds = array<i64: 8, 32>}, {pipeline_mode = #tpu.pipeline_mode<synchronous>, transform_indices = @transform_1, window_bounds = array<i64: 32, 32>}, {pipeline_mode = #tpu.pipeline_mode<synchronous>, transform_indices = @transform_2, window_bounds = array<i64: 1, 32>}, {pipeline_mode = #tpu.pipeline_mode<synchronous>, transform_indices = @transform_3, window_bounds = array<i64: 32, 128>}, {pipeline_mode = #tpu.pipeline_mode<synchronous>, transform_indices = @transform_4, window_bounds = array<i64: 1, 128>}, {pipeline_mode = #tpu.pipeline_mode<synchronous>, transform_indices = @transform_5, window_bounds = array<i64: 1, 32>}, {pipeline_mode = #tpu.pipeline_mode<synchronous>, transform_indices = @transform_6, window_bounds = array<i64: 1, 32>}, {transform_indices = @transform_7, window_bounds = array<i64: 8, 128>}]} {
    %c0 = arith.constant 0 : index
    %c0_0 = arith.constant 0 : index
    %0 = vector.load %arg1[%c0, %c0_0] : memref<8x32xf32, #tpu.memory_space<vmem>>, vector<8x32xf32>
    %cst = arith.constant dense<0.000000e+00> : vector<8xf32>
    %1 = vector.multi_reduction <add>, %0, %cst [1] : vector<8x32xf32> to vector<8xf32>
    %2 = vector.shape_cast %1 : vector<8xf32> to vector<8x1xf32>
    %cst_1 = arith.constant 3.200000e+01 : f32
    %3 = vector.broadcast %cst_1 : f32 to vector<8x1xf32>
    %4 = arith.divf %2, %3 : vector<8x1xf32>
    %5 = vector.broadcast %4 : vector<8x1xf32> to vector<8x32xf32>
    %6 = arith.subf %0, %5 : vector<8x32xf32>
    %7 = arith.mulf %6, %6 : vector<8x32xf32>
    %cst_2 = arith.constant dense<0.000000e+00> : vector<8xf32>
    %8 = vector.multi_reduction <add>, %7, %cst_2 [1] : vector<8x32xf32> to vector<8xf32>
    %9 = vector.shape_cast %8 : vector<8xf32> to vector<8x1xf32>
    %cst_3 = arith.constant 3.200000e+01 : f32
    %10 = vector.broadcast %cst_3 : f32 to vector<8x1xf32>
    %11 = arith.divf %9, %10 : vector<8x1xf32>
    %12 = vector.broadcast %4 : vector<8x1xf32> to vector<8x32xf32>
    %13 = arith.subf %0, %12 : vector<8x32xf32>
    %cst_4 = arith.constant 9.99999974E-6 : f32
    %14 = vector.broadcast %cst_4 : f32 to vector<8x1xf32>
    %15 = arith.addf %11, %14 : vector<8x1xf32>
    %16 = math.rsqrt %15 : vector<8x1xf32>
    %17 = vector.broadcast %16 : vector<8x1xf32> to vector<8x32xf32>
    %18 = arith.mulf %13, %17 : vector<8x32xf32>
    %c0_5 = arith.constant 0 : index
    %c0_6 = arith.constant 0 : index
    %19 = vector.load %arg6[%c0_5, %c0_6] : memref<1x32xf32, #tpu.memory_space<vmem>>, vector<1x32xf32>
    %20 = vector.broadcast %19 : vector<1x32xf32> to vector<8x32xf32>
    %21 = arith.mulf %18, %20 : vector<8x32xf32>
    %c0_7 = arith.constant 0 : index
    %c0_8 = arith.constant 0 : index
    %22 = vector.load %arg7[%c0_7, %c0_8] : memref<1x32xf32, #tpu.memory_space<vmem>>, vector<1x32xf32>
    %23 = vector.broadcast %22 : vector<1x32xf32> to vector<8x32xf32>
    %24 = arith.addf %21, %23 : vector<8x32xf32>
    %25 = arith.truncf %24 : vector<8x32xf32> to vector<8x32xbf16>
    %c0_9 = arith.constant 0 : index
    %c0_10 = arith.constant 0 : index
    %26 = vector.load %arg2[%c0_9, %c0_10] : memref<32x32xbf16, #tpu.memory_space<vmem>>, vector<32x32xbf16>
    %cst_11 = arith.constant dense<0.000000e+00> : vector<8x32xf32>
    %27 = tpu.matmul %25, %26, %cst_11 {dimension_numbers = #tpu.dot_dimension_numbers<[1], [0], [0], [1], [0, 0, 1, 1], [], []>} : vector<8x32xbf16>, vector<32x32xbf16>, vector<8x32xf32> -> vector<8x32xf32>
    %c0_12 = arith.constant 0 : index
    %c0_13 = arith.constant 0 : index
    %28 = vector.load %arg3[%c0_12, %c0_13] : memref<1x32xf32, #tpu.memory_space<vmem>>, vector<1x32xf32>
    %29 = vector.broadcast %28 : vector<1x32xf32> to vector<8x32xf32>
    %30 = arith.addf %27, %29 : vector<8x32xf32>
    %cst_14 = arith.constant 5.000000e-01 : f32
    %31 = vector.broadcast %cst_14 : f32 to vector<8x32xf32>
    %32 = arith.mulf %31, %30 : vector<8x32xf32>
    %cst_15 = arith.constant 4.471500e-02 : f32
    %33 = vector.broadcast %cst_15 : f32 to vector<8x32xf32>
    %34 = arith.mulf %33, %30 : vector<8x32xf32>
    %35 = arith.mulf %34, %30 : vector<8x32xf32>
    %36 = arith.mulf %35, %30 : vector<8x32xf32>
    %37 = arith.addf %30, %36 : vector<8x32xf32>
    %cst_16 = arith.constant 0.797884583 : f32
    %38 = vector.broadcast %cst_16 : f32 to vector<8x32xf32>
    %39 = arith.mulf %38, %37 : vector<8x32xf32>
    %40 = math.tanh %39 : vector<8x32xf32>
    %cst_17 = arith.constant 1.000000e+00 : f32
    %41 = vector.broadcast %cst_17 : f32 to vector<8x32xf32>
    %42 = arith.addf %41, %40 : vector<8x32xf32>
    %43 = arith.mulf %32, %42 : vector<8x32xf32>
    %44 = arith.truncf %43 : vector<8x32xf32> to vector<8x32xbf16>
    %c0_18 = arith.constant 0 : index
    %c0_19 = arith.constant 0 : index
    %45 = vector.load %arg4[%c0_18, %c0_19] : memref<32x128xbf16, #tpu.memory_space<vmem>>, vector<32x128xbf16>
    %cst_20 = arith.constant dense<0.000000e+00> : vector<8x128xf32>
    %46 = tpu.matmul %44, %45, %cst_20 {dimension_numbers = #tpu.dot_dimension_numbers<[1], [0], [0], [1], [0, 0, 1, 1], [], []>} : vector<8x32xbf16>, vector<32x128xbf16>, vector<8x128xf32> -> vector<8x128xf32>
    %c0_21 = arith.constant 0 : index
    %c0_22 = arith.constant 0 : index
    %47 = vector.load %arg5[%c0_21, %c0_22] : memref<1x128xf32, #tpu.memory_space<vmem>>, vector<1x128xf32>
    %48 = vector.broadcast %47 : vector<1x128xf32> to vector<8x128xf32>
    %49 = arith.addf %46, %48 : vector<8x128xf32>
    %c0_23 = arith.constant 0 : index
    %c0_24 = arith.constant 0 : index
    %50 = vector.load %arg8[%c0_23, %c0_24] : memref<8x128xf32, #tpu.memory_space<vmem>>, vector<8x128xf32>
    tpu.vector_store %arg8[%c0_23, %c0_24], %49 {strides = array<i32>} : memref<8x128xf32, #tpu.memory_space<vmem>>, vector<8x128xf32>,
    return
  }
  func.func @transform_0(%arg0: i32) -> (i32, i32) {
    %c0_i32 = arith.constant 0 : i32
    %c0_i32_0 = arith.constant 0 : i32
    return %arg0, %c0_i32 : i32, i32
  }
  func.func @transform_1(%arg0: i32) -> (i32, i32) {
    %c0_i32 = arith.constant 0 : i32
    %c0_i32_0 = arith.constant 0 : i32
    %c0_i32_1 = arith.constant 0 : i32
    return %c0_i32, %c0_i32_0 : i32, i32
  }
  func.func @transform_2(%arg0: i32) -> (i32, i32) {
    %c0_i32 = arith.constant 0 : i32
    %c0_i32_0 = arith.constant 0 : i32
    %c0_i32_1 = arith.constant 0 : i32
    return %c0_i32, %c0_i32_0 : i32, i32
  }
  func.func @transform_3(%arg0: i32) -> (i32, i32) {
    %c0_i32 = arith.constant 0 : i32
    %c0_i32_0 = arith.constant 0 : i32
    %c0_i32_1 = arith.constant 0 : i32
    return %c0_i32, %c0_i32_0 : i32, i32
  }
  func.func @transform_4(%arg0: i32) -> (i32, i32) {
    %c0_i32 = arith.constant 0 : i32
    %c0_i32_0 = arith.constant 0 : i32
    %c0_i32_1 = arith.constant 0 : i32
    return %c0_i32, %c0_i32_0 : i32, i32
  }
  func.func @transform_5(%arg0: i32) -> (i32, i32) {
    %c0_i32 = arith.constant 0 : i32
    %c0_i32_0 = arith.constant 0 : i32
    %c0_i32_1 = arith.constant 0 : i32
    return %c0_i32, %c0_i32_0 : i32, i32
  }
  func.func @transform_6(%arg0: i32) -> (i32, i32) {
    %c0_i32 = arith.constant 0 : i32
    %c0_i32_0 = arith.constant 0 : i32
    %c0_i32_1 = arith.constant 0 : i32
    return %c0_i32, %c0_i32_0 : i32, i32
  }
  func.func @transform_7(%arg0: i32) -> (i32, i32) {
    %c0_i32 = arith.constant 0 : i32
    %c0_i32_0 = arith.constant 0 : i32
    return %arg0, %c0_i32 : i32, i32
  }
}

</mosaic_0001>

<llo_original>
// kernel: adaln_pint_forward.7
$region0: #{adaln_pint_forward.7}
  #allocation0 [shape = 'u32[]', space=smem, size = 0x4, offset = 0x4, fixed_abs, tag = 'smem constant byte address 0x4 - core index']
  #allocation1 [shape = 'u32[144,128]{1,0:T(1,128)}', space=vmem, size = 0x12000, scoped, tag = 'internal scratch']
  %s0 = inlined_call_operand.vmem [shape: bf16[32,2], index: 0, kind: input, shape index: {}]
  %s1 = inlined_call_operand.vmem [shape: bf16[2,32], index: 1, kind: input, shape index: {}]
  %s2 = inlined_call_operand.vmem [shape: f32[1,32], index: 2, kind: input, shape index: {}]
  %s3 = inlined_call_operand.vmem [shape: bf16[32,32], index: 3, kind: input, shape index: {}]
  %s4 = inlined_call_operand.vmem [shape: f32[1,32], index: 4, kind: input, shape index: {}]
  %s5 = inlined_call_operand.vmem [shape: f32[1,32], index: 5, kind: input, shape index: {}]
  %s6 = inlined_call_operand.vmem [shape: f32[32,32], index: 6, kind: output, shape index: {}]
  %s7 = sld [smem:[#allocation0]]
  $region57: #{adaln_pint_forward.7} parent=0
    _
  %s9 = ssub.s32 1, %s7
  %s10 = scalar_select 0, %s9, %s7
  loop: start=0, step=1, limit=4
  $region2: #{adaln_pint_forward.7} parent=0 // loop_pre_header
    _
  $region3: #{adaln_pint_forward.7} parent=0 // loop_header
    %s12 = sphi 0, %s16
    %p13 = scmp.ge.s32.totalorder %s12, 4
    %s22 = sphi 0, %s24
    %s25 = sphi 0, %s22
    %s26 = sphi 0, %s25
    %s42 = sphi 0, %s26
    %s46 = sphi 0, %s46
    %s48 = sphi 0, %s46
    %s49 = sphi 0, %s48
    %s63 = sphi 0, %s49
    %s67 = sphi 0, %s67
    %s69 = sphi 0, %s67
    %s70 = sphi 0, %s69
    %s84 = sphi 0, %s70
    %s88 = sphi 0, %s88
    %s90 = sphi 0, %s88
    %s91 = sphi 0, %s90
    %s105 = sphi 0, %s91
    %s109 = sphi 0, %s109
    %s111 = sphi 0, %s109
    %s112 = sphi 0, %s111
    %s126 = sphi 0, %s112
    %s130 = sphi 0, %s130
    %s132 = sphi 0, %s130
    %s133 = sphi 0, %s132
    %s147 = sphi 0, %s133
    %s153 = sphi 0, %s155
    %s156 = sphi 0, %s153
    %s157 = sphi 0, %s156
    %s173 = sphi 0, %s157
  $region4: #{adaln_pint_forward.7} parent=0 // loop_header_branch
    %15 = sbr.rel (%p13) target = $region8
  $region5: #{adaln_pint_forward.7} parent=0 // loop_body
    %s17 = ssub.s32 %s12, 1
    %s18 = ssub.s32 %s12, 2
    %s19 = sadd.s32 %s12, 1
    %s20 = ssub.s32 %s12, %s19
    %p21 = scmp.eq.s32.totalorder %s20, 0
    %s23 = sadd.s32 %s22, 1
    %s24 = scalar_select %p21, %s22, %s23
    %p27 = pneg %p21
    %p28 = scmp.eq.s32.totalorder %s12, 1
    %p29 = por %p27, %p28
    %p30 = scmp.ne.s32.totalorder %s22, %s25
    %p31 = scmp.eq.s32.totalorder %s12, 0
    %p32 = por %p30, %p31
    %p33 = scmp.ne.s32.totalorder %s22, %s25
    %p34 = scmp.eq.s32.totalorder %s17, 1
    %p35 = por %p33, %p34
    %p36 = scmp.ne.s32.totalorder %s25, %s26
    %p37 = scmp.eq.s32.totalorder %s17, 0
    %p38 = por %p36, %p37
    %p39 = scmp.ne.s32.totalorder %s25, %s26
    %p40 = scmp.eq.s32.totalorder %s18, 1
    %p41 = por %p39, %p40
    %p43 = scmp.ne.s32.totalorder %s26, %s42
    %p44 = scmp.eq.s32.totalorder %s18, 0
    %p45 = por %p43, %p44
    %s47 = sadd.s32 %s46, 1
    %p50 = scmp.eq.s32.totalorder %s12, 1
    %p51 = scmp.ne.s32.totalorder %s46, %s48
    %p52 = scmp.eq.s32.totalorder %s12, 0
    %p53 = por %p51, %p52
    %p54 = scmp.ne.s32.totalorder %s46, %s48
    %p55 = scmp.eq.s32.totalorder %s17, 1
    %p56 = por %p54, %p55
    %p57 = scmp.ne.s32.totalorder %s48, %s49
    %p58 = scmp.eq.s32.totalorder %s17, 0
    %p59 = por %p57, %p58
    %p60 = scmp.ne.s32.totalorder %s48, %s49
    %p61 = scmp.eq.s32.totalorder %s18, 1
    %p62 = por %p60, %p61
    %p64 = scmp.ne.s32.totalorder %s49, %s63
    %p65 = scmp.eq.s32.totalorder %s18, 0
    %p66 = por %p64, %p65
    %s68 = sadd.s32 %s67, 1
    %p71 = scmp.eq.s32.totalorder %s12, 1
    %p72 = scmp.ne.s32.totalorder %s67, %s69
    %p73 = scmp.eq.s32.totalorder %s12, 0
    %p74 = por %p72, %p73
    %p75 = scmp.ne.s32.totalorder %s67, %s69
    %p76 = scmp.eq.s32.totalorder %s17, 1
    %p77 = por %p75, %p76
    %p78 = scmp.ne.s32.totalorder %s69, %s70
    %p79 = scmp.eq.s32.totalorder %s17, 0
    %p80 = por %p78, %p79
    %p81 = scmp.ne.s32.totalorder %s69, %s70
    %p82 = scmp.eq.s32.totalorder %s18, 1
    %p83 = por %p81, %p82
    %p85 = scmp.ne.s32.totalorder %s70, %s84
    %p86 = scmp.eq.s32.totalorder %s18, 0
    %p87 = por %p85, %p86
    %s89 = sadd.s32 %s88, 1
    %p92 = scmp.eq.s32.totalorder %s12, 1
    %p93 = scmp.ne.s32.totalorder %s88, %s90
    %p94 = scmp.eq.s32.totalorder %s12, 0
    %p95 = por %p93, %p94
    %p96 = scmp.ne.s32.totalorder %s88, %s90
    %p97 = scmp.eq.s32.totalorder %s17, 1
    %p98 = por %p96, %p97
    %p99 = scmp.ne.s32.totalorder %s90, %s91
    %p100 = scmp.eq.s32.totalorder %s17, 0
    %p101 = por %p99, %p100
    %p102 = scmp.ne.s32.totalorder %s90, %s91
    %p103 = scmp.eq.s32.totalorder %s18, 1
    %p104 = por %p102, %p103
    %p106 = scmp.ne.s32.totalorder %s91, %s105
    %p107 = scmp.eq.s32.totalorder %s18, 0
    %p108 = por %p106, %p107
    %s110 = sadd.s32 %s109, 1
    %p113 = scmp.eq.s32.totalorder %s12, 1
    %p114 = scmp.ne.s32.totalorder %s109, %s111
    %p115 = scmp.eq.s32.totalorder %s12, 0
    %p116 = por %p114, %p115
    %p117 = scmp.ne.s32.totalorder %s109, %s111
    %p118 = scmp.eq.s32.totalorder %s17, 1
    %p119 = por %p117, %p118
    %p120 = scmp.ne.s32.totalorder %s111, %s112
    %p121 = scmp.eq.s32.totalorder %s17, 0
    %p122 = por %p120, %p121
    %p123 = scmp.ne.s32.totalorder %s111, %s112
    %p124 = scmp.eq.s32.totalorder %s18, 1
    %p125 = por %p123, %p124
    %p127 = scmp.ne.s32.totalorder %s112, %s126
    %p128 = scmp.eq.s32.totalorder %s18, 0
    %p129 = por %p127, %p128
    %s131 = sadd.s32 %s130, 1
    %p134 = scmp.eq.s32.totalorder %s12, 1
    %p135 = scmp.ne.s32.totalorder %s130, %s132
    %p136 = scmp.eq.s32.totalorder %s12, 0
    %p137 = por %p135, %p136
    %p138 = scmp.ne.s32.totalorder %s130, %s132
    %p139 = scmp.eq.s32.totalorder %s17, 1
    %p140 = por %p138, %p139
    %p141 = scmp.ne.s32.totalorder %s132, %s133
    %p142 = scmp.eq.s32.totalorder %s17, 0
    %p143 = por %p141, %p142
    %p144 = scmp.ne.s32.totalorder %s132, %s133
    %p145 = scmp.eq.s32.totalorder %s18, 1
    %p146 = por %p144, %p145
    %p148 = scmp.ne.s32.totalorder %s133, %s147
    %p149 = scmp.eq.s32.totalorder %s18, 0
    %p150 = por %p148, %p149
    %s151 = ssub.s32 %s12, %s19
    %p152 = scmp.eq.s32.totalorder %s151, 0
    %s154 = sadd.s32 %s153, 1
    %s155 = scalar_select %p152, %s153, %s154
    %p158 = pneg %p152
    %p159 = scmp.eq.s32.totalorder %s12, 1
    %p160 = por %p158, %p159
    %p161 = scmp.ne.s32.totalorder %s153, %s156
    %p162 = scmp.eq.s32.totalorder %s12, 0
    %p163 = por %p161, %p162
    %p164 = scmp.ne.s32.totalorder %s153, %s156
    %p165 = scmp.eq.s32.totalorder %s17, 1
    %p166 = por %p164, %p165
    %p167 = scmp.ne.s32.totalorder %s156, %s157
    %p168 = scmp.eq.s32.totalorder %s17, 0
    %p169 = por %p167, %p168
    %p170 = scmp.ne.s32.totalorder %s156, %s157
    %p171 = scmp.eq.s32.totalorder %s18, 1
    %p172 = por %p170, %p171
    %p174 = scmp.ne.s32.totalorder %s157, %s173
    %p175 = scmp.eq.s32.totalorder %s18, 0
    %p176 = por %p174, %p175
    %p177 = scmp.le.s32.totalorder 1, %s12
    %p178 = scmp.lt.s32.totalorder %s12, 3
    %p179 = pnand %p177, %p178
    %p180 = pneg %p179
    // Predicated region
    $region9: #{adaln_pint_forward.7} parent=5 // pred_check
      _
    $region10: #{adaln_pint_forward.7} parent=5 // pred_check_branch
      %182 = sbr.rel (%p179) target = $region12
    $region11: #{adaln_pint_forward.7} parent=5 // pred_region
      %s183 = ssub.s32 %s12, 1
      // Predicated region
      $region13: #{adaln_pint_forward.7} parent=11 // pred_check
        %p184 = pneg %p59
      $region14: #{adaln_pint_forward.7} parent=11 // pred_check_branch
        %186 = sbr.rel (%p184) target = $region16
      $region15: #{adaln_pint_forward.7} parent=11 // pred_region
        _
      $region16: #{adaln_pint_forward.7} parent=11 // pred_fallthru
        _
      // Predicated region
      $region17: #{adaln_pint_forward.7} parent=11 // pred_check
        %p187 = pneg %p80
      $region18: #{adaln_pint_forward.7} parent=11 // pred_check_branch
        %189 = sbr.rel (%p187) target = $region20
      $region19: #{adaln_pint_forward.7} parent=11 // pred_region
        _
      $region20: #{adaln_pint_forward.7} parent=11 // pred_fallthru
        _
      // Predicated region
      $region21: #{adaln_pint_forward.7} parent=11 // pred_check
        %p190 = pneg %p101
      $region22: #{adaln_pint_forward.7} parent=11 // pred_check_branch
        %192 = sbr.rel (%p190) target = $region24
      $region23: #{adaln_pint_forward.7} parent=11 // pred_region
        _
      $region24: #{adaln_pint_forward.7} parent=11 // pred_fallthru
        _
      // Predicated region
      $region25: #{adaln_pint_forward.7} parent=11 // pred_check
        %p193 = pneg %p122
      $region26: #{adaln_pint_forward.7} parent=11 // pred_check_branch
        %195 = sbr.rel (%p193) target = $region28
      $region27: #{adaln_pint_forward.7} parent=11 // pred_region
        _
      $region28: #{adaln_pint_forward.7} parent=11 // pred_fallthru
        _
      // Predicated region
      $region29: #{adaln_pint_forward.7} parent=11 // pred_check
        %p196 = pneg %p143
      $region30: #{adaln_pint_forward.7} parent=11 // pred_check_branch
        %198 = sbr.rel (%p196) target = $region32
      $region31: #{adaln_pint_forward.7} parent=11 // pred_region
        _
      $region32: #{adaln_pint_forward.7} parent=11 // pred_fallthru
        _
    $region12: #{adaln_pint_forward.7} parent=5 // pred_fallthru
      _
    %p199 = scmp.lt.s32.totalorder %s12, 2
    // Predicated region
    $region33: #{adaln_pint_forward.7} parent=5 // pred_check
      %p200 = pneg %p199
    $region34: #{adaln_pint_forward.7} parent=5 // pred_check_branch
      %202 = sbr.rel (%p200) target = $region36
    $region35: #{adaln_pint_forward.7} parent=5 // pred_region
      // Predicated region
      $region37: #{adaln_pint_forward.7} parent=35 // pred_check
        %p203 = pneg %p32
      $region38: #{adaln_pint_forward.7} parent=35 // pred_check_branch
        %205 = sbr.rel (%p203) target = $region40
      $region39: #{adaln_pint_forward.7} parent=35 // pred_region
        %s206 = smul.u32 2, %s12
        %p207 = scmp.lt.s32.totalorder %s206, 3
        %s208 = scalar_select %p207, %s206, 3
        %s209 = smul.addr %s208, 4
        %s210 = scalar_lea.vmem %s0, %s209
        %s211 = smul.u32 2, %s12
      $region40: #{adaln_pint_forward.7} parent=35 // pred_fallthru
        _
    $region36: #{adaln_pint_forward.7} parent=5 // pred_fallthru
      _
    %p212 = scmp.le.s32.totalorder 1, %s12
    %p213 = scmp.lt.s32.totalorder %s12, 3
    %p214 = pnand %p212, %p213
    %p215 = pneg %p214
    // Predicated region
    $region41: #{adaln_pint_forward.7} parent=5 // pred_check
      _
    $region42: #{adaln_pint_forward.7} parent=5 // pred_check_branch
      %217 = sbr.rel (%p214) target = $region44
    $region43: #{adaln_pint_forward.7} parent=5 // pred_region
      %s218 = ssub.s32 %s12, 1
      %s219 = smul.u32 2, %s17
      %p220 = scmp.lt.s32.totalorder %s219, 3
      %s221 = scalar_select %p220, %s219, 3
      %s222 = smul.addr %s221, 4
      %s223 = scalar_lea.vmem %s0, %s222
      %p224 = pneg %p38
      %p225 = pneg %p35
      %p226 = pneg %p59
      %p227 = pneg %p56
      %p228 = pneg %p80
      %p229 = pneg %p77
      %p230 = pneg %p101
      %p231 = pneg %p98
      %p232 = pneg %p122
      %p233 = pneg %p119
      %p234 = pneg %p143
      %p235 = pneg %p140
      %p236 = pneg %p169
      %p237 = pneg %p166
      %s238 = smul.u32 2, %s17
      %p239 = scmp.lt.s32.totalorder %s238, 3
      %s240 = scalar_select %p239, %s238, 3
      %s241 = smul.addr %s240, 8
      %s242 = scalar_lea.vmem %s6, %s241
      %s243 = smul.u32 2, %s17
      %p244 = scmp.lt.s32.totalorder %s243, 3
      %s245 = scalar_select %p244, %s243, 3
      %s246 = smul.addr %s245, 4
      %s247 = scalar_lea.vmem %s0, %s246
      %s248 = smul.u32 2, %s17
      %s249 = smul.u32 2, %s17
      %p250 = scmp.lt.s32.totalorder %s249, 3
      %s251 = scalar_select %p250, %s249, 3
      %s252 = smul.addr %s251, 8
      %s253 = scalar_lea.vmem %s6, %s252
      %s254 = smul.u32 2, %s17
      %v256 = vld [vmem:[%s247] sm:$0xf]
      %v257 = vld [vmem:[%s247 + $0x4] sm:$0xf]
      %v258 = vld [vmem:[%s1] sm:$0x1]
      %v259 = vld [vmem:[%s2] sm:$0x1]
      %v261 = vlaneseq
      %v262 = vshrl.u32 %v261, 7
      %v263 = vsub.s32 0, %v262
      %v264 = vrot.slane %v259, %v263
      %v268 = vunpack.c.l.b16 %v256
      %v269 = vunpack.c.l.b16 %v257
      %v270 = vpack.c.b16 %v269, %v268
      %vm271 = vcmask 15360
      %v273 = vsel %vm271, %v270, 0
      %vm275 = vcmask 1040384
      %v277 = vsel %vm275, %v258, 0
      %279 = vmatprep.subr.bf16.mxu0 0
      %280 = vmatpush1.bf16.msra.mxu0 %v277
      %281 = vmatprep.subr.bf16.mxu0 0
      %282 = vmatpush1.bf16.msra.mxu0 0
      %283 = vmatprep.subr.bf16.mxu0 0
      %284 = vmatpush1.bf16.msra.mxu0 0
      %285 = vmatprep.subr.bf16.mxu0 0
      %286 = vmatpush1.bf16.msra.mxu0 0
      %287 = vmatprep.subr.bf16.mxu0 0
      %288 = vmatpush1.bf16.msra.mxu0 0
      %289 = vmatprep.subr.bf16.mxu0 0
      %290 = vmatpush1.bf16.msra.mxu0 0
      %291 = vmatprep.subr.bf16.mxu0 0
      %292 = vmatpush1.bf16.msra.mxu0 0
      %293 = vmatprep.subr.bf16.mxu0 0
      %294 = vmatpush1.bf16.msra.mxu0 0
      %295 = vmatprep.subr.bf16.mxu0 0
      %296 = vmatpush1.bf16.msra.mxu0 0
      %297 = vmatprep.subr.bf16.mxu0 0
      %298 = vmatpush1.bf16.msra.mxu0 0
      %299 = vmatprep.subr.bf16.mxu0 0
      %300 = vmatpush1.bf16.msra.mxu0 0
      %301 = vmatprep.subr.bf16.mxu0 0
      %302 = vmatpush1.bf16.msra.mxu0 0
      %303 = vmatprep.subr.bf16.mxu0 0
      %304 = vmatpush1.bf16.msra.mxu0 0
      %305 = vmatprep.subr.bf16.mxu0 0
      %306 = vmatpush1.bf16.msra.mxu0 0
      %307 = vmatprep.subr.bf16.mxu0 0
      %308 = vmatpush1.bf16.msra.mxu0 0
      %309 = vmatprep.subr.bf16.mxu0 0
      %310 = vmatpush1.bf16.msra.mxu0 0
      %311 = vmatprep.mubr.bf16.mxu0 0
      %312 = vmatmul.mubr.bf16.gmra.mrb[0].mxu0 %v273
      %v313 = vpop.f32.mrb[0].mxu0
      %v314 = vadd.f32 %v264, %v313
      %v315 = vpop.f32.mrb[0].mxu0
      %v316 = vpop.f32.mrb[0].mxu0
      %v317 = vadd.f32 %v264, %v316
      %v318 = vpop.f32.mrb[0].mxu0
      %319 = vdwg.mxu0
      %v320 = vmul.f32 %v314, 0.5
      %v321 = vmul.f32 %v317, 0.5
      %v322 = vmul.f32 %v314, 0.044715
      %v323 = vmul.f32 %v317, 0.044715
      %v324 = vmul.f32 %v322, %v314
      %v325 = vmul.f32 %v323, %v317
      %v326 = vmul.f32 %v324, %v314
      %v327 = vmul.f32 %v325, %v317
      %v328 = vadd.f32 %v314, %v326
      %v329 = vadd.f32 %v317, %v327
      %v330 = vmul.f32 %v328, 0.7978846
      %v331 = vmul.f32 %v329, 0.7978846
      %v332 = vtanh.pop %v330
      %v333 = vtanh.pop %v331
      %v334 = vadd.f32 %v332, 1.0
      %v335 = vadd.f32 %v333, 1.0
      %v336 = vmul.f32 %v320, %v334
      %v337 = vmul.f32 %v321, %v335
      %v338 = vpack.c.bf16 %v337, %v336
      %v339 = vld [vmem:[%s3] sm:$0xf]
      %v340 = vld [vmem:[%s3 + $0x4] sm:$0xf]
      %v341 = vld [vmem:[%s3 + $0x8] sm:$0xf]
      %v342 = vld [vmem:[%s3 + $0xc] sm:$0xf]
      %v343 = vld [vmem:[%s4] sm:$0x1]
      %v345 = vlaneseq
      %v346 = vshrl.u32 %v345, 7
      %v347 = vsub.s32 0, %v346
      %v348 = vrot.slane %v343, %v347
      %v354 = vunpack.c.l.b16 %v339
      %v355 = vunpack.c.l.b16 %v340
      %v356 = vunpack.c.l.b16 %v341
      %v357 = vunpack.c.l.b16 %v342
      %v358 = vpack.c.b16 %v355, %v354
      %v359 = vpack.c.b16 %v357, %v356
      %vm362 = vcmask 261120
      %v364 = vsel %vm362, %v338, 0
      %366 = vmatprep.subr.bf16.mxu0 0
      %367 = vmatpush1.bf16.msra.mxu0 %v358
      %368 = vmatprep.subr.bf16.mxu0 0
      %369 = vmatpush1.bf16.msra.mxu0 %v359
      %370 = vmatprep.subr.bf16.mxu0 0
      %371 = vmatpush1.bf16.msra.mxu0 0
      %372 = vmatprep.subr.bf16.mxu0 0
      %373 = vmatpush1.bf16.msra.mxu0 0
      %374 = vmatprep.subr.bf16.mxu0 0
      %375 = vmatpush1.bf16.msra.mxu0 0
      %376 = vmatprep.subr.bf16.mxu0 0
      %377 = vmatpush1.bf16.msra.mxu0 0
      %378 = vmatprep.subr.bf16.mxu0 0
      %379 = vmatpush1.bf16.msra.mxu0 0
      %380 = vmatprep.subr.bf16.mxu0 0
      %381 = vmatpush1.bf16.msra.mxu0 0
      %382 = vmatprep.subr.bf16.mxu0 0
      %383 = vmatpush1.bf16.msra.mxu0 0
      %384 = vmatprep.subr.bf16.mxu0 0
      %385 = vmatpush1.bf16.msra.mxu0 0
      %386 = vmatprep.subr.bf16.mxu0 0
      %387 = vmatpush1.bf16.msra.mxu0 0
      %388 = vmatprep.subr.bf16.mxu0 0
      %389 = vmatpush1.bf16.msra.mxu0 0
      %390 = vmatprep.subr.bf16.mxu0 0
      %391 = vmatpush1.bf16.msra.mxu0 0
      %392 = vmatprep.subr.bf16.mxu0 0
      %393 = vmatpush1.bf16.msra.mxu0 0
      %394 = vmatprep.subr.bf16.mxu0 0
      %395 = vmatpush1.bf16.msra.mxu0 0
      %396 = vmatprep.subr.bf16.mxu0 0
      %397 = vmatpush1.bf16.msra.mxu0 0
      %398 = vmatprep.mubr.bf16.mxu0 0
      %399 = vmatmul.mubr.bf16.gmra.mrb[0].mxu0 %v364
      %v400 = vpop.f32.mrb[0].mxu0
      %v401 = vadd.f32 %v348, %v400
      %v402 = vpop.f32.mrb[0].mxu0
      %v403 = vpop.f32.mrb[0].mxu0
      %v404 = vadd.f32 %v348, %v403
      %v405 = vpop.f32.mrb[0].mxu0
      %406 = vdwg.mxu0
      %v407 = vld [vmem:[%s5] sm:$0x1]
      %v409 = vlaneseq
      %v410 = vshrl.u32 %v409, 7
      %v411 = vsub.s32 0, %v410
      %v412 = vrot.slane %v407, %v411
      %v414 = vadd.f32 %v401, %v412
      %v415 = vadd.f32 %v404, %v412
      %416 = vst.msk [vmem:[%s253] sm:$0xff] %vm362, %v414
      %417 = vst.msk [vmem:[%s253 + $0x8] sm:$0xff] %vm362, %v415
      %s418 = smul.u32 2, %s17
      %p419 = scmp.lt.s32.totalorder %s418, 3
      %s420 = scalar_select %p419, %s418, 3
      %s421 = smul.addr %s420, 8
      %s422 = scalar_lea.vmem %s6, %s421
      // Predicated region
      $region45: #{adaln_pint_forward.7} parent=43 // pred_check
        %p423 = pneg %p166
      $region46: #{adaln_pint_forward.7} parent=43 // pred_check_branch
        %425 = sbr.rel (%p423) target = $region48
      $region47: #{adaln_pint_forward.7} parent=43 // pred_region
        %s426 = smul.u32 2, %s17
      $region48: #{adaln_pint_forward.7} parent=43 // pred_fallthru
        _
    $region44: #{adaln_pint_forward.7} parent=5 // pred_fallthru
      _
    %p427 = scmp.le.s32.totalorder 2, %s12
    // Predicated region
    $region49: #{adaln_pint_forward.7} parent=5 // pred_check
      %p428 = pneg %p427
    $region50: #{adaln_pint_forward.7} parent=5 // pred_check_branch
      %430 = sbr.rel (%p428) target = $region52
    $region51: #{adaln_pint_forward.7} parent=5 // pred_region
      %s431 = ssub.s32 %s12, 2
      // Predicated region
      $region53: #{adaln_pint_forward.7} parent=51 // pred_check
        %p432 = pneg %p172
      $region54: #{adaln_pint_forward.7} parent=51 // pred_check_branch
        %434 = sbr.rel (%p432) target = $region56
      $region55: #{adaln_pint_forward.7} parent=51 // pred_region
        %s435 = smul.u32 2, %s18
        %p436 = scmp.lt.s32.totalorder %s435, 3
        %s437 = scalar_select %p436, %s435, 3
        %s438 = smul.addr %s437, 8
        %s439 = scalar_lea.vmem %s6, %s438
      $region56: #{adaln_pint_forward.7} parent=51 // pred_fallthru
        _
    $region52: #{adaln_pint_forward.7} parent=5 // pred_fallthru
      _
  $region6: #{adaln_pint_forward.7} parent=0 // loop_footer
    %s16 = sadd.s32 1, %s12
  $region7: #{adaln_pint_forward.7} parent=0 // loop_footer_branch
    %11 = sbr.rel target = $region3
  $region8: #{adaln_pint_forward.7} parent=0 // loop_exit
    _

// kernel: adaln_pint_forward.6
$region0: #{adaln_pint_forward.6}
  #allocation0 [shape = 'u32[]', space=smem, size = 0x4, offset = 0x4, fixed_abs, tag = 'smem constant byte address 0x4 - core index']
  #allocation1 [shape = 'u32[144,128]{1,0:T(1,128)}', space=vmem, size = 0x12000, scoped, tag = 'internal scratch']
  %s0 = inlined_call_operand.vmem [shape: bf16[16,3], index: 0, kind: input, shape index: {}]
  %s1 = inlined_call_operand.vmem [shape: bf16[3,32], index: 1, kind: input, shape index: {}]
  %s2 = inlined_call_operand.vmem [shape: f32[1,32], index: 2, kind: input, shape index: {}]
  %s3 = inlined_call_operand.vmem [shape: bf16[32,32], index: 3, kind: input, shape index: {}]
  %s4 = inlined_call_operand.vmem [shape: f32[1,32], index: 4, kind: input, shape index: {}]
  %s5 = inlined_call_operand.vmem [shape: f32[1,32], index: 5, kind: input, shape index: {}]
  %s6 = inlined_call_operand.vmem [shape: f32[16,32], index: 6, kind: output, shape index: {}]
  %s7 = sld [smem:[#allocation0]]
  $region57: #{adaln_pint_forward.6} parent=0
    _
  %s9 = ssub.s32 1, %s7
  %s10 = scalar_select 0, %s9, %s7
  loop: start=0, step=1, limit=4
  $region2: #{adaln_pint_forward.6} parent=0 // loop_pre_header
    _
  $region3: #{adaln_pint_forward.6} parent=0 // loop_header
    %s12 = sphi 0, %s16
    %p13 = scmp.ge.s32.totalorder %s12, 4
    %s22 = sphi 0, %s24
    %s25 = sphi 0, %s22
    %s26 = sphi 0, %s25
    %s42 = sphi 0, %s26
    %s46 = sphi 0, %s46
    %s48 = sphi 0, %s46
    %s49 = sphi 0, %s48
    %s63 = sphi 0, %s49
    %s67 = sphi 0, %s67
    %s69 = sphi 0, %s67
    %s70 = sphi 0, %s69
    %s84 = sphi 0, %s70
    %s88 = sphi 0, %s88
    %s90 = sphi 0, %s88
    %s91 = sphi 0, %s90
    %s105 = sphi 0, %s91
    %s109 = sphi 0, %s109
    %s111 = sphi 0, %s109
    %s112 = sphi 0, %s111
    %s126 = sphi 0, %s112
    %s130 = sphi 0, %s130
    %s132 = sphi 0, %s130
    %s133 = sphi 0, %s132
    %s147 = sphi 0, %s133
    %s153 = sphi 0, %s155
    %s156 = sphi 0, %s153
    %s157 = sphi 0, %s156
    %s173 = sphi 0, %s157
  $region4: #{adaln_pint_forward.6} parent=0 // loop_header_branch
    %15 = sbr.rel (%p13) target = $region8
  $region5: #{adaln_pint_forward.6} parent=0 // loop_body
    %s17 = ssub.s32 %s12, 1
    %s18 = ssub.s32 %s12, 2
    %s19 = sadd.s32 %s12, 1
    %s20 = ssub.s32 %s12, %s19
    %p21 = scmp.eq.s32.totalorder %s20, 0
    %s23 = sadd.s32 %s22, 1
    %s24 = scalar_select %p21, %s22, %s23
    %p27 = pneg %p21
    %p28 = scmp.eq.s32.totalorder %s12, 1
    %p29 = por %p27, %p28
    %p30 = scmp.ne.s32.totalorder %s22, %s25
    %p31 = scmp.eq.s32.totalorder %s12, 0
    %p32 = por %p30, %p31
    %p33 = scmp.ne.s32.totalorder %s22, %s25
    %p34 = scmp.eq.s32.totalorder %s17, 1
    %p35 = por %p33, %p34
    %p36 = scmp.ne.s32.totalorder %s25, %s26
    %p37 = scmp.eq.s32.totalorder %s17, 0
    %p38 = por %p36, %p37
    %p39 = scmp.ne.s32.totalorder %s25, %s26
    %p40 = scmp.eq.s32.totalorder %s18, 1
    %p41 = por %p39, %p40
    %p43 = scmp.ne.s32.totalorder %s26, %s42
    %p44 = scmp.eq.s32.totalorder %s18, 0
    %p45 = por %p43, %p44
    %s47 = sadd.s32 %s46, 1
    %p50 = scmp.eq.s32.totalorder %s12, 1
    %p51 = scmp.ne.s32.totalorder %s46, %s48
    %p52 = scmp.eq.s32.totalorder %s12, 0
    %p53 = por %p51, %p52
    %p54 = scmp.ne.s32.totalorder %s46, %s48
    %p55 = scmp.eq.s32.totalorder %s17, 1
    %p56 = por %p54, %p55
    %p57 = scmp.ne.s32.totalorder %s48, %s49
    %p58 = scmp.eq.s32.totalorder %s17, 0
    %p59 = por %p57, %p58
    %p60 = scmp.ne.s32.totalorder %s48, %s49
    %p61 = scmp.eq.s32.totalorder %s18, 1
    %p62 = por %p60, %p61
    %p64 = scmp.ne.s32.totalorder %s49, %s63
    %p65 = scmp.eq.s32.totalorder %s18, 0
    %p66 = por %p64, %p65
    %s68 = sadd.s32 %s67, 1
    %p71 = scmp.eq.s32.totalorder %s12, 1
    %p72 = scmp.ne.s32.totalorder %s67, %s69
    %p73 = scmp.eq.s32.totalorder %s12, 0
    %p74 = por %p72, %p73
    %p75 = scmp.ne.s32.totalorder %s67, %s69
    %p76 = scmp.eq.s32.totalorder %s17, 1
    %p77 = por %p75, %p76
    %p78 = scmp.ne.s32.totalorder %s69, %s70
    %p79 = scmp.eq.s32.totalorder %s17, 0
    %p80 = por %p78, %p79
    %p81 = scmp.ne.s32.totalorder %s69, %s70
    %p82 = scmp.eq.s32.totalorder %s18, 1
    %p83 = por %p81, %p82
    %p85 = scmp.ne.s32.totalorder %s70, %s84
    %p86 = scmp.eq.s32.totalorder %s18, 0
    %p87 = por %p85, %p86
    %s89 = sadd.s32 %s88, 1
    %p92 = scmp.eq.s32.totalorder %s12, 1
    %p93 = scmp.ne.s32.totalorder %s88, %s90
    %p94 = scmp.eq.s32.totalorder %s12, 0
    %p95 = por %p93, %p94
    %p96 = scmp.ne.s32.totalorder %s88, %s90
    %p97 = scmp.eq.s32.totalorder %s17, 1
    %p98 = por %p96, %p97
    %p99 = scmp.ne.s32.totalorder %s90, %s91
    %p100 = scmp.eq.s32.totalorder %s17, 0
    %p101 = por %p99, %p100
    %p102 = scmp.ne.s32.totalorder %s90, %s91
    %p103 = scmp.eq.s32.totalorder %s18, 1
    %p104 = por %p102, %p103
    %p106 = scmp.ne.s32.totalorder %s91, %s105
    %p107 = scmp.eq.s32.totalorder %s18, 0
    %p108 = por %p106, %p107
    %s110 = sadd.s32 %s109, 1
    %p113 = scmp.eq.s32.totalorder %s12, 1
    %p114 = scmp.ne.s32.totalorder %s109, %s111
    %p115 = scmp.eq.s32.totalorder %s12, 0
    %p116 = por %p114, %p115
    %p117 = scmp.ne.s32.totalorder %s109, %s111
    %p118 = scmp.eq.s32.totalorder %s17, 1
    %p119 = por %p117, %p118
    %p120 = scmp.ne.s32.totalorder %s111, %s112
    %p121 = scmp.eq.s32.totalorder %s17, 0
    %p122 = por %p120, %p121
    %p123 = scmp.ne.s32.totalorder %s111, %s112
    %p124 = scmp.eq.s32.totalorder %s18, 1
    %p125 = por %p123, %p124
    %p127 = scmp.ne.s32.totalorder %s112, %s126
    %p128 = scmp.eq.s32.totalorder %s18, 0
    %p129 = por %p127, %p128
    %s131 = sadd.s32 %s130, 1
    %p134 = scmp.eq.s32.totalorder %s12, 1
    %p135 = scmp.ne.s32.totalorder %s130, %s132
    %p136 = scmp.eq.s32.totalorder %s12, 0
    %p137 = por %p135, %p136
    %p138 = scmp.ne.s32.totalorder %s130, %s132
    %p139 = scmp.eq.s32.totalorder %s17, 1
    %p140 = por %p138, %p139
    %p141 = scmp.ne.s32.totalorder %s132, %s133
    %p142 = scmp.eq.s32.totalorder %s17, 0
    %p143 = por %p141, %p142
    %p144 = scmp.ne.s32.totalorder %s132, %s133
    %p145 = scmp.eq.s32.totalorder %s18, 1
    %p146 = por %p144, %p145
    %p148 = scmp.ne.s32.totalorder %s133, %s147
    %p149 = scmp.eq.s32.totalorder %s18, 0
    %p150 = por %p148, %p149
    %s151 = ssub.s32 %s12, %s19
    %p152 = scmp.eq.s32.totalorder %s151, 0
    %s154 = sadd.s32 %s153, 1
    %s155 = scalar_select %p152, %s153, %s154
    %p158 = pneg %p152
    %p159 = scmp.eq.s32.totalorder %s12, 1
    %p160 = por %p158, %p159
    %p161 = scmp.ne.s32.totalorder %s153, %s156
    %p162 = scmp.eq.s32.totalorder %s12, 0
    %p163 = por %p161, %p162
    %p164 = scmp.ne.s32.totalorder %s153, %s156
    %p165 = scmp.eq.s32.totalorder %s17, 1
    %p166 = por %p164, %p165
    %p167 = scmp.ne.s32.totalorder %s156, %s157
    %p168 = scmp.eq.s32.totalorder %s17, 0
    %p169 = por %p167, %p168
    %p170 = scmp.ne.s32.totalorder %s156, %s157
    %p171 = scmp.eq.s32.totalorder %s18, 1
    %p172 = por %p170, %p171
    %p174 = scmp.ne.s32.totalorder %s157, %s173
    %p175 = scmp.eq.s32.totalorder %s18, 0
    %p176 = por %p174, %p175
    %p177 = scmp.le.s32.totalorder 1, %s12
    %p178 = scmp.lt.s32.totalorder %s12, 3
    %p179 = pnand %p177, %p178
    %p180 = pneg %p179
    // Predicated region
    $region9: #{adaln_pint_forward.6} parent=5 // pred_check
      _
    $region10: #{adaln_pint_forward.6} parent=5 // pred_check_branch
      %182 = sbr.rel (%p179) target = $region12
    $region11: #{adaln_pint_forward.6} parent=5 // pred_region
      %s183 = ssub.s32 %s12, 1
      // Predicated region
      $region13: #{adaln_pint_forward.6} parent=11 // pred_check
        %p184 = pneg %p59
      $region14: #{adaln_pint_forward.6} parent=11 // pred_check_branch
        %186 = sbr.rel (%p184) target = $region16
      $region15: #{adaln_pint_forward.6} parent=11 // pred_region
        _
      $region16: #{adaln_pint_forward.6} parent=11 // pred_fallthru
        _
      // Predicated region
      $region17: #{adaln_pint_forward.6} parent=11 // pred_check
        %p187 = pneg %p80
      $region18: #{adaln_pint_forward.6} parent=11 // pred_check_branch
        %189 = sbr.rel (%p187) target = $region20
      $region19: #{adaln_pint_forward.6} parent=11 // pred_region
        _
      $region20: #{adaln_pint_forward.6} parent=11 // pred_fallthru
        _
      // Predicated region
      $region21: #{adaln_pint_forward.6} parent=11 // pred_check
        %p190 = pneg %p101
      $region22: #{adaln_pint_forward.6} parent=11 // pred_check_branch
        %192 = sbr.rel (%p190) target = $region24
      $region23: #{adaln_pint_forward.6} parent=11 // pred_region
        _
      $region24: #{adaln_pint_forward.6} parent=11 // pred_fallthru
        _
      // Predicated region
      $region25: #{adaln_pint_forward.6} parent=11 // pred_check
        %p193 = pneg %p122
      $region26: #{adaln_pint_forward.6} parent=11 // pred_check_branch
        %195 = sbr.rel (%p193) target = $region28
      $region27: #{adaln_pint_forward.6} parent=11 // pred_region
        _
      $region28: #{adaln_pint_forward.6} parent=11 // pred_fallthru
        _
      // Predicated region
      $region29: #{adaln_pint_forward.6} parent=11 // pred_check
        %p196 = pneg %p143
      $region30: #{adaln_pint_forward.6} parent=11 // pred_check_branch
        %198 = sbr.rel (%p196) target = $region32
      $region31: #{adaln_pint_forward.6} parent=11 // pred_region
        _
      $region32: #{adaln_pint_forward.6} parent=11 // pred_fallthru
        _
    $region12: #{adaln_pint_forward.6} parent=5 // pred_fallthru
      _
    %p199 = scmp.lt.s32.totalorder %s12, 2
    // Predicated region
    $region33: #{adaln_pint_forward.6} parent=5 // pred_check
      %p200 = pneg %p199
    $region34: #{adaln_pint_forward.6} parent=5 // pred_check_branch
      %202 = sbr.rel (%p200) target = $region36
    $region35: #{adaln_pint_forward.6} parent=5 // pred_region
      // Predicated region
      $region37: #{adaln_pint_forward.6} parent=35 // pred_check
        %p203 = pneg %p32
      $region38: #{adaln_pint_forward.6} parent=35 // pred_check_branch
        %205 = sbr.rel (%p203) target = $region40
      $region39: #{adaln_pint_forward.6} parent=35 // pred_region
        %p206 = scmp.lt.s32.totalorder %s12, 1
        %s207 = scalar_select %p206, %s12, 1
        %s208 = smul.addr %s207, 4
        %s209 = scalar_lea.vmem %s0, %s208
      $region40: #{adaln_pint_forward.6} parent=35 // pred_fallthru
        _
    $region36: #{adaln_pint_forward.6} parent=5 // pred_fallthru
      _
    %p210 = scmp.le.s32.totalorder 1, %s12
    %p211 = scmp.lt.s32.totalorder %s12, 3
    %p212 = pnand %p210, %p211
    %p213 = pneg %p212
    // Predicated region
    $region41: #{adaln_pint_forward.6} parent=5 // pred_check
      _
    $region42: #{adaln_pint_forward.6} parent=5 // pred_check_branch
      %215 = sbr.rel (%p212) target = $region44
    $region43: #{adaln_pint_forward.6} parent=5 // pred_region
      %s216 = ssub.s32 %s12, 1
      %p217 = scmp.lt.s32.totalorder %s17, 1
      %s218 = scalar_select %p217, %s17, 1
      %s219 = smul.addr %s218, 4
      %s220 = scalar_lea.vmem %s0, %s219
      %p221 = pneg %p38
      %p222 = pneg %p35
      %p223 = pneg %p59
      %p224 = pneg %p56
      %p225 = pneg %p80
      %p226 = pneg %p77
      %p227 = pneg %p101
      %p228 = pneg %p98
      %p229 = pneg %p122
      %p230 = pneg %p119
      %p231 = pneg %p143
      %p232 = pneg %p140
      %p233 = pneg %p169
      %p234 = pneg %p166
      %p235 = scmp.lt.s32.totalorder %s17, 1
      %s236 = scalar_select %p235, %s17, 1
      %s237 = smul.addr %s236, 8
      %s238 = scalar_lea.vmem %s6, %s237
      %p239 = scmp.lt.s32.totalorder %s17, 1
      %s240 = scalar_select %p239, %s17, 1
      %s241 = smul.addr %s240, 4
      %s242 = scalar_lea.vmem %s0, %s241
      %p243 = scmp.lt.s32.totalorder %s17, 1
      %s244 = scalar_select %p243, %s17, 1
      %s245 = smul.addr %s244, 8
      %s246 = scalar_lea.vmem %s6, %s245
      %v248 = vld [vmem:[%s242] sm:$0xf]
      %v249 = vld [vmem:[%s1] sm:$0x3]
      %v250 = vld [vmem:[%s2] sm:$0x1]
      %v252 = vlaneseq
      %v253 = vshrl.u32 %v252, 7
      %v254 = vsub.s32 0, %v253
      %v255 = vrot.slane %v250, %v254
      %vm257 = vcmask 23552
      %v259 = vsel %vm257, %v248, 0
      %vm261 = vcmask 1040384
      %vm262 = vcmask 1041408
      %v263 = vsel %vm261, 4294967295, 65535
      %v264 = vsel %vm262, %v263, 0
      %v266 = vand.u32 %v249, %v264
      %268 = vmatprep.subr.bf16.mxu0 0
      %269 = vmatpush1.bf16.msra.mxu0 %v266
      %270 = vmatprep.subr.bf16.mxu0 0
      %271 = vmatpush1.bf16.msra.mxu0 0
      %272 = vmatprep.subr.bf16.mxu0 0
      %273 = vmatpush1.bf16.msra.mxu0 0
      %274 = vmatprep.subr.bf16.mxu0 0
      %275 = vmatpush1.bf16.msra.mxu0 0
      %276 = vmatprep.subr.bf16.mxu0 0
      %277 = vmatpush1.bf16.msra.mxu0 0
      %278 = vmatprep.subr.bf16.mxu0 0
      %279 = vmatpush1.bf16.msra.mxu0 0
      %280 = vmatprep.subr.bf16.mxu0 0
      %281 = vmatpush1.bf16.msra.mxu0 0
      %282 = vmatprep.subr.bf16.mxu0 0
      %283 = vmatpush1.bf16.msra.mxu0 0
      %284 = vmatprep.subr.bf16.mxu0 0
      %285 = vmatpush1.bf16.msra.mxu0 0
      %286 = vmatprep.subr.bf16.mxu0 0
      %287 = vmatpush1.bf16.msra.mxu0 0
      %288 = vmatprep.subr.bf16.mxu0 0
      %289 = vmatpush1.bf16.msra.mxu0 0
      %290 = vmatprep.subr.bf16.mxu0 0
      %291 = vmatpush1.bf16.msra.mxu0 0
      %292 = vmatprep.subr.bf16.mxu0 0
      %293 = vmatpush1.bf16.msra.mxu0 0
      %294 = vmatprep.subr.bf16.mxu0 0
      %295 = vmatpush1.bf16.msra.mxu0 0
      %296 = vmatprep.subr.bf16.mxu0 0
      %297 = vmatpush1.bf16.msra.mxu0 0
      %298 = vmatprep.subr.bf16.mxu0 0
      %299 = vmatpush1.bf16.msra.mxu0 0
      %300 = vmatprep.mubr.bf16.mxu0 0
      %301 = vmatmul.mubr.bf16.gmra.mrb[0].mxu0 %v259
      %v302 = vpop.f32.mrb[0].mxu0
      %v303 = vadd.f32 %v255, %v302
      %v304 = vpop.f32.mrb[0].mxu0
      %v305 = vpop.f32.mrb[0].mxu0
      %v306 = vpop.f32.mrb[0].mxu0
      %307 = vdwg.mxu0
      %v308 = vmul.f32 %v303, 0.5
      %v309 = vmul.f32 %v303, 0.044715
      %v310 = vmul.f32 %v309, %v303
      %v311 = vmul.f32 %v310, %v303
      %v312 = vadd.f32 %v303, %v311
      %v313 = vmul.f32 %v312, 0.7978846
      %v314 = vtanh.pop %v313
      %v315 = vadd.f32 %v314, 1.0
      %v316 = vmul.f32 %v308, %v315
      %v317 = vpack.c.bf16 %v316, %v316
      %v318 = vld [vmem:[%s3] sm:$0xf]
      %v319 = vld [vmem:[%s3 + $0x4] sm:$0xf]
      %v320 = vld [vmem:[%s3 + $0x8] sm:$0xf]
      %v321 = vld [vmem:[%s3 + $0xc] sm:$0xf]
      %v322 = vld [vmem:[%s4] sm:$0x1]
      %v324 = vlaneseq
      %v325 = vshrl.u32 %v324, 7
      %v326 = vsub.s32 0, %v325
      %v327 = vrot.slane %v322, %v326
      %v333 = vunpack.c.l.b16 %v318
      %v334 = vunpack.c.l.b16 %v319
      %v335 = vunpack.c.l.b16 %v320
      %v336 = vunpack.c.l.b16 %v321
      %v337 = vpack.c.b16 %v334, %v333
      %v338 = vpack.c.b16 %v336, %v335
      %vm341 = vcmask 261120
      %v343 = vsel %vm341, %v317, 0
      %345 = vmatprep.subr.bf16.mxu0 0
      %346 = vmatpush1.bf16.msra.mxu0 %v337
      %347 = vmatprep.subr.bf16.mxu0 0
      %348 = vmatpush1.bf16.msra.mxu0 %v338
      %349 = vmatprep.subr.bf16.mxu0 0
      %350 = vmatpush1.bf16.msra.mxu0 0
      %351 = vmatprep.subr.bf16.mxu0 0
      %352 = vmatpush1.bf16.msra.mxu0 0
      %353 = vmatprep.subr.bf16.mxu0 0
      %354 = vmatpush1.bf16.msra.mxu0 0
      %355 = vmatprep.subr.bf16.mxu0 0
      %356 = vmatpush1.bf16.msra.mxu0 0
      %357 = vmatprep.subr.bf16.mxu0 0
      %358 = vmatpush1.bf16.msra.mxu0 0
      %359 = vmatprep.subr.bf16.mxu0 0
      %360 = vmatpush1.bf16.msra.mxu0 0
      %361 = vmatprep.subr.bf16.mxu0 0
      %362 = vmatpush1.bf16.msra.mxu0 0
      %363 = vmatprep.subr.bf16.mxu0 0
      %364 = vmatpush1.bf16.msra.mxu0 0
      %365 = vmatprep.subr.bf16.mxu0 0
      %366 = vmatpush1.bf16.msra.mxu0 0
      %367 = vmatprep.subr.bf16.mxu0 0
      %368 = vmatpush1.bf16.msra.mxu0 0
      %369 = vmatprep.subr.bf16.mxu0 0
      %370 = vmatpush1.bf16.msra.mxu0 0
      %371 = vmatprep.subr.bf16.mxu0 0
      %372 = vmatpush1.bf16.msra.mxu0 0
      %373 = vmatprep.subr.bf16.mxu0 0
      %374 = vmatpush1.bf16.msra.mxu0 0
      %375 = vmatprep.subr.bf16.mxu0 0
      %376 = vmatpush1.bf16.msra.mxu0 0
      %377 = vmatprep.mubr.bf16.mxu0 0
      %378 = vmatmul.mubr.bf16.gmra.mrb[0].mxu0 %v343
      %v379 = vpop.f32.mrb[0].mxu0
      %v380 = vadd.f32 %v327, %v379
      %v381 = vpop.f32.mrb[0].mxu0
      %v382 = vpop.f32.mrb[0].mxu0
      %v383 = vpop.f32.mrb[0].mxu0
      %384 = vdwg.mxu0
      %v385 = vld [vmem:[%s5] sm:$0x1]
      %v387 = vlaneseq
      %v388 = vshrl.u32 %v387, 7
      %v389 = vsub.s32 0, %v388
      %v390 = vrot.slane %v385, %v389
      %v392 = vadd.f32 %v380, %v390
      %393 = vst.msk [vmem:[%s246] sm:$0xff] %vm341, %v392
      %p394 = scmp.lt.s32.totalorder %s17, 1
      %s395 = scalar_select %p394, %s17, 1
      %s396 = smul.addr %s395, 8
      %s397 = scalar_lea.vmem %s6, %s396
      // Predicated region
      $region45: #{adaln_pint_forward.6} parent=43 // pred_check
        %p398 = pneg %p166
      $region46: #{adaln_pint_forward.6} parent=43 // pred_check_branch
        %400 = sbr.rel (%p398) target = $region48
      $region47: #{adaln_pint_forward.6} parent=43 // pred_region
        _
      $region48: #{adaln_pint_forward.6} parent=43 // pred_fallthru
        _
    $region44: #{adaln_pint_forward.6} parent=5 // pred_fallthru
      _
    %p401 = scmp.le.s32.totalorder 2, %s12
    // Predicated region
    $region49: #{adaln_pint_forward.6} parent=5 // pred_check
      %p402 = pneg %p401
    $region50: #{adaln_pint_forward.6} parent=5 // pred_check_branch
      %404 = sbr.rel (%p402) target = $region52
    $region51: #{adaln_pint_forward.6} parent=5 // pred_region
      %s405 = ssub.s32 %s12, 2
      // Predicated region
      $region53: #{adaln_pint_forward.6} parent=51 // pred_check
        %p406 = pneg %p172
      $region54: #{adaln_pint_forward.6} parent=51 // pred_check_branch
        %408 = sbr.rel (%p406) target = $region56
      $region55: #{adaln_pint_forward.6} parent=51 // pred_region
        %p409 = scmp.lt.s32.totalorder %s18, 1
        %s410 = scalar_select %p409, %s18, 1
        %s411 = smul.addr %s410, 8
        %s412 = scalar_lea.vmem %s6, %s411
      $region56: #{adaln_pint_forward.6} parent=51 // pred_fallthru
        _
    $region52: #{adaln_pint_forward.6} parent=5 // pred_fallthru
      _
  $region6: #{adaln_pint_forward.6} parent=0 // loop_footer
    %s16 = sadd.s32 1, %s12
  $region7: #{adaln_pint_forward.6} parent=0 // loop_footer_branch
    %11 = sbr.rel target = $region3
  $region8: #{adaln_pint_forward.6} parent=0 // loop_exit
    _

// kernel: adaln_pint_forward.8
$region0: #{adaln_pint_forward.8}
  #allocation0 [shape = 'u32[]', space=smem, size = 0x4, offset = 0x4, fixed_abs, tag = 'smem constant byte address 0x4 - core index']
  #allocation1 [shape = 'u32[144,128]{1,0:T(1,128)}', space=vmem, size = 0x12000, scoped, tag = 'internal scratch']
  %s0 = inlined_call_operand.vmem [shape: f32[2,32], index: 0, kind: input, shape index: {}]
  %s1 = inlined_call_operand.vmem [shape: bf16[32,128], index: 1, kind: input, shape index: {}]
  %s2 = inlined_call_operand.vmem [shape: f32[1,128], index: 2, kind: input, shape index: {}]
  %s3 = inlined_call_operand.vmem [shape: bf16[128,32], index: 3, kind: input, shape index: {}]
  %s4 = inlined_call_operand.vmem [shape: f32[1,32], index: 4, kind: input, shape index: {}]
  %s5 = inlined_call_operand.vmem [shape: f32[2,32], index: 5, kind: output, shape index: {}]
  %s6 = sld [smem:[#allocation0]]
  $region30: #{adaln_pint_forward.8} parent=0
    _
  %s8 = ssub.s32 1, %s6
  %s9 = scalar_select 0, %s8, %s6
  // Predicated region
  $region2: #{adaln_pint_forward.8} parent=0 // pred_check
    _
  $region3: #{adaln_pint_forward.8} parent=0 // pred_check_branch
    %11 = sbr.rel (0) target = $region5
  $region4: #{adaln_pint_forward.8} parent=0 // pred_region
    _
  $region5: #{adaln_pint_forward.8} parent=0 // pred_fallthru
    _
  // Predicated region
  $region6: #{adaln_pint_forward.8} parent=0 // pred_check
    _
  $region7: #{adaln_pint_forward.8} parent=0 // pred_check_branch
    %13 = sbr.rel (0) target = $region9
  $region8: #{adaln_pint_forward.8} parent=0 // pred_region
    _
  $region9: #{adaln_pint_forward.8} parent=0 // pred_fallthru
    _
  // Predicated region
  $region10: #{adaln_pint_forward.8} parent=0 // pred_check
    _
  $region11: #{adaln_pint_forward.8} parent=0 // pred_check_branch
    %15 = sbr.rel (0) target = $region13
  $region12: #{adaln_pint_forward.8} parent=0 // pred_region
    _
  $region13: #{adaln_pint_forward.8} parent=0 // pred_fallthru
    _
  // Predicated region
  $region14: #{adaln_pint_forward.8} parent=0 // pred_check
    _
  $region15: #{adaln_pint_forward.8} parent=0 // pred_check_branch
    %17 = sbr.rel (0) target = $region17
  $region16: #{adaln_pint_forward.8} parent=0 // pred_region
    _
  $region17: #{adaln_pint_forward.8} parent=0 // pred_fallthru
    _
  // Predicated region
  $region18: #{adaln_pint_forward.8} parent=0 // pred_check
    _
  $region19: #{adaln_pint_forward.8} parent=0 // pred_check_branch
    %19 = sbr.rel (0) target = $region21
  $region20: #{adaln_pint_forward.8} parent=0 // pred_region
    _
  $region21: #{adaln_pint_forward.8} parent=0 // pred_fallthru
    _
  %v21 = vld [vmem:[%s0] sm:$0x3]
  %v22 = vpack.c.bf16 %v21, %v21
  %v23 = vld [vmem:[%s1] sm:$0xf]
  %v24 = vld [vmem:[%s1 + $0x4] sm:$0xf]
  %v25 = vld [vmem:[%s1 + $0x8] sm:$0xf]
  %v26 = vld [vmem:[%s1 + $0xc] sm:$0xf]
  %v27 = vld [vmem:[%s2] sm:$0x1]
  %v29 = vlaneseq
  %v30 = vshrl.u32 %v29, 7
  %v31 = vsub.s32 0, %v30
  %v32 = vrot.slane %v27, %v31
  %v38 = vunpack.c.l.b16 %v23
  %v39 = vunpack.c.l.b16 %v24
  %v40 = vunpack.c.l.b16 %v25
  %v41 = vunpack.c.l.b16 %v26
  %v42 = vpack.c.b16 %v39, %v38
  %v43 = vpack.c.b16 %v41, %v40
  %vm46 = vcmask 261120
  %v48 = vsel %vm46, %v22, 0
  %50 = vmatprep.subr.bf16.mxu0 0
  %51 = vmatpush1.bf16.msra.mxu0 %v42
  %52 = vmatprep.subr.bf16.mxu0 0
  %53 = vmatpush1.bf16.msra.mxu0 %v43
  %54 = vmatprep.subr.bf16.mxu0 0
  %55 = vmatpush1.bf16.msra.mxu0 0
  %56 = vmatprep.subr.bf16.mxu0 0
  %57 = vmatpush1.bf16.msra.mxu0 0
  %58 = vmatprep.subr.bf16.mxu0 0
  %59 = vmatpush1.bf16.msra.mxu0 0
  %60 = vmatprep.subr.bf16.mxu0 0
  %61 = vmatpush1.bf16.msra.mxu0 0
  %62 = vmatprep.subr.bf16.mxu0 0
  %63 = vmatpush1.bf16.msra.mxu0 0
  %64 = vmatprep.subr.bf16.mxu0 0
  %65 = vmatpush1.bf16.msra.mxu0 0
  %66 = vmatprep.subr.bf16.mxu0 0
  %67 = vmatpush1.bf16.msra.mxu0 0
  %68 = vmatprep.subr.bf16.mxu0 0
  %69 = vmatpush1.bf16.msra.mxu0 0
  %70 = vmatprep.subr.bf16.mxu0 0
  %71 = vmatpush1.bf16.msra.mxu0 0
  %72 = vmatprep.subr.bf16.mxu0 0
  %73 = vmatpush1.bf16.msra.mxu0 0
  %74 = vmatprep.subr.bf16.mxu0 0
  %75 = vmatpush1.bf16.msra.mxu0 0
  %76 = vmatprep.subr.bf16.mxu0 0
  %77 = vmatpush1.bf16.msra.mxu0 0
  %78 = vmatprep.subr.bf16.mxu0 0
  %79 = vmatpush1.bf16.msra.mxu0 0
  %80 = vmatprep.subr.bf16.mxu0 0
  %81 = vmatpush1.bf16.msra.mxu0 0
  %82 = vmatprep.mubr.bf16.mxu0 0
  %83 = vmatmul.mubr.bf16.gmra.mrb[0].mxu0 %v48
  %v84 = vpop.f32.mrb[0].mxu0
  %v85 = vadd.f32 %v32, %v84
  %v86 = vpop.f32.mrb[0].mxu0
  %v87 = vpop.f32.mrb[0].mxu0
  %v88 = vpop.f32.mrb[0].mxu0
  %89 = vdwg.mxu0
  %v90 = vmul.f32 %v85, 0.5
  %v91 = vmul.f32 %v85, 0.044715
  %v92 = vmul.f32 %v91, %v85
  %v93 = vmul.f32 %v92, %v85
  %v94 = vadd.f32 %v85, %v93
  %v95 = vmul.f32 %v94, 0.7978846
  %v96 = vtanh.pop %v95
  %v97 = vadd.f32 %v96, 1.0
  %v98 = vmul.f32 %v90, %v97
  %v99 = vpack.c.bf16 %v98, %v98
  %v100 = vld [vmem:[%s3] sm:$0xf]
  %v101 = vld [vmem:[%s3 + $0x4] sm:$0xf]
  %v102 = vld [vmem:[%s3 + $0x8] sm:$0xf]
  %v103 = vld [vmem:[%s3 + $0xc] sm:$0xf]
  %v104 = vld [vmem:[%s3 + $0x10] sm:$0xf]
  %v105 = vld [vmem:[%s3 + $0x14] sm:$0xf]
  %v106 = vld [vmem:[%s3 + $0x18] sm:$0xf]
  %v107 = vld [vmem:[%s3 + $0x1c] sm:$0xf]
  %v108 = vld [vmem:[%s3 + $0x20] sm:$0xf]
  %v109 = vld [vmem:[%s3 + $0x24] sm:$0xf]
  %v110 = vld [vmem:[%s3 + $0x28] sm:$0xf]
  %v111 = vld [vmem:[%s3 + $0x2c] sm:$0xf]
  %v112 = vld [vmem:[%s3 + $0x30] sm:$0xf]
  %v113 = vld [vmem:[%s3 + $0x34] sm:$0xf]
  %v114 = vld [vmem:[%s3 + $0x38] sm:$0xf]
  %v115 = vld [vmem:[%s3 + $0x3c] sm:$0xf]
  %v116 = vld [vmem:[%s4] sm:$0x1]
  %v118 = vlaneseq
  %v119 = vshrl.u32 %v118, 7
  %v120 = vsub.s32 0, %v119
  %v121 = vrot.slane %v116, %v120
  %v139 = vunpack.c.l.b16 %v100
  %v140 = vunpack.c.l.b16 %v101
  %v141 = vunpack.c.l.b16 %v102
  %v142 = vunpack.c.l.b16 %v103
  %v143 = vunpack.c.l.b16 %v104
  %v144 = vunpack.c.l.b16 %v105
  %v145 = vunpack.c.l.b16 %v106
  %v146 = vunpack.c.l.b16 %v107
  %v147 = vunpack.c.l.b16 %v108
  %v148 = vunpack.c.l.b16 %v109
  %v149 = vunpack.c.l.b16 %v110
  %v150 = vunpack.c.l.b16 %v111
  %v151 = vunpack.c.l.b16 %v112
  %v152 = vunpack.c.l.b16 %v113
  %v153 = vunpack.c.l.b16 %v114
  %v154 = vunpack.c.l.b16 %v115
  %v155 = vpack.c.b16 %v140, %v139
  %v156 = vpack.c.b16 %v142, %v141
  %v157 = vpack.c.b16 %v144, %v143
  %v158 = vpack.c.b16 %v146, %v145
  %v159 = vpack.c.b16 %v148, %v147
  %v160 = vpack.c.b16 %v150, %v149
  %v161 = vpack.c.b16 %v152, %v151
  %v162 = vpack.c.b16 %v154, %v153
  %171 = vmatprep.subr.bf16.mxu0 0
  %172 = vmatpush1.bf16.msra.mxu0 %v155
  %173 = vmatprep.subr.bf16.mxu0 0
  %174 = vmatpush1.bf16.msra.mxu0 %v156
  %175 = vmatprep.subr.bf16.mxu0 0
  %176 = vmatpush1.bf16.msra.mxu0 %v157
  %177 = vmatprep.subr.bf16.mxu0 0
  %178 = vmatpush1.bf16.msra.mxu0 %v158
  %179 = vmatprep.subr.bf16.mxu0 0
  %180 = vmatpush1.bf16.msra.mxu0 %v159
  %181 = vmatprep.subr.bf16.mxu0 0
  %182 = vmatpush1.bf16.msra.mxu0 %v160
  %183 = vmatprep.subr.bf16.mxu0 0
  %184 = vmatpush1.bf16.msra.mxu0 %v161
  %185 = vmatprep.subr.bf16.mxu0 0
  %186 = vmatpush1.bf16.msra.mxu0 %v162
  %187 = vmatprep.subr.bf16.mxu0 0
  %188 = vmatpush1.bf16.msra.mxu0 0
  %189 = vmatprep.subr.bf16.mxu0 0
  %190 = vmatpush1.bf16.msra.mxu0 0
  %191 = vmatprep.subr.bf16.mxu0 0
  %192 = vmatpush1.bf16.msra.mxu0 0
  %193 = vmatprep.subr.bf16.mxu0 0
  %194 = vmatpush1.bf16.msra.mxu0 0
  %195 = vmatprep.subr.bf16.mxu0 0
  %196 = vmatpush1.bf16.msra.mxu0 0
  %197 = vmatprep.subr.bf16.mxu0 0
  %198 = vmatpush1.bf16.msra.mxu0 0
  %199 = vmatprep.subr.bf16.mxu0 0
  %200 = vmatpush1.bf16.msra.mxu0 0
  %201 = vmatprep.subr.bf16.mxu0 0
  %202 = vmatpush1.bf16.msra.mxu0 0
  %203 = vmatprep.mubr.bf16.mxu0 0
  %204 = vmatmul.mubr.bf16.gmra.mrb[0].mxu0 %v99
  %v205 = vpop.f32.mrb[0].mxu0
  %v206 = vadd.f32 %v121, %v205
  %v207 = vpop.f32.mrb[0].mxu0
  %v208 = vpop.f32.mrb[0].mxu0
  %v209 = vpop.f32.mrb[0].mxu0
  %210 = vdwg.mxu0
  %vm211 = vcmask 254976
  %212 = vst.msk [vmem:[%s5] sm:$0x3] %vm211, %v206
  // Predicated region
  $region22: #{adaln_pint_forward.8} parent=0 // pred_check
    _
  $region23: #{adaln_pint_forward.8} parent=0 // pred_check_branch
    %214 = sbr.rel (0) target = $region25
  $region24: #{adaln_pint_forward.8} parent=0 // pred_region
    _
  $region25: #{adaln_pint_forward.8} parent=0 // pred_fallthru
    _
  // Predicated region
  $region26: #{adaln_pint_forward.8} parent=0 // pred_check
    _
  $region27: #{adaln_pint_forward.8} parent=0 // pred_check_branch
    %216 = sbr.rel (0) target = $region29
  $region28: #{adaln_pint_forward.8} parent=0 // pred_region
    _
  $region29: #{adaln_pint_forward.8} parent=0 // pred_fallthru
    _

// kernel: adaln_pint_forward.11
$region0: #{adaln_pint_forward.11}
  #allocation0 [shape = 'u32[]', space=smem, size = 0x4, offset = 0x4, fixed_abs, tag = 'smem constant byte address 0x4 - core index']
  #allocation1 [shape = 'u32[144,128]{1,0:T(1,128)}', space=vmem, size = 0x12000, scoped, tag = 'internal scratch']
  %s0 = inlined_call_operand.vmem [shape: f32[32,32], index: 0, kind: input, shape index: {}]
  %s1 = inlined_call_operand.vmem [shape: bf16[32,32], index: 1, kind: input, shape index: {}]
  %s2 = inlined_call_operand.vmem [shape: f32[1,32], index: 2, kind: input, shape index: {}]
  %s3 = inlined_call_operand.vmem [shape: bf16[32,128], index: 3, kind: input, shape index: {}]
  %s4 = inlined_call_operand.vmem [shape: f32[1,128], index: 4, kind: input, shape index: {}]
  %s5 = inlined_call_operand.vmem [shape: f32[1,32], index: 5, kind: input, shape index: {}]
  %s6 = inlined_call_operand.vmem [shape: f32[1,32], index: 6, kind: input, shape index: {}]
  %s7 = inlined_call_operand.vmem [shape: f32[32,128], index: 7, kind: output, shape index: {}]
  %s8 = sld [smem:[#allocation0]]
  $region61: #{adaln_pint_forward.11} parent=0
    _
  %s10 = ssub.s32 1, %s8
  %s11 = scalar_select 0, %s10, %s8
  loop: start=0, step=1, limit=4
  $region2: #{adaln_pint_forward.11} parent=0 // loop_pre_header
    _
  $region3: #{adaln_pint_forward.11} parent=0 // loop_header
    %s13 = sphi 0, %s17
    %p14 = scmp.ge.s32.totalorder %s13, 4
    %s23 = sphi 0, %s25
    %s26 = sphi 0, %s23
    %s27 = sphi 0, %s26
    %s43 = sphi 0, %s27
    %s47 = sphi 0, %s47
    %s49 = sphi 0, %s47
    %s50 = sphi 0, %s49
    %s64 = sphi 0, %s50
    %s68 = sphi 0, %s68
    %s70 = sphi 0, %s68
    %s71 = sphi 0, %s70
    %s85 = sphi 0, %s71
    %s89 = sphi 0, %s89
    %s91 = sphi 0, %s89
    %s92 = sphi 0, %s91
    %s106 = sphi 0, %s92
    %s110 = sphi 0, %s110
    %s112 = sphi 0, %s110
    %s113 = sphi 0, %s112
    %s127 = sphi 0, %s113
    %s131 = sphi 0, %s131
    %s133 = sphi 0, %s131
    %s134 = sphi 0, %s133
    %s148 = sphi 0, %s134
    %s152 = sphi 0, %s152
    %s154 = sphi 0, %s152
    %s155 = sphi 0, %s154
    %s169 = sphi 0, %s155
    %s175 = sphi 0, %s177
    %s178 = sphi 0, %s175
    %s179 = sphi 0, %s178
    %s195 = sphi 0, %s179
  $region4: #{adaln_pint_forward.11} parent=0 // loop_header_branch
    %16 = sbr.rel (%p14) target = $region8
  $region5: #{adaln_pint_forward.11} parent=0 // loop_body
    %s18 = ssub.s32 %s13, 1
    %s19 = ssub.s32 %s13, 2
    %s20 = sadd.s32 %s13, 1
    %s21 = ssub.s32 %s13, %s20
    %p22 = scmp.eq.s32.totalorder %s21, 0
    %s24 = sadd.s32 %s23, 1
    %s25 = scalar_select %p22, %s23, %s24
    %p28 = pneg %p22
    %p29 = scmp.eq.s32.totalorder %s13, 1
    %p30 = por %p28, %p29
    %p31 = scmp.ne.s32.totalorder %s23, %s26
    %p32 = scmp.eq.s32.totalorder %s13, 0
    %p33 = por %p31, %p32
    %p34 = scmp.ne.s32.totalorder %s23, %s26
    %p35 = scmp.eq.s32.totalorder %s18, 1
    %p36 = por %p34, %p35
    %p37 = scmp.ne.s32.totalorder %s26, %s27
    %p38 = scmp.eq.s32.totalorder %s18, 0
    %p39 = por %p37, %p38
    %p40 = scmp.ne.s32.totalorder %s26, %s27
    %p41 = scmp.eq.s32.totalorder %s19, 1
    %p42 = por %p40, %p41
    %p44 = scmp.ne.s32.totalorder %s27, %s43
    %p45 = scmp.eq.s32.totalorder %s19, 0
    %p46 = por %p44, %p45
    %s48 = sadd.s32 %s47, 1
    %p51 = scmp.eq.s32.totalorder %s13, 1
    %p52 = scmp.ne.s32.totalorder %s47, %s49
    %p53 = scmp.eq.s32.totalorder %s13, 0
    %p54 = por %p52, %p53
    %p55 = scmp.ne.s32.totalorder %s47, %s49
    %p56 = scmp.eq.s32.totalorder %s18, 1
    %p57 = por %p55, %p56
    %p58 = scmp.ne.s32.totalorder %s49, %s50
    %p59 = scmp.eq.s32.totalorder %s18, 0
    %p60 = por %p58, %p59
    %p61 = scmp.ne.s32.totalorder %s49, %s50
    %p62 = scmp.eq.s32.totalorder %s19, 1
    %p63 = por %p61, %p62
    %p65 = scmp.ne.s32.totalorder %s50, %s64
    %p66 = scmp.eq.s32.totalorder %s19, 0
    %p67 = por %p65, %p66
    %s69 = sadd.s32 %s68, 1
    %p72 = scmp.eq.s32.totalorder %s13, 1
    %p73 = scmp.ne.s32.totalorder %s68, %s70
    %p74 = scmp.eq.s32.totalorder %s13, 0
    %p75 = por %p73, %p74
    %p76 = scmp.ne.s32.totalorder %s68, %s70
    %p77 = scmp.eq.s32.totalorder %s18, 1
    %p78 = por %p76, %p77
    %p79 = scmp.ne.s32.totalorder %s70, %s71
    %p80 = scmp.eq.s32.totalorder %s18, 0
    %p81 = por %p79, %p80
    %p82 = scmp.ne.s32.totalorder %s70, %s71
    %p83 = scmp.eq.s32.totalorder %s19, 1
    %p84 = por %p82, %p83
    %p86 = scmp.ne.s32.totalorder %s71, %s85
    %p87 = scmp.eq.s32.totalorder %s19, 0
    %p88 = por %p86, %p87
    %s90 = sadd.s32 %s89, 1
    %p93 = scmp.eq.s32.totalorder %s13, 1
    %p94 = scmp.ne.s32.totalorder %s89, %s91
    %p95 = scmp.eq.s32.totalorder %s13, 0
    %p96 = por %p94, %p95
    %p97 = scmp.ne.s32.totalorder %s89, %s91
    %p98 = scmp.eq.s32.totalorder %s18, 1
    %p99 = por %p97, %p98
    %p100 = scmp.ne.s32.totalorder %s91, %s92
    %p101 = scmp.eq.s32.totalorder %s18, 0
    %p102 = por %p100, %p101
    %p103 = scmp.ne.s32.totalorder %s91, %s92
    %p104 = scmp.eq.s32.totalorder %s19, 1
    %p105 = por %p103, %p104
    %p107 = scmp.ne.s32.totalorder %s92, %s106
    %p108 = scmp.eq.s32.totalorder %s19, 0
    %p109 = por %p107, %p108
    %s111 = sadd.s32 %s110, 1
    %p114 = scmp.eq.s32.totalorder %s13, 1
    %p115 = scmp.ne.s32.totalorder %s110, %s112
    %p116 = scmp.eq.s32.totalorder %s13, 0
    %p117 = por %p115, %p116
    %p118 = scmp.ne.s32.totalorder %s110, %s112
    %p119 = scmp.eq.s32.totalorder %s18, 1
    %p120 = por %p118, %p119
    %p121 = scmp.ne.s32.totalorder %s112, %s113
    %p122 = scmp.eq.s32.totalorder %s18, 0
    %p123 = por %p121, %p122
    %p124 = scmp.ne.s32.totalorder %s112, %s113
    %p125 = scmp.eq.s32.totalorder %s19, 1
    %p126 = por %p124, %p125
    %p128 = scmp.ne.s32.totalorder %s113, %s127
    %p129 = scmp.eq.s32.totalorder %s19, 0
    %p130 = por %p128, %p129
    %s132 = sadd.s32 %s131, 1
    %p135 = scmp.eq.s32.totalorder %s13, 1
    %p136 = scmp.ne.s32.totalorder %s131, %s133
    %p137 = scmp.eq.s32.totalorder %s13, 0
    %p138 = por %p136, %p137
    %p139 = scmp.ne.s32.totalorder %s131, %s133
    %p140 = scmp.eq.s32.totalorder %s18, 1
    %p141 = por %p139, %p140
    %p142 = scmp.ne.s32.totalorder %s133, %s134
    %p143 = scmp.eq.s32.totalorder %s18, 0
    %p144 = por %p142, %p143
    %p145 = scmp.ne.s32.totalorder %s133, %s134
    %p146 = scmp.eq.s32.totalorder %s19, 1
    %p147 = por %p145, %p146
    %p149 = scmp.ne.s32.totalorder %s134, %s148
    %p150 = scmp.eq.s32.totalorder %s19, 0
    %p151 = por %p149, %p150
    %s153 = sadd.s32 %s152, 1
    %p156 = scmp.eq.s32.totalorder %s13, 1
    %p157 = scmp.ne.s32.totalorder %s152, %s154
    %p158 = scmp.eq.s32.totalorder %s13, 0
    %p159 = por %p157, %p158
    %p160 = scmp.ne.s32.totalorder %s152, %s154
    %p161 = scmp.eq.s32.totalorder %s18, 1
    %p162 = por %p160, %p161
    %p163 = scmp.ne.s32.totalorder %s154, %s155
    %p164 = scmp.eq.s32.totalorder %s18, 0
    %p165 = por %p163, %p164
    %p166 = scmp.ne.s32.totalorder %s154, %s155
    %p167 = scmp.eq.s32.totalorder %s19, 1
    %p168 = por %p166, %p167
    %p170 = scmp.ne.s32.totalorder %s155, %s169
    %p171 = scmp.eq.s32.totalorder %s19, 0
    %p172 = por %p170, %p171
    %s173 = ssub.s32 %s13, %s20
    %p174 = scmp.eq.s32.totalorder %s173, 0
    %s176 = sadd.s32 %s175, 1
    %s177 = scalar_select %p174, %s175, %s176
    %p180 = pneg %p174
    %p181 = scmp.eq.s32.totalorder %s13, 1
    %p182 = por %p180, %p181
    %p183 = scmp.ne.s32.totalorder %s175, %s178
    %p184 = scmp.eq.s32.totalorder %s13, 0
    %p185 = por %p183, %p184
    %p186 = scmp.ne.s32.totalorder %s175, %s178
    %p187 = scmp.eq.s32.totalorder %s18, 1
    %p188 = por %p186, %p187
    %p189 = scmp.ne.s32.totalorder %s178, %s179
    %p190 = scmp.eq.s32.totalorder %s18, 0
    %p191 = por %p189, %p190
    %p192 = scmp.ne.s32.totalorder %s178, %s179
    %p193 = scmp.eq.s32.totalorder %s19, 1
    %p194 = por %p192, %p193
    %p196 = scmp.ne.s32.totalorder %s179, %s195
    %p197 = scmp.eq.s32.totalorder %s19, 0
    %p198 = por %p196, %p197
    %p199 = scmp.le.s32.totalorder 1, %s13
    %p200 = scmp.lt.s32.totalorder %s13, 3
    %p201 = pnand %p199, %p200
    %p202 = pneg %p201
    // Predicated region
    $region9: #{adaln_pint_forward.11} parent=5 // pred_check
      _
    $region10: #{adaln_pint_forward.11} parent=5 // pred_check_branch
      %204 = sbr.rel (%p201) target = $region12
    $region11: #{adaln_pint_forward.11} parent=5 // pred_region
      %s205 = ssub.s32 %s13, 1
      // Predicated region
      $region13: #{adaln_pint_forward.11} parent=11 // pred_check
        %p206 = pneg %p60
      $region14: #{adaln_pint_forward.11} parent=11 // pred_check_branch
        %208 = sbr.rel (%p206) target = $region16
      $region15: #{adaln_pint_forward.11} parent=11 // pred_region
        _
      $region16: #{adaln_pint_forward.11} parent=11 // pred_fallthru
        _
      // Predicated region
      $region17: #{adaln_pint_forward.11} parent=11 // pred_check
        %p209 = pneg %p81
      $region18: #{adaln_pint_forward.11} parent=11 // pred_check_branch
        %211 = sbr.rel (%p209) target = $region20
      $region19: #{adaln_pint_forward.11} parent=11 // pred_region
        _
      $region20: #{adaln_pint_forward.11} parent=11 // pred_fallthru
        _
      // Predicated region
      $region21: #{adaln_pint_forward.11} parent=11 // pred_check
        %p212 = pneg %p102
      $region22: #{adaln_pint_forward.11} parent=11 // pred_check_branch
        %214 = sbr.rel (%p212) target = $region24
      $region23: #{adaln_pint_forward.11} parent=11 // pred_region
        _
      $region24: #{adaln_pint_forward.11} parent=11 // pred_fallthru
        _
      // Predicated region
      $region25: #{adaln_pint_forward.11} parent=11 // pred_check
        %p215 = pneg %p123
      $region26: #{adaln_pint_forward.11} parent=11 // pred_check_branch
        %217 = sbr.rel (%p215) target = $region28
      $region27: #{adaln_pint_forward.11} parent=11 // pred_region
        _
      $region28: #{adaln_pint_forward.11} parent=11 // pred_fallthru
        _
      // Predicated region
      $region29: #{adaln_pint_forward.11} parent=11 // pred_check
        %p218 = pneg %p144
      $region30: #{adaln_pint_forward.11} parent=11 // pred_check_branch
        %220 = sbr.rel (%p218) target = $region32
      $region31: #{adaln_pint_forward.11} parent=11 // pred_region
        _
      $region32: #{adaln_pint_forward.11} parent=11 // pred_fallthru
        _
      // Predicated region
      $region33: #{adaln_pint_forward.11} parent=11 // pred_check
        %p221 = pneg %p165
      $region34: #{adaln_pint_forward.11} parent=11 // pred_check_branch
        %223 = sbr.rel (%p221) target = $region36
      $region35: #{adaln_pint_forward.11} parent=11 // pred_region
        _
      $region36: #{adaln_pint_forward.11} parent=11 // pred_fallthru
        _
    $region12: #{adaln_pint_forward.11} parent=5 // pred_fallthru
      _
    %p224 = scmp.lt.s32.totalorder %s13, 2
    // Predicated region
    $region37: #{adaln_pint_forward.11} parent=5 // pred_check
      %p225 = pneg %p224
    $region38: #{adaln_pint_forward.11} parent=5 // pred_check_branch
      %227 = sbr.rel (%p225) target = $region40
    $region39: #{adaln_pint_forward.11} parent=5 // pred_region
      // Predicated region
      $region41: #{adaln_pint_forward.11} parent=39 // pred_check
        %p228 = pneg %p33
      $region42: #{adaln_pint_forward.11} parent=39 // pred_check_branch
        %230 = sbr.rel (%p228) target = $region44
      $region43: #{adaln_pint_forward.11} parent=39 // pred_region
        %s231 = smul.u32 2, %s13
        %p232 = scmp.lt.s32.totalorder %s231, 3
        %s233 = scalar_select %p232, %s231, 3
        %s234 = smul.addr %s233, 8
        %s235 = scalar_lea.vmem %s0, %s234
        %s236 = smul.u32 2, %s13
      $region44: #{adaln_pint_forward.11} parent=39 // pred_fallthru
        _
    $region40: #{adaln_pint_forward.11} parent=5 // pred_fallthru
      _
    %p237 = scmp.le.s32.totalorder 1, %s13
    %p238 = scmp.lt.s32.totalorder %s13, 3
    %p239 = pnand %p237, %p238
    %p240 = pneg %p239
    // Predicated region
    $region45: #{adaln_pint_forward.11} parent=5 // pred_check
      _
    $region46: #{adaln_pint_forward.11} parent=5 // pred_check_branch
      %242 = sbr.rel (%p239) target = $region48
    $region47: #{adaln_pint_forward.11} parent=5 // pred_region
      %s243 = ssub.s32 %s13, 1
      %s244 = smul.u32 2, %s18
      %p245 = scmp.lt.s32.totalorder %s244, 3
      %s246 = scalar_select %p245, %s244, 3
      %s247 = smul.addr %s246, 8
      %s248 = scalar_lea.vmem %s0, %s247
      %p249 = pneg %p39
      %p250 = pneg %p36
      %p251 = pneg %p60
      %p252 = pneg %p57
      %p253 = pneg %p81
      %p254 = pneg %p78
      %p255 = pneg %p102
      %p256 = pneg %p99
      %p257 = pneg %p123
      %p258 = pneg %p120
      %p259 = pneg %p144
      %p260 = pneg %p141
      %p261 = pneg %p165
      %p262 = pneg %p162
      %p263 = pneg %p191
      %p264 = pneg %p188
      %s265 = smul.u32 2, %s18
      %p266 = scmp.lt.s32.totalorder %s265, 3
      %s267 = scalar_select %p266, %s265, 3
      %s268 = smul.addr %s267, 8
      %s269 = scalar_lea.vmem %s7, %s268
      %s270 = smul.u32 2, %s18
      %p271 = scmp.lt.s32.totalorder %s270, 3
      %s272 = scalar_select %p271, %s270, 3
      %s273 = smul.addr %s272, 8
      %s274 = scalar_lea.vmem %s0, %s273
      %s275 = smul.u32 2, %s18
      %s276 = smul.u32 2, %s18
      %p277 = scmp.lt.s32.totalorder %s276, 3
      %s278 = scalar_select %p277, %s276, 3
      %s279 = smul.addr %s278, 8
      %s280 = scalar_lea.vmem %s7, %s279
      %s281 = smul.u32 2, %s18
      %v283 = vld [vmem:[%s274] sm:$0xff]
      %v284 = vld [vmem:[%s274 + $0x8] sm:$0xff]
      %vm285 = vcmask 261120
      %v286 = vsel %vm285, %v283, 0.0
      %287 = vadd.xlane.f32.xlu0 %v286
      %v288 = vpop.xlane.xlu0 %287
      %v289 = vsel %vm285, %v284, 0.0
      %290 = vadd.xlane.f32.xlu0 %v289
      %v291 = vpop.xlane.xlu0 %290
      %v292 = vrcp.pop 32.0
      %v293 = vmul.f32 %v288, %v292
      %v294 = vmul.f32 %v291, %v292
      %v295 = vsub.f32 %v283, %v293
      %v296 = vsub.f32 %v284, %v294
      %v297 = vmul.f32 %v295, %v295
      %v298 = vmul.f32 %v296, %v296
      %v299 = vsel %vm285, %v297, 0.0
      %300 = vadd.xlane.f32.xlu0 %v299
      %v301 = vpop.xlane.xlu0 %300
      %v302 = vsel %vm285, %v298, 0.0
      %303 = vadd.xlane.f32.xlu0 %v302
      %v304 = vpop.xlane.xlu0 %303
      %v305 = vmul.f32 %v301, %v292
      %v306 = vmul.f32 %v304, %v292
      %v307 = vadd.f32 %v305, 1e-05
      %v308 = vadd.f32 %v306, 1e-05
      %v309 = vrsqrt.pop %v307
      %v310 = vrsqrt.pop %v308
      %v311 = vmul.f32 %v295, %v309
      %v312 = vmul.f32 %v296, %v310
      %v313 = vld [vmem:[%s5] sm:$0x1]
      %v315 = vlaneseq
      %v316 = vshrl.u32 %v315, 7
      %v317 = vsub.s32 0, %v316
      %v318 = vrot.slane %v313, %v317
      %v320 = vmul.f32 %v311, %v318
      %v321 = vmul.f32 %v312, %v318
      %v322 = vld [vmem:[%s6] sm:$0x1]
      %v324 = vlaneseq
      %v325 = vshrl.u32 %v324, 7
      %v326 = vsub.s32 0, %v325
      %v327 = vrot.slane %v322, %v326
      %v329 = vadd.f32 %v320, %v327
      %v330 = vadd.f32 %v321, %v327
      %v331 = vpack.c.bf16 %v330, %v329
      %v332 = vld [vmem:[%s1] sm:$0xf]
      %v333 = vld [vmem:[%s1 + $0x4] sm:$0xf]
      %v334 = vld [vmem:[%s1 + $0x8] sm:$0xf]
      %v335 = vld [vmem:[%s1 + $0xc] sm:$0xf]
      %v336 = vld [vmem:[%s2] sm:$0x1]
      %v338 = vlaneseq
      %v339 = vshrl.u32 %v338, 7
      %v340 = vsub.s32 0, %v339
      %v341 = vrot.slane %v336, %v340
      %v347 = vunpack.c.l.b16 %v332
      %v348 = vunpack.c.l.b16 %v333
      %v349 = vunpack.c.l.b16 %v334
      %v350 = vunpack.c.l.b16 %v335
      %v351 = vpack.c.b16 %v348, %v347
      %v352 = vpack.c.b16 %v350, %v349
      %v356 = vsel %vm285, %v331, 0
      %358 = vmatprep.subr.bf16.mxu0 0
      %359 = vmatpush1.bf16.msra.mxu0 %v351
      %360 = vmatprep.subr.bf16.mxu0 0
      %361 = vmatpush1.bf16.msra.mxu0 %v352
      %362 = vmatprep.subr.bf16.mxu0 0
      %363 = vmatpush1.bf16.msra.mxu0 0
      %364 = vmatprep.subr.bf16.mxu0 0
      %365 = vmatpush1.bf16.msra.mxu0 0
      %366 = vmatprep.subr.bf16.mxu0 0
      %367 = vmatpush1.bf16.msra.mxu0 0
      %368 = vmatprep.subr.bf16.mxu0 0
      %369 = vmatpush1.bf16.msra.mxu0 0
      %370 = vmatprep.subr.bf16.mxu0 0
      %371 = vmatpush1.bf16.msra.mxu0 0
      %372 = vmatprep.subr.bf16.mxu0 0
      %373 = vmatpush1.bf16.msra.mxu0 0
      %374 = vmatprep.subr.bf16.mxu0 0
      %375 = vmatpush1.bf16.msra.mxu0 0
      %376 = vmatprep.subr.bf16.mxu0 0
      %377 = vmatpush1.bf16.msra.mxu0 0
      %378 = vmatprep.subr.bf16.mxu0 0
      %379 = vmatpush1.bf16.msra.mxu0 0
      %380 = vmatprep.subr.bf16.mxu0 0
      %381 = vmatpush1.bf16.msra.mxu0 0
      %382 = vmatprep.subr.bf16.mxu0 0
      %383 = vmatpush1.bf16.msra.mxu0 0
      %384 = vmatprep.subr.bf16.mxu0 0
      %385 = vmatpush1.bf16.msra.mxu0 0
      %386 = vmatprep.subr.bf16.mxu0 0
      %387 = vmatpush1.bf16.msra.mxu0 0
      %388 = vmatprep.subr.bf16.mxu0 0
      %389 = vmatpush1.bf16.msra.mxu0 0
      %390 = vmatprep.mubr.bf16.mxu0 0
      %391 = vmatmul.mubr.bf16.gmra.mrb[0].mxu0 %v356
      %v392 = vpop.f32.mrb[0].mxu0
      %v393 = vadd.f32 %v341, %v392
      %v394 = vpop.f32.mrb[0].mxu0
      %v395 = vpop.f32.mrb[0].mxu0
      %v396 = vadd.f32 %v341, %v395
      %v397 = vpop.f32.mrb[0].mxu0
      %398 = vdwg.mxu0
      %v399 = vmul.f32 %v393, 0.5
      %v400 = vmul.f32 %v396, 0.5
      %v401 = vmul.f32 %v393, 0.044715
      %v402 = vmul.f32 %v396, 0.044715
      %v403 = vmul.f32 %v401, %v393
      %v404 = vmul.f32 %v402, %v396
      %v405 = vmul.f32 %v403, %v393
      %v406 = vmul.f32 %v404, %v396
      %v407 = vadd.f32 %v393, %v405
      %v408 = vadd.f32 %v396, %v406
      %v409 = vmul.f32 %v407, 0.7978846
      %v410 = vmul.f32 %v408, 0.7978846
      %v411 = vtanh.pop %v409
      %v412 = vtanh.pop %v410
      %v413 = vadd.f32 %v411, 1.0
      %v414 = vadd.f32 %v412, 1.0
      %v415 = vmul.f32 %v399, %v413
      %v416 = vmul.f32 %v400, %v414
      %v417 = vpack.c.bf16 %v416, %v415
      %v418 = vld [vmem:[%s3] sm:$0xf]
      %v419 = vld [vmem:[%s3 + $0x4] sm:$0xf]
      %v420 = vld [vmem:[%s3 + $0x8] sm:$0xf]
      %v421 = vld [vmem:[%s3 + $0xc] sm:$0xf]
      %v422 = vld [vmem:[%s4] sm:$0x1]
      %v424 = vlaneseq
      %v425 = vshrl.u32 %v424, 7
      %v426 = vsub.s32 0, %v425
      %v427 = vrot.slane %v422, %v426
      %v433 = vunpack.c.l.b16 %v418
      %v434 = vunpack.c.l.b16 %v419
      %v435 = vunpack.c.l.b16 %v420
      %v436 = vunpack.c.l.b16 %v421
      %v437 = vpack.c.b16 %v434, %v433
      %v438 = vpack.c.b16 %v436, %v435
      %v442 = vsel %vm285, %v417, 0
      %444 = vmatprep.subr.bf16.mxu0 0
      %445 = vmatpush1.bf16.msra.mxu0 %v437
      %446 = vmatprep.subr.bf16.mxu0 0
      %447 = vmatpush1.bf16.msra.mxu0 %v438
      %448 = vmatprep.subr.bf16.mxu0 0
      %449 = vmatpush1.bf16.msra.mxu0 0
      %450 = vmatprep.subr.bf16.mxu0 0
      %451 = vmatpush1.bf16.msra.mxu0 0
      %452 = vmatprep.subr.bf16.mxu0 0
      %453 = vmatpush1.bf16.msra.mxu0 0
      %454 = vmatprep.subr.bf16.mxu0 0
      %455 = vmatpush1.bf16.msra.mxu0 0
      %456 = vmatprep.subr.bf16.mxu0 0
      %457 = vmatpush1.bf16.msra.mxu0 0
      %458 = vmatprep.subr.bf16.mxu0 0
      %459 = vmatpush1.bf16.msra.mxu0 0
      %460 = vmatprep.subr.bf16.mxu0 0
      %461 = vmatpush1.bf16.msra.mxu0 0
      %462 = vmatprep.subr.bf16.mxu0 0
      %463 = vmatpush1.bf16.msra.mxu0 0
      %464 = vmatprep.subr.bf16.mxu0 0
      %465 = vmatpush1.bf16.msra.mxu0 0
      %466 = vmatprep.subr.bf16.mxu0 0
      %467 = vmatpush1.bf16.msra.mxu0 0
      %468 = vmatprep.subr.bf16.mxu0 0
      %469 = vmatpush1.bf16.msra.mxu0 0
      %470 = vmatprep.subr.bf16.mxu0 0
      %471 = vmatpush1.bf16.msra.mxu0 0
      %472 = vmatprep.subr.bf16.mxu0 0
      %473 = vmatpush1.bf16.msra.mxu0 0
      %474 = vmatprep.subr.bf16.mxu0 0
      %475 = vmatpush1.bf16.msra.mxu0 0
      %476 = vmatprep.mubr.bf16.mxu0 0
      %477 = vmatmul.mubr.bf16.gmra.mrb[0].mxu0 %v442
      %v478 = vpop.f32.mrb[0].mxu0
      %v479 = vadd.f32 %v427, %v478
      %v480 = vpop.f32.mrb[0].mxu0
      %v481 = vpop.f32.mrb[0].mxu0
      %v482 = vadd.f32 %v427, %v481
      %v483 = vpop.f32.mrb[0].mxu0
      %484 = vdwg.mxu0
      %485 = vst [vmem:[%s280] sm:$0xff] %v479
      %486 = vst [vmem:[%s280 + $0x8] sm:$0xff] %v482
      %s487 = smul.u32 2, %s18
      %p488 = scmp.lt.s32.totalorder %s487, 3
      %s489 = scalar_select %p488, %s487, 3
      %s490 = smul.addr %s489, 8
      %s491 = scalar_lea.vmem %s7, %s490
      // Predicated region
      $region49: #{adaln_pint_forward.11} parent=47 // pred_check
        %p492 = pneg %p188
      $region50: #{adaln_pint_forward.11} parent=47 // pred_check_branch
        %494 = sbr.rel (%p492) target = $region52
      $region51: #{adaln_pint_forward.11} parent=47 // pred_region
        %s495 = smul.u32 2, %s18
      $region52: #{adaln_pint_forward.11} parent=47 // pred_fallthru
        _
    $region48: #{adaln_pint_forward.11} parent=5 // pred_fallthru
      _
    %p496 = scmp.le.s32.totalorder 2, %s13
    // Predicated region
    $region53: #{adaln_pint_forward.11} parent=5 // pred_check
      %p497 = pneg %p496
    $region54: #{adaln_pint_forward.11} parent=5 // pred_check_branch
      %499 = sbr.rel (%p497) target = $region56
    $region55: #{adaln_pint_forward.11} parent=5 // pred_region
      %s500 = ssub.s32 %s13, 2
      // Predicated region
      $region57: #{adaln_pint_forward.11} parent=55 // pred_check
        %p501 = pneg %p194
      $region58: #{adaln_pint_forward.11} parent=55 // pred_check_branch
        %503 = sbr.rel (%p501) target = $region60
      $region59: #{adaln_pint_forward.11} parent=55 // pred_region
        %s504 = smul.u32 2, %s19
        %p505 = scmp.lt.s32.totalorder %s504, 3
        %s506 = scalar_select %p505, %s504, 3
        %s507 = smul.addr %s506, 8
        %s508 = scalar_lea.vmem %s7, %s507
      $region60: #{adaln_pint_forward.11} parent=55 // pred_fallthru
        _
    $region56: #{adaln_pint_forward.11} parent=5 // pred_fallthru
      _
  $region6: #{adaln_pint_forward.11} parent=0 // loop_footer
    %s17 = sadd.s32 1, %s13
  $region7: #{adaln_pint_forward.11} parent=0 // loop_footer_branch
    %12 = sbr.rel target = $region3
  $region8: #{adaln_pint_forward.11} parent=0 // loop_exit
    _

// kernel: adaln_pint_forward.10
$region0: #{adaln_pint_forward.10}
  #allocation0 [shape = 'u32[]', space=smem, size = 0x4, offset = 0x4, fixed_abs, tag = 'smem constant byte address 0x4 - core index']
  #allocation1 [shape = 'u32[144,128]{1,0:T(1,128)}', space=vmem, size = 0x12000, scoped, tag = 'internal scratch']
  %s0 = inlined_call_operand.vmem [shape: f32[16,32], index: 0, kind: input, shape index: {}]
  %s1 = inlined_call_operand.vmem [shape: bf16[32,32], index: 1, kind: input, shape index: {}]
  %s2 = inlined_call_operand.vmem [shape: f32[1,32], index: 2, kind: input, shape index: {}]
  %s3 = inlined_call_operand.vmem [shape: bf16[32,128], index: 3, kind: input, shape index: {}]
  %s4 = inlined_call_operand.vmem [shape: f32[1,128], index: 4, kind: input, shape index: {}]
  %s5 = inlined_call_operand.vmem [shape: f32[1,32], index: 5, kind: input, shape index: {}]
  %s6 = inlined_call_operand.vmem [shape: f32[1,32], index: 6, kind: input, shape index: {}]
  %s7 = inlined_call_operand.vmem [shape: f32[16,128], index: 7, kind: output, shape index: {}]
  %s8 = sld [smem:[#allocation0]]
  $region61: #{adaln_pint_forward.10} parent=0
    _
  %s10 = ssub.s32 1, %s8
  %s11 = scalar_select 0, %s10, %s8
  loop: start=0, step=1, limit=4
  $region2: #{adaln_pint_forward.10} parent=0 // loop_pre_header
    _
  $region3: #{adaln_pint_forward.10} parent=0 // loop_header
    %s13 = sphi 0, %s17
    %p14 = scmp.ge.s32.totalorder %s13, 4
    %s23 = sphi 0, %s25
    %s26 = sphi 0, %s23
    %s27 = sphi 0, %s26
    %s43 = sphi 0, %s27
    %s47 = sphi 0, %s47
    %s49 = sphi 0, %s47
    %s50 = sphi 0, %s49
    %s64 = sphi 0, %s50
    %s68 = sphi 0, %s68
    %s70 = sphi 0, %s68
    %s71 = sphi 0, %s70
    %s85 = sphi 0, %s71
    %s89 = sphi 0, %s89
    %s91 = sphi 0, %s89
    %s92 = sphi 0, %s91
    %s106 = sphi 0, %s92
    %s110 = sphi 0, %s110
    %s112 = sphi 0, %s110
    %s113 = sphi 0, %s112
    %s127 = sphi 0, %s113
    %s131 = sphi 0, %s131
    %s133 = sphi 0, %s131
    %s134 = sphi 0, %s133
    %s148 = sphi 0, %s134
    %s152 = sphi 0, %s152
    %s154 = sphi 0, %s152
    %s155 = sphi 0, %s154
    %s169 = sphi 0, %s155
    %s175 = sphi 0, %s177
    %s178 = sphi 0, %s175
    %s179 = sphi 0, %s178
    %s195 = sphi 0, %s179
  $region4: #{adaln_pint_forward.10} parent=0 // loop_header_branch
    %16 = sbr.rel (%p14) target = $region8
  $region5: #{adaln_pint_forward.10} parent=0 // loop_body
    %s18 = ssub.s32 %s13, 1
    %s19 = ssub.s32 %s13, 2
    %s20 = sadd.s32 %s13, 1
    %s21 = ssub.s32 %s13, %s20
    %p22 = scmp.eq.s32.totalorder %s21, 0
    %s24 = sadd.s32 %s23, 1
    %s25 = scalar_select %p22, %s23, %s24
    %p28 = pneg %p22
    %p29 = scmp.eq.s32.totalorder %s13, 1
    %p30 = por %p28, %p29
    %p31 = scmp.ne.s32.totalorder %s23, %s26
    %p32 = scmp.eq.s32.totalorder %s13, 0
    %p33 = por %p31, %p32
    %p34 = scmp.ne.s32.totalorder %s23, %s26
    %p35 = scmp.eq.s32.totalorder %s18, 1
    %p36 = por %p34, %p35
    %p37 = scmp.ne.s32.totalorder %s26, %s27
    %p38 = scmp.eq.s32.totalorder %s18, 0
    %p39 = por %p37, %p38
    %p40 = scmp.ne.s32.totalorder %s26, %s27
    %p41 = scmp.eq.s32.totalorder %s19, 1
    %p42 = por %p40, %p41
    %p44 = scmp.ne.s32.totalorder %s27, %s43
    %p45 = scmp.eq.s32.totalorder %s19, 0
    %p46 = por %p44, %p45
    %s48 = sadd.s32 %s47, 1
    %p51 = scmp.eq.s32.totalorder %s13, 1
    %p52 = scmp.ne.s32.totalorder %s47, %s49
    %p53 = scmp.eq.s32.totalorder %s13, 0
    %p54 = por %p52, %p53
    %p55 = scmp.ne.s32.totalorder %s47, %s49
    %p56 = scmp.eq.s32.totalorder %s18, 1
    %p57 = por %p55, %p56
    %p58 = scmp.ne.s32.totalorder %s49, %s50
    %p59 = scmp.eq.s32.totalorder %s18, 0
    %p60 = por %p58, %p59
    %p61 = scmp.ne.s32.totalorder %s49, %s50
    %p62 = scmp.eq.s32.totalorder %s19, 1
    %p63 = por %p61, %p62
    %p65 = scmp.ne.s32.totalorder %s50, %s64
    %p66 = scmp.eq.s32.totalorder %s19, 0
    %p67 = por %p65, %p66
    %s69 = sadd.s32 %s68, 1
    %p72 = scmp.eq.s32.totalorder %s13, 1
    %p73 = scmp.ne.s32.totalorder %s68, %s70
    %p74 = scmp.eq.s32.totalorder %s13, 0
    %p75 = por %p73, %p74
    %p76 = scmp.ne.s32.totalorder %s68, %s70
    %p77 = scmp.eq.s32.totalorder %s18, 1
    %p78 = por %p76, %p77
    %p79 = scmp.ne.s32.totalorder %s70, %s71
    %p80 = scmp.eq.s32.totalorder %s18, 0
    %p81 = por %p79, %p80
    %p82 = scmp.ne.s32.totalorder %s70, %s71
    %p83 = scmp.eq.s32.totalorder %s19, 1
    %p84 = por %p82, %p83
    %p86 = scmp.ne.s32.totalorder %s71, %s85
    %p87 = scmp.eq.s32.totalorder %s19, 0
    %p88 = por %p86, %p87
    %s90 = sadd.s32 %s89, 1
    %p93 = scmp.eq.s32.totalorder %s13, 1
    %p94 = scmp.ne.s32.totalorder %s89, %s91
    %p95 = scmp.eq.s32.totalorder %s13, 0
    %p96 = por %p94, %p95
    %p97 = scmp.ne.s32.totalorder %s89, %s91
    %p98 = scmp.eq.s32.totalorder %s18, 1
    %p99 = por %p97, %p98
    %p100 = scmp.ne.s32.totalorder %s91, %s92
    %p101 = scmp.eq.s32.totalorder %s18, 0
    %p102 = por %p100, %p101
    %p103 = scmp.ne.s32.totalorder %s91, %s92
    %p104 = scmp.eq.s32.totalorder %s19, 1
    %p105 = por %p103, %p104
    %p107 = scmp.ne.s32.totalorder %s92, %s106
    %p108 = scmp.eq.s32.totalorder %s19, 0
    %p109 = por %p107, %p108
    %s111 = sadd.s32 %s110, 1
    %p114 = scmp.eq.s32.totalorder %s13, 1
    %p115 = scmp.ne.s32.totalorder %s110, %s112
    %p116 = scmp.eq.s32.totalorder %s13, 0
    %p117 = por %p115, %p116
    %p118 = scmp.ne.s32.totalorder %s110, %s112
    %p119 = scmp.eq.s32.totalorder %s18, 1
    %p120 = por %p118, %p119
    %p121 = scmp.ne.s32.totalorder %s112, %s113
    %p122 = scmp.eq.s32.totalorder %s18, 0
    %p123 = por %p121, %p122
    %p124 = scmp.ne.s32.totalorder %s112, %s113
    %p125 = scmp.eq.s32.totalorder %s19, 1
    %p126 = por %p124, %p125
    %p128 = scmp.ne.s32.totalorder %s113, %s127
    %p129 = scmp.eq.s32.totalorder %s19, 0
    %p130 = por %p128, %p129
    %s132 = sadd.s32 %s131, 1
    %p135 = scmp.eq.s32.totalorder %s13, 1
    %p136 = scmp.ne.s32.totalorder %s131, %s133
    %p137 = scmp.eq.s32.totalorder %s13, 0
    %p138 = por %p136, %p137
    %p139 = scmp.ne.s32.totalorder %s131, %s133
    %p140 = scmp.eq.s32.totalorder %s18, 1
    %p141 = por %p139, %p140
    %p142 = scmp.ne.s32.totalorder %s133, %s134
    %p143 = scmp.eq.s32.totalorder %s18, 0
    %p144 = por %p142, %p143
    %p145 = scmp.ne.s32.totalorder %s133, %s134
    %p146 = scmp.eq.s32.totalorder %s19, 1
    %p147 = por %p145, %p146
    %p149 = scmp.ne.s32.totalorder %s134, %s148
    %p150 = scmp.eq.s32.totalorder %s19, 0
    %p151 = por %p149, %p150
    %s153 = sadd.s32 %s152, 1
    %p156 = scmp.eq.s32.totalorder %s13, 1
    %p157 = scmp.ne.s32.totalorder %s152, %s154
    %p158 = scmp.eq.s32.totalorder %s13, 0
    %p159 = por %p157, %p158
    %p160 = scmp.ne.s32.totalorder %s152, %s154
    %p161 = scmp.eq.s32.totalorder %s18, 1
    %p162 = por %p160, %p161
    %p163 = scmp.ne.s32.totalorder %s154, %s155
    %p164 = scmp.eq.s32.totalorder %s18, 0
    %p165 = por %p163, %p164
    %p166 = scmp.ne.s32.totalorder %s154, %s155
    %p167 = scmp.eq.s32.totalorder %s19, 1
    %p168 = por %p166, %p167
    %p170 = scmp.ne.s32.totalorder %s155, %s169
    %p171 = scmp.eq.s32.totalorder %s19, 0
    %p172 = por %p170, %p171
    %s173 = ssub.s32 %s13, %s20
    %p174 = scmp.eq.s32.totalorder %s173, 0
    %s176 = sadd.s32 %s175, 1
    %s177 = scalar_select %p174, %s175, %s176
    %p180 = pneg %p174
    %p181 = scmp.eq.s32.totalorder %s13, 1
    %p182 = por %p180, %p181
    %p183 = scmp.ne.s32.totalorder %s175, %s178
    %p184 = scmp.eq.s32.totalorder %s13, 0
    %p185 = por %p183, %p184
    %p186 = scmp.ne.s32.totalorder %s175, %s178
    %p187 = scmp.eq.s32.totalorder %s18, 1
    %p188 = por %p186, %p187
    %p189 = scmp.ne.s32.totalorder %s178, %s179
    %p190 = scmp.eq.s32.totalorder %s18, 0
    %p191 = por %p189, %p190
    %p192 = scmp.ne.s32.totalorder %s178, %s179
    %p193 = scmp.eq.s32.totalorder %s19, 1
    %p194 = por %p192, %p193
    %p196 = scmp.ne.s32.totalorder %s179, %s195
    %p197 = scmp.eq.s32.totalorder %s19, 0
    %p198 = por %p196, %p197
    %p199 = scmp.le.s32.totalorder 1, %s13
    %p200 = scmp.lt.s32.totalorder %s13, 3
    %p201 = pnand %p199, %p200
    %p202 = pneg %p201
    // Predicated region
    $region9: #{adaln_pint_forward.10} parent=5 // pred_check
      _
    $region10: #{adaln_pint_forward.10} parent=5 // pred_check_branch
      %204 = sbr.rel (%p201) target = $region12
    $region11: #{adaln_pint_forward.10} parent=5 // pred_region
      %s205 = ssub.s32 %s13, 1
      // Predicated region
      $region13: #{adaln_pint_forward.10} parent=11 // pred_check
        %p206 = pneg %p60
      $region14: #{adaln_pint_forward.10} parent=11 // pred_check_branch
        %208 = sbr.rel (%p206) target = $region16
      $region15: #{adaln_pint_forward.10} parent=11 // pred_region
        _
      $region16: #{adaln_pint_forward.10} parent=11 // pred_fallthru
        _
      // Predicated region
      $region17: #{adaln_pint_forward.10} parent=11 // pred_check
        %p209 = pneg %p81
      $region18: #{adaln_pint_forward.10} parent=11 // pred_check_branch
        %211 = sbr.rel (%p209) target = $region20
      $region19: #{adaln_pint_forward.10} parent=11 // pred_region
        _
      $region20: #{adaln_pint_forward.10} parent=11 // pred_fallthru
        _
      // Predicated region
      $region21: #{adaln_pint_forward.10} parent=11 // pred_check
        %p212 = pneg %p102
      $region22: #{adaln_pint_forward.10} parent=11 // pred_check_branch
        %214 = sbr.rel (%p212) target = $region24
      $region23: #{adaln_pint_forward.10} parent=11 // pred_region
        _
      $region24: #{adaln_pint_forward.10} parent=11 // pred_fallthru
        _
      // Predicated region
      $region25: #{adaln_pint_forward.10} parent=11 // pred_check
        %p215 = pneg %p123
      $region26: #{adaln_pint_forward.10} parent=11 // pred_check_branch
        %217 = sbr.rel (%p215) target = $region28
      $region27: #{adaln_pint_forward.10} parent=11 // pred_region
        _
      $region28: #{adaln_pint_forward.10} parent=11 // pred_fallthru
        _
      // Predicated region
      $region29: #{adaln_pint_forward.10} parent=11 // pred_check
        %p218 = pneg %p144
      $region30: #{adaln_pint_forward.10} parent=11 // pred_check_branch
        %220 = sbr.rel (%p218) target = $region32
      $region31: #{adaln_pint_forward.10} parent=11 // pred_region
        _
      $region32: #{adaln_pint_forward.10} parent=11 // pred_fallthru
        _
      // Predicated region
      $region33: #{adaln_pint_forward.10} parent=11 // pred_check
        %p221 = pneg %p165
      $region34: #{adaln_pint_forward.10} parent=11 // pred_check_branch
        %223 = sbr.rel (%p221) target = $region36
      $region35: #{adaln_pint_forward.10} parent=11 // pred_region
        _
      $region36: #{adaln_pint_forward.10} parent=11 // pred_fallthru
        _
    $region12: #{adaln_pint_forward.10} parent=5 // pred_fallthru
      _
    %p224 = scmp.lt.s32.totalorder %s13, 2
    // Predicated region
    $region37: #{adaln_pint_forward.10} parent=5 // pred_check
      %p225 = pneg %p224
    $region38: #{adaln_pint_forward.10} parent=5 // pred_check_branch
      %227 = sbr.rel (%p225) target = $region40
    $region39: #{adaln_pint_forward.10} parent=5 // pred_region
      // Predicated region
      $region41: #{adaln_pint_forward.10} parent=39 // pred_check
        %p228 = pneg %p33
      $region42: #{adaln_pint_forward.10} parent=39 // pred_check_branch
        %230 = sbr.rel (%p228) target = $region44
      $region43: #{adaln_pint_forward.10} parent=39 // pred_region
        %p231 = scmp.lt.s32.totalorder %s13, 1
        %s232 = scalar_select %p231, %s13, 1
        %s233 = smul.addr %s232, 8
        %s234 = scalar_lea.vmem %s0, %s233
      $region44: #{adaln_pint_forward.10} parent=39 // pred_fallthru
        _
    $region40: #{adaln_pint_forward.10} parent=5 // pred_fallthru
      _
    %p235 = scmp.le.s32.totalorder 1, %s13
    %p236 = scmp.lt.s32.totalorder %s13, 3
    %p237 = pnand %p235, %p236
    %p238 = pneg %p237
    // Predicated region
    $region45: #{adaln_pint_forward.10} parent=5 // pred_check
      _
    $region46: #{adaln_pint_forward.10} parent=5 // pred_check_branch
      %240 = sbr.rel (%p237) target = $region48
    $region47: #{adaln_pint_forward.10} parent=5 // pred_region
      %s241 = ssub.s32 %s13, 1
      %p242 = scmp.lt.s32.totalorder %s18, 1
      %s243 = scalar_select %p242, %s18, 1
      %s244 = smul.addr %s243, 8
      %s245 = scalar_lea.vmem %s0, %s244
      %p246 = pneg %p39
      %p247 = pneg %p36
      %p248 = pneg %p60
      %p249 = pneg %p57
      %p250 = pneg %p81
      %p251 = pneg %p78
      %p252 = pneg %p102
      %p253 = pneg %p99
      %p254 = pneg %p123
      %p255 = pneg %p120
      %p256 = pneg %p144
      %p257 = pneg %p141
      %p258 = pneg %p165
      %p259 = pneg %p162
      %p260 = pneg %p191
      %p261 = pneg %p188
      %p262 = scmp.lt.s32.totalorder %s18, 1
      %s263 = scalar_select %p262, %s18, 1
      %s264 = smul.addr %s263, 8
      %s265 = scalar_lea.vmem %s7, %s264
      %p266 = scmp.lt.s32.totalorder %s18, 1
      %s267 = scalar_select %p266, %s18, 1
      %s268 = smul.addr %s267, 8
      %s269 = scalar_lea.vmem %s0, %s268
      %p270 = scmp.lt.s32.totalorder %s18, 1
      %s271 = scalar_select %p270, %s18, 1
      %s272 = smul.addr %s271, 8
      %s273 = scalar_lea.vmem %s7, %s272
      %v275 = vld [vmem:[%s269] sm:$0xff]
      %vm276 = vcmask 261120
      %v277 = vsel %vm276, %v275, 0.0
      %278 = vadd.xlane.f32.xlu0 %v277
      %v279 = vpop.xlane.xlu0 %278
      %v280 = vrcp.pop 32.0
      %v281 = vmul.f32 %v279, %v280
      %v282 = vsub.f32 %v275, %v281
      %v283 = vmul.f32 %v282, %v282
      %v284 = vsel %vm276, %v283, 0.0
      %285 = vadd.xlane.f32.xlu0 %v284
      %v286 = vpop.xlane.xlu0 %285
      %v287 = vmul.f32 %v286, %v280
      %v288 = vadd.f32 %v287, 1e-05
      %v289 = vrsqrt.pop %v288
      %v290 = vmul.f32 %v282, %v289
      %v291 = vld [vmem:[%s5] sm:$0x1]
      %v293 = vlaneseq
      %v294 = vshrl.u32 %v293, 7
      %v295 = vsub.s32 0, %v294
      %v296 = vrot.slane %v291, %v295
      %v298 = vmul.f32 %v290, %v296
      %v299 = vld [vmem:[%s6] sm:$0x1]
      %v301 = vlaneseq
      %v302 = vshrl.u32 %v301, 7
      %v303 = vsub.s32 0, %v302
      %v304 = vrot.slane %v299, %v303
      %v306 = vadd.f32 %v298, %v304
      %v307 = vpack.c.bf16 %v306, %v306
      %v308 = vld [vmem:[%s1] sm:$0xf]
      %v309 = vld [vmem:[%s1 + $0x4] sm:$0xf]
      %v310 = vld [vmem:[%s1 + $0x8] sm:$0xf]
      %v311 = vld [vmem:[%s1 + $0xc] sm:$0xf]
      %v312 = vld [vmem:[%s2] sm:$0x1]
      %v314 = vlaneseq
      %v315 = vshrl.u32 %v314, 7
      %v316 = vsub.s32 0, %v315
      %v317 = vrot.slane %v312, %v316
      %v323 = vunpack.c.l.b16 %v308
      %v324 = vunpack.c.l.b16 %v309
      %v325 = vunpack.c.l.b16 %v310
      %v326 = vunpack.c.l.b16 %v311
      %v327 = vpack.c.b16 %v324, %v323
      %v328 = vpack.c.b16 %v326, %v325
      %v332 = vsel %vm276, %v307, 0
      %334 = vmatprep.subr.bf16.mxu0 0
      %335 = vmatpush1.bf16.msra.mxu0 %v327
      %336 = vmatprep.subr.bf16.mxu0 0
      %337 = vmatpush1.bf16.msra.mxu0 %v328
      %338 = vmatprep.subr.bf16.mxu0 0
      %339 = vmatpush1.bf16.msra.mxu0 0
      %340 = vmatprep.subr.bf16.mxu0 0
      %341 = vmatpush1.bf16.msra.mxu0 0
      %342 = vmatprep.subr.bf16.mxu0 0
      %343 = vmatpush1.bf16.msra.mxu0 0
      %344 = vmatprep.subr.bf16.mxu0 0
      %345 = vmatpush1.bf16.msra.mxu0 0
      %346 = vmatprep.subr.bf16.mxu0 0
      %347 = vmatpush1.bf16.msra.mxu0 0
      %348 = vmatprep.subr.bf16.mxu0 0
      %349 = vmatpush1.bf16.msra.mxu0 0
      %350 = vmatprep.subr.bf16.mxu0 0
      %351 = vmatpush1.bf16.msra.mxu0 0
      %352 = vmatprep.subr.bf16.mxu0 0
      %353 = vmatpush1.bf16.msra.mxu0 0
      %354 = vmatprep.subr.bf16.mxu0 0
      %355 = vmatpush1.bf16.msra.mxu0 0
      %356 = vmatprep.subr.bf16.mxu0 0
      %357 = vmatpush1.bf16.msra.mxu0 0
      %358 = vmatprep.subr.bf16.mxu0 0
      %359 = vmatpush1.bf16.msra.mxu0 0
      %360 = vmatprep.subr.bf16.mxu0 0
      %361 = vmatpush1.bf16.msra.mxu0 0
      %362 = vmatprep.subr.bf16.mxu0 0
      %363 = vmatpush1.bf16.msra.mxu0 0
      %364 = vmatprep.subr.bf16.mxu0 0
      %365 = vmatpush1.bf16.msra.mxu0 0
      %366 = vmatprep.mubr.bf16.mxu0 0
      %367 = vmatmul.mubr.bf16.gmra.mrb[0].mxu0 %v332
      %v368 = vpop.f32.mrb[0].mxu0
      %v369 = vadd.f32 %v317, %v368
      %v370 = vpop.f32.mrb[0].mxu0
      %v371 = vpop.f32.mrb[0].mxu0
      %v372 = vpop.f32.mrb[0].mxu0
      %373 = vdwg.mxu0
      %v374 = vmul.f32 %v369, 0.5
      %v375 = vmul.f32 %v369, 0.044715
      %v376 = vmul.f32 %v375, %v369
      %v377 = vmul.f32 %v376, %v369
      %v378 = vadd.f32 %v369, %v377
      %v379 = vmul.f32 %v378, 0.7978846
      %v380 = vtanh.pop %v379
      %v381 = vadd.f32 %v380, 1.0
      %v382 = vmul.f32 %v374, %v381
      %v383 = vpack.c.bf16 %v382, %v382
      %v384 = vld [vmem:[%s3] sm:$0xf]
      %v385 = vld [vmem:[%s3 + $0x4] sm:$0xf]
      %v386 = vld [vmem:[%s3 + $0x8] sm:$0xf]
      %v387 = vld [vmem:[%s3 + $0xc] sm:$0xf]
      %v388 = vld [vmem:[%s4] sm:$0x1]
      %v390 = vlaneseq
      %v391 = vshrl.u32 %v390, 7
      %v392 = vsub.s32 0, %v391
      %v393 = vrot.slane %v388, %v392
      %v399 = vunpack.c.l.b16 %v384
      %v400 = vunpack.c.l.b16 %v385
      %v401 = vunpack.c.l.b16 %v386
      %v402 = vunpack.c.l.b16 %v387
      %v403 = vpack.c.b16 %v400, %v399
      %v404 = vpack.c.b16 %v402, %v401
      %v408 = vsel %vm276, %v383, 0
      %410 = vmatprep.subr.bf16.mxu0 0
      %411 = vmatpush1.bf16.msra.mxu0 %v403
      %412 = vmatprep.subr.bf16.mxu0 0
      %413 = vmatpush1.bf16.msra.mxu0 %v404
      %414 = vmatprep.subr.bf16.mxu0 0
      %415 = vmatpush1.bf16.msra.mxu0 0
      %416 = vmatprep.subr.bf16.mxu0 0
      %417 = vmatpush1.bf16.msra.mxu0 0
      %418 = vmatprep.subr.bf16.mxu0 0
      %419 = vmatpush1.bf16.msra.mxu0 0
      %420 = vmatprep.subr.bf16.mxu0 0
      %421 = vmatpush1.bf16.msra.mxu0 0
      %422 = vmatprep.subr.bf16.mxu0 0
      %423 = vmatpush1.bf16.msra.mxu0 0
      %424 = vmatprep.subr.bf16.mxu0 0
      %425 = vmatpush1.bf16.msra.mxu0 0
      %426 = vmatprep.subr.bf16.mxu0 0
      %427 = vmatpush1.bf16.msra.mxu0 0
      %428 = vmatprep.subr.bf16.mxu0 0
      %429 = vmatpush1.bf16.msra.mxu0 0
      %430 = vmatprep.subr.bf16.mxu0 0
      %431 = vmatpush1.bf16.msra.mxu0 0
      %432 = vmatprep.subr.bf16.mxu0 0
      %433 = vmatpush1.bf16.msra.mxu0 0
      %434 = vmatprep.subr.bf16.mxu0 0
      %435 = vmatpush1.bf16.msra.mxu0 0
      %436 = vmatprep.subr.bf16.mxu0 0
      %437 = vmatpush1.bf16.msra.mxu0 0
      %438 = vmatprep.subr.bf16.mxu0 0
      %439 = vmatpush1.bf16.msra.mxu0 0
      %440 = vmatprep.subr.bf16.mxu0 0
      %441 = vmatpush1.bf16.msra.mxu0 0
      %442 = vmatprep.mubr.bf16.mxu0 0
      %443 = vmatmul.mubr.bf16.gmra.mrb[0].mxu0 %v408
      %v444 = vpop.f32.mrb[0].mxu0
      %v445 = vadd.f32 %v393, %v444
      %v446 = vpop.f32.mrb[0].mxu0
      %v447 = vpop.f32.mrb[0].mxu0
      %v448 = vpop.f32.mrb[0].mxu0
      %449 = vdwg.mxu0
      %450 = vst [vmem:[%s273] sm:$0xff] %v445
      %p451 = scmp.lt.s32.totalorder %s18, 1
      %s452 = scalar_select %p451, %s18, 1
      %s453 = smul.addr %s452, 8
      %s454 = scalar_lea.vmem %s7, %s453
      // Predicated region
      $region49: #{adaln_pint_forward.10} parent=47 // pred_check
        %p455 = pneg %p188
      $region50: #{adaln_pint_forward.10} parent=47 // pred_check_branch
        %457 = sbr.rel (%p455) target = $region52
      $region51: #{adaln_pint_forward.10} parent=47 // pred_region
        _
      $region52: #{adaln_pint_forward.10} parent=47 // pred_fallthru
        _
    $region48: #{adaln_pint_forward.10} parent=5 // pred_fallthru
      _
    %p458 = scmp.le.s32.totalorder 2, %s13
    // Predicated region
    $region53: #{adaln_pint_forward.10} parent=5 // pred_check
      %p459 = pneg %p458
    $region54: #{adaln_pint_forward.10} parent=5 // pred_check_branch
      %461 = sbr.rel (%p459) target = $region56
    $region55: #{adaln_pint_forward.10} parent=5 // pred_region
      %s462 = ssub.s32 %s13, 2
      // Predicated region
      $region57: #{adaln_pint_forward.10} parent=55 // pred_check
        %p463 = pneg %p194
      $region58: #{adaln_pint_forward.10} parent=55 // pred_check_branch
        %465 = sbr.rel (%p463) target = $region60
      $region59: #{adaln_pint_forward.10} parent=55 // pred_region
        %p466 = scmp.lt.s32.totalorder %s19, 1
        %s467 = scalar_select %p466, %s19, 1
        %s468 = smul.addr %s467, 8
        %s469 = scalar_lea.vmem %s7, %s468
      $region60: #{adaln_pint_forward.10} parent=55 // pred_fallthru
        _
    $region56: #{adaln_pint_forward.10} parent=5 // pred_fallthru
      _
  $region6: #{adaln_pint_forward.10} parent=0 // loop_footer
    %s17 = sadd.s32 1, %s13
  $region7: #{adaln_pint_forward.10} parent=0 // loop_footer_branch
    %12 = sbr.rel target = $region3
  $region8: #{adaln_pint_forward.10} parent=0 // loop_exit
    _

// kernel: adaln_pint_forward.9
$region0: #{adaln_pint_forward.9}
  #allocation0 [shape = 'u32[]', space=smem, size = 0x4, offset = 0x4, fixed_abs, tag = 'smem constant byte address 0x4 - core index']
  #allocation1 [shape = 'u32[144,128]{1,0:T(1,128)}', space=vmem, size = 0x12000, scoped, tag = 'internal scratch']
  %s0 = inlined_call_operand.hbm [shape: f32[2,24,32], index: 0, kind: input, shape index: {}, may-alias: {0,11}]
  %s1 = inlined_call_operand.hbm [shape: f32[4,6,32], index: 1, kind: input, shape index: {}]
  %s2 = inlined_call_operand.hbm [shape: f32[8,24,24], index: 2, kind: input, shape index: {}]
  %s3 = inlined_call_operand.hbm [shape: bf16[2,32,96], index: 3, kind: input, shape index: {}]
  %s4 = inlined_call_operand.hbm [shape: f32[2,1,96], index: 4, kind: input, shape index: {}]
  %s5 = inlined_call_operand.hbm [shape: bf16[2,32,32], index: 5, kind: input, shape index: {}]
  %s6 = inlined_call_operand.hbm [shape: f32[2,1,32], index: 6, kind: input, shape index: {}]
  %s7 = inlined_call_operand.hbm [shape: bf16[2,32,128], index: 7, kind: input, shape index: {}]
  %s8 = inlined_call_operand.hbm [shape: f32[2,1,128], index: 8, kind: input, shape index: {}]
  %s9 = inlined_call_operand.hbm [shape: bf16[2,128,32], index: 9, kind: input, shape index: {}]
  %s10 = inlined_call_operand.hbm [shape: f32[2,1,32], index: 10, kind: input, shape index: {}]
  %s11 = inlined_call_operand.hbm [shape: f32[2,24,32], index: 11, kind: output, shape index: {}, may-alias: {0,11}]
  %s12 = sld [smem:[#allocation0]]
  $region125: #{adaln_pint_forward.9} parent=0
    _
  %s14 = ssub.s32 1, %s12
  %s15 = scalar_select 0, %s14, %s12
  $region1: #{adaln_pint_forward.9} parent=0
    #allocation2 [shape = 'u8[24576]{0}', space=vmem, size = 0x6000, scoped, tag = 'input window, operand 0']
    #allocation3 [shape = 's32[2]{0}', space=sflag, size = 0x8, scoped, tag = 'scoped memory for adaln_pint_forward.9']
    #allocation4 [shape = 's32[2]{0}', space=sflag, size = 0x8, scoped, tag = 'scoped memory for adaln_pint_forward.9']
    #allocation5 [shape = 'u8[8192]{0}', space=vmem, size = 0x2000, scoped, tag = 'input window, operand 1']
    #allocation6 [shape = 's32[2]{0}', space=sflag, size = 0x8, scoped, tag = 'scoped memory for adaln_pint_forward.9']
    #allocation7 [shape = 'u8[98304]{0}', space=vmem, size = 0x18000, scoped, tag = 'input window, operand 2']
    #allocation8 [shape = 'u8[16384]{0}', space=vmem, size = 0x4000, scoped, tag = 'input window, operand 3']
    #allocation9 [shape = 's32[2]{0}', space=sflag, size = 0x8, scoped, tag = 'scoped memory for adaln_pint_forward.9']
    #allocation10 [shape = 'u8[1024]{0}', space=vmem, size = 0x400, scoped, tag = 'input window, operand 4']
    #allocation11 [shape = 'u8[16384]{0}', space=vmem, size = 0x4000, scoped, tag = 'input window, operand 5']
    #allocation12 [shape = 's32[2]{0}', space=sflag, size = 0x8, scoped, tag = 'scoped memory for adaln_pint_forward.9']
    #allocation13 [shape = 'u8[1024]{0}', space=vmem, size = 0x400, scoped, tag = 'input window, operand 6']
    #allocation14 [shape = 'u8[16384]{0}', space=vmem, size = 0x4000, scoped, tag = 'input window, operand 7']
    #allocation15 [shape = 's32[2]{0}', space=sflag, size = 0x8, scoped, tag = 'scoped memory for adaln_pint_forward.9']
    #allocation16 [shape = 'u8[1024]{0}', space=vmem, size = 0x400, scoped, tag = 'input window, operand 8']
    #allocation17 [shape = 'u8[65536]{0}', space=vmem, size = 0x10000, scoped, tag = 'input window, operand 9']
    #allocation18 [shape = 's32[2]{0}', space=sflag, size = 0x8, scoped, tag = 'scoped memory for adaln_pint_forward.9']
    #allocation19 [shape = 'u8[1024]{0}', space=vmem, size = 0x400, scoped, tag = 'input window, operand 10']
    #allocation20 [shape = 'u8[24576]{0}', space=vmem, size = 0x6000, scoped, tag = 'output window, operand 0']
    %16 = vsyncpa [#allocation3], 0
    %s17 = scalar_lea.sflag [#allocation3], 1
    %18 = vsyncpa %s17, 0
    %19 = vsyncpa [#allocation6], 0
    %s20 = scalar_lea.sflag [#allocation6], 1
    %21 = vsyncpa %s20, 0
    %22 = vsyncpa [#allocation9], 0
    %s23 = scalar_lea.sflag [#allocation9], 1
    %24 = vsyncpa %s23, 0
    %25 = vsyncpa [#allocation12], 0
    %s26 = scalar_lea.sflag [#allocation12], 1
    %27 = vsyncpa %s26, 0
    %28 = vsyncpa [#allocation15], 0
    %s29 = scalar_lea.sflag [#allocation15], 1
    %30 = vsyncpa %s29, 0
    %31 = vsyncpa [#allocation18], 0
    %s32 = scalar_lea.sflag [#allocation18], 1
    %33 = vsyncpa %s32, 0
    %34 = vsyncpa [#allocation4], 0
    %s35 = scalar_lea.sflag [#allocation4], 1
    %36 = vsyncpa %s35, 0
    loop: start=0, step=1, limit=6
    $region2: #{adaln_pint_forward.9} parent=1 // loop_pre_header
      _
    $region3: #{adaln_pint_forward.9} parent=1 // loop_header
      %s38 = sphi 0, %s42
      %p39 = scmp.ge.s32.totalorder %s38, 6
      %s45 = sphi 0, %s57
      %s46 = sphi 0, %s53
      %s47 = sphi 0, %s45
      %s48 = sphi 0, %s46
      %s49 = sphi 0, %s47
      %s50 = sphi 0, %s48
      %s60 = sphi 0, %s62
      %s63 = sphi 0, %s60
      %s64 = sphi 0, %s63
      %s80 = sphi 0, %s64
      %s90 = sphi 0, %s92
      %s93 = sphi 0, %s90
      %s94 = sphi 0, %s93
      %s110 = sphi 0, %s94
      %s116 = sphi 0, %s118
      %s119 = sphi 0, %s116
      %s120 = sphi 0, %s119
      %s136 = sphi 0, %s120
      %s142 = sphi 0, %s144
      %s145 = sphi 0, %s142
      %s146 = sphi 0, %s145
      %s162 = sphi 0, %s146
      %s168 = sphi 0, %s170
      %s171 = sphi 0, %s168
      %s172 = sphi 0, %s171
      %s188 = sphi 0, %s172
      %s194 = sphi 0, %s196
      %s197 = sphi 0, %s194
      %s198 = sphi 0, %s197
      %s214 = sphi 0, %s198
      %s220 = sphi 0, %s222
      %s223 = sphi 0, %s220
      %s224 = sphi 0, %s223
      %s240 = sphi 0, %s224
      %s246 = sphi 0, %s248
      %s249 = sphi 0, %s246
      %s250 = sphi 0, %s249
      %s266 = sphi 0, %s250
      %s272 = sphi 0, %s274
      %s275 = sphi 0, %s272
      %s276 = sphi 0, %s275
      %s292 = sphi 0, %s276
      %s298 = sphi 0, %s300
      %s301 = sphi 0, %s298
      %s302 = sphi 0, %s301
      %s318 = sphi 0, %s302
      %s324 = sphi 0, %s326
      %s327 = sphi 0, %s324
      %s328 = sphi 0, %s327
      %s344 = sphi 0, %s328
      %s350 = sphi 0, %s352
      %s353 = sphi 0, %s350
      %s354 = sphi 0, %s353
      %s370 = sphi 0, %s354
    $region4: #{adaln_pint_forward.9} parent=1 // loop_header_branch
      %41 = sbr.rel (%p39) target = $region8
    $region5: #{adaln_pint_forward.9} parent=1 // loop_body
      %s43 = ssub.s32 %s38, 1
      %s44 = ssub.s32 %s38, 2
      %s51 = sadd.s32 1, %s46
      %p52 = scmp.ge.s32.totalorder %s51, 2
      %s53 = scalar_select %p52, 0, %s51
      %s54 = sadd.s32 1, %s45
      %s55 = scalar_select %p52, %s54, %s45
      %p56 = scmp.ge.s32.totalorder %s55, 2
      %s57 = scalar_select %p56, 0, %s55
      %s58 = ssub.s32 %s45, %s57
      %p59 = scmp.eq.s32.totalorder %s58, 0
      %s61 = sadd.s32 %s60, 1
      %s62 = scalar_select %p59, %s60, %s61
      %p65 = pneg %p59
      %p66 = scmp.eq.s32.totalorder %s38, 3
      %p67 = por %p65, %p66
      %p68 = scmp.ne.s32.totalorder %s60, %s63
      %p69 = scmp.eq.s32.totalorder %s38, 0
      %p70 = por %p68, %p69
      %p71 = scmp.ne.s32.totalorder %s60, %s63
      %p72 = scmp.eq.s32.totalorder %s43, 3
      %p73 = por %p71, %p72
      %p74 = scmp.ne.s32.totalorder %s63, %s64
      %p75 = scmp.eq.s32.totalorder %s43, 0
      %p76 = por %p74, %p75
      %p77 = scmp.ne.s32.totalorder %s63, %s64
      %p78 = scmp.eq.s32.totalorder %s44, 3
      %p79 = por %p77, %p78
      %p81 = scmp.ne.s32.totalorder %s64, %s80
      %p82 = scmp.eq.s32.totalorder %s44, 0
      %p83 = por %p81, %p82
      %s84 = smul.u32 %s46, 2
      %s85 = sadd.s32 %s84, %s45
      %s86 = smul.u32 %s53, 2
      %s87 = sadd.s32 %s86, %s57
      %s88 = ssub.s32 %s85, %s87
      %p89 = scmp.eq.s32.totalorder %s88, 0
      %s91 = sadd.s32 %s90, 1
      %s92 = scalar_select %p89, %s90, %s91
      %p95 = pneg %p89
      %p96 = scmp.eq.s32.totalorder %s38, 3
      %p97 = por %p95, %p96
      %p98 = scmp.ne.s32.totalorder %s90, %s93
      %p99 = scmp.eq.s32.totalorder %s38, 0
      %p100 = por %p98, %p99
      %p101 = scmp.ne.s32.totalorder %s90, %s93
      %p102 = scmp.eq.s32.totalorder %s43, 3
      %p103 = por %p101, %p102
      %p104 = scmp.ne.s32.totalorder %s93, %s94
      %p105 = scmp.eq.s32.totalorder %s43, 0
      %p106 = por %p104, %p105
      %p107 = scmp.ne.s32.totalorder %s93, %s94
      %p108 = scmp.eq.s32.totalorder %s44, 3
      %p109 = por %p107, %p108
      %p111 = scmp.ne.s32.totalorder %s94, %s110
      %p112 = scmp.eq.s32.totalorder %s44, 0
      %p113 = por %p111, %p112
      %s114 = ssub.s32 %s46, %s53
      %p115 = scmp.eq.s32.totalorder %s114, 0
      %s117 = sadd.s32 %s116, 1
      %s118 = scalar_select %p115, %s116, %s117
      %p121 = pneg %p115
      %p122 = scmp.eq.s32.totalorder %s38, 3
      %p123 = por %p121, %p122
      %p124 = scmp.ne.s32.totalorder %s116, %s119
      %p125 = scmp.eq.s32.totalorder %s38, 0
      %p126 = por %p124, %p125
      %p127 = scmp.ne.s32.totalorder %s116, %s119
      %p128 = scmp.eq.s32.totalorder %s43, 3
      %p129 = por %p127, %p128
      %p130 = scmp.ne.s32.totalorder %s119, %s120
      %p131 = scmp.eq.s32.totalorder %s43, 0
      %p132 = por %p130, %p131
      %p133 = scmp.ne.s32.totalorder %s119, %s120
      %p134 = scmp.eq.s32.totalorder %s44, 3
      %p135 = por %p133, %p134
      %p137 = scmp.ne.s32.totalorder %s120, %s136
      %p138 = scmp.eq.s32.totalorder %s44, 0
      %p139 = por %p137, %p138
      %s140 = ssub.s32 %s46, %s53
      %p141 = scmp.eq.s32.totalorder %s140, 0
      %s143 = sadd.s32 %s142, 1
      %s144 = scalar_select %p141, %s142, %s143
      %p147 = pneg %p141
      %p148 = scmp.eq.s32.totalorder %s38, 3
      %p149 = por %p147, %p148
      %p150 = scmp.ne.s32.totalorder %s142, %s145
      %p151 = scmp.eq.s32.totalorder %s38, 0
      %p152 = por %p150, %p151
      %p153 = scmp.ne.s32.totalorder %s142, %s145
      %p154 = scmp.eq.s32.totalorder %s43, 3
      %p155 = por %p153, %p154
      %p156 = scmp.ne.s32.totalorder %s145, %s146
      %p157 = scmp.eq.s32.totalorder %s43, 0
      %p158 = por %p156, %p157
      %p159 = scmp.ne.s32.totalorder %s145, %s146
      %p160 = scmp.eq.s32.totalorder %s44, 3
      %p161 = por %p159, %p160
      %p163 = scmp.ne.s32.totalorder %s146, %s162
      %p164 = scmp.eq.s32.totalorder %s44, 0
      %p165 = por %p163, %p164
      %s166 = ssub.s32 %s46, %s53
      %p167 = scmp.eq.s32.totalorder %s166, 0
      %s169 = sadd.s32 %s168, 1
      %s170 = scalar_select %p167, %s168, %s169
      %p173 = pneg %p167
      %p174 = scmp.eq.s32.totalorder %s38, 3
      %p175 = por %p173, %p174
      %p176 = scmp.ne.s32.totalorder %s168, %s171
      %p177 = scmp.eq.s32.totalorder %s38, 0
      %p178 = por %p176, %p177
      %p179 = scmp.ne.s32.totalorder %s168, %s171
      %p180 = scmp.eq.s32.totalorder %s43, 3
      %p181 = por %p179, %p180
      %p182 = scmp.ne.s32.totalorder %s171, %s172
      %p183 = scmp.eq.s32.totalorder %s43, 0
      %p184 = por %p182, %p183
      %p185 = scmp.ne.s32.totalorder %s171, %s172
      %p186 = scmp.eq.s32.totalorder %s44, 3
      %p187 = por %p185, %p186
      %p189 = scmp.ne.s32.totalorder %s172, %s188
      %p190 = scmp.eq.s32.totalorder %s44, 0
      %p191 = por %p189, %p190
      %s192 = ssub.s32 %s46, %s53
      %p193 = scmp.eq.s32.totalorder %s192, 0
      %s195 = sadd.s32 %s194, 1
      %s196 = scalar_select %p193, %s194, %s195
      %p199 = pneg %p193
      %p200 = scmp.eq.s32.totalorder %s38, 3
      %p201 = por %p199, %p200
      %p202 = scmp.ne.s32.totalorder %s194, %s197
      %p203 = scmp.eq.s32.totalorder %s38, 0
      %p204 = por %p202, %p203
      %p205 = scmp.ne.s32.totalorder %s194, %s197
      %p206 = scmp.eq.s32.totalorder %s43, 3
      %p207 = por %p205, %p206
      %p208 = scmp.ne.s32.totalorder %s197, %s198
      %p209 = scmp.eq.s32.totalorder %s43, 0
      %p210 = por %p208, %p209
      %p211 = scmp.ne.s32.totalorder %s197, %s198
      %p212 = scmp.eq.s32.totalorder %s44, 3
      %p213 = por %p211, %p212
      %p215 = scmp.ne.s32.totalorder %s198, %s214
      %p216 = scmp.eq.s32.totalorder %s44, 0
      %p217 = por %p215, %p216
      %s218 = ssub.s32 %s46, %s53
      %p219 = scmp.eq.s32.totalorder %s218, 0
      %s221 = sadd.s32 %s220, 1
      %s222 = scalar_select %p219, %s220, %s221
      %p225 = pneg %p219
      %p226 = scmp.eq.s32.totalorder %s38, 3
      %p227 = por %p225, %p226
      %p228 = scmp.ne.s32.totalorder %s220, %s223
      %p229 = scmp.eq.s32.totalorder %s38, 0
      %p230 = por %p228, %p229
      %p231 = scmp.ne.s32.totalorder %s220, %s223
      %p232 = scmp.eq.s32.totalorder %s43, 3
      %p233 = por %p231, %p232
      %p234 = scmp.ne.s32.totalorder %s223, %s224
      %p235 = scmp.eq.s32.totalorder %s43, 0
      %p236 = por %p234, %p235
      %p237 = scmp.ne.s32.totalorder %s223, %s224
      %p238 = scmp.eq.s32.totalorder %s44, 3
      %p239 = por %p237, %p238
      %p241 = scmp.ne.s32.totalorder %s224, %s240
      %p242 = scmp.eq.s32.totalorder %s44, 0
      %p243 = por %p241, %p242
      %s244 = ssub.s32 %s46, %s53
      %p245 = scmp.eq.s32.totalorder %s244, 0
      %s247 = sadd.s32 %s246, 1
      %s248 = scalar_select %p245, %s246, %s247
      %p251 = pneg %p245
      %p252 = scmp.eq.s32.totalorder %s38, 3
      %p253 = por %p251, %p252
      %p254 = scmp.ne.s32.totalorder %s246, %s249
      %p255 = scmp.eq.s32.totalorder %s38, 0
      %p256 = por %p254, %p255
      %p257 = scmp.ne.s32.totalorder %s246, %s249
      %p258 = scmp.eq.s32.totalorder %s43, 3
      %p259 = por %p257, %p258
      %p260 = scmp.ne.s32.totalorder %s249, %s250
      %p261 = scmp.eq.s32.totalorder %s43, 0
      %p262 = por %p260, %p261
      %p263 = scmp.ne.s32.totalorder %s249, %s250
      %p264 = scmp.eq.s32.totalorder %s44, 3
      %p265 = por %p263, %p264
      %p267 = scmp.ne.s32.totalorder %s250, %s266
      %p268 = scmp.eq.s32.totalorder %s44, 0
      %p269 = por %p267, %p268
      %s270 = ssub.s32 %s46, %s53
      %p271 = scmp.eq.s32.totalorder %s270, 0
      %s273 = sadd.s32 %s272, 1
      %s274 = scalar_select %p271, %s272, %s273
      %p277 = pneg %p271
      %p278 = scmp.eq.s32.totalorder %s38, 3
      %p279 = por %p277, %p278
      %p280 = scmp.ne.s32.totalorder %s272, %s275
      %p281 = scmp.eq.s32.totalorder %s38, 0
      %p282 = por %p280, %p281
      %p283 = scmp.ne.s32.totalorder %s272, %s275
      %p284 = scmp.eq.s32.totalorder %s43, 3
      %p285 = por %p283, %p284
      %p286 = scmp.ne.s32.totalorder %s275, %s276
      %p287 = scmp.eq.s32.totalorder %s43, 0
      %p288 = por %p286, %p287
      %p289 = scmp.ne.s32.totalorder %s275, %s276
      %p290 = scmp.eq.s32.totalorder %s44, 3
      %p291 = por %p289, %p290
      %p293 = scmp.ne.s32.totalorder %s276, %s292
      %p294 = scmp.eq.s32.totalorder %s44, 0
      %p295 = por %p293, %p294
      %s296 = ssub.s32 %s46, %s53
      %p297 = scmp.eq.s32.totalorder %s296, 0
      %s299 = sadd.s32 %s298, 1
      %s300 = scalar_select %p297, %s298, %s299
      %p303 = pneg %p297
      %p304 = scmp.eq.s32.totalorder %s38, 3
      %p305 = por %p303, %p304
      %p306 = scmp.ne.s32.totalorder %s298, %s301
      %p307 = scmp.eq.s32.totalorder %s38, 0
      %p308 = por %p306, %p307
      %p309 = scmp.ne.s32.totalorder %s298, %s301
      %p310 = scmp.eq.s32.totalorder %s43, 3
      %p311 = por %p309, %p310
      %p312 = scmp.ne.s32.totalorder %s301, %s302
      %p313 = scmp.eq.s32.totalorder %s43, 0
      %p314 = por %p312, %p313
      %p315 = scmp.ne.s32.totalorder %s301, %s302
      %p316 = scmp.eq.s32.totalorder %s44, 3
      %p317 = por %p315, %p316
      %p319 = scmp.ne.s32.totalorder %s302, %s318
      %p320 = scmp.eq.s32.totalorder %s44, 0
      %p321 = por %p319, %p320
      %s322 = ssub.s32 %s46, %s53
      %p323 = scmp.eq.s32.totalorder %s322, 0
      %s325 = sadd.s32 %s324, 1
      %s326 = scalar_select %p323, %s324, %s325
      %p329 = pneg %p323
      %p330 = scmp.eq.s32.totalorder %s38, 3
      %p331 = por %p329, %p330
      %p332 = scmp.ne.s32.totalorder %s324, %s327
      %p333 = scmp.eq.s32.totalorder %s38, 0
      %p334 = por %p332, %p333
      %p335 = scmp.ne.s32.totalorder %s324, %s327
      %p336 = scmp.eq.s32.totalorder %s43, 3
      %p337 = por %p335, %p336
      %p338 = scmp.ne.s32.totalorder %s327, %s328
      %p339 = scmp.eq.s32.totalorder %s43, 0
      %p340 = por %p338, %p339
      %p341 = scmp.ne.s32.totalorder %s327, %s328
      %p342 = scmp.eq.s32.totalorder %s44, 3
      %p343 = por %p341, %p342
      %p345 = scmp.ne.s32.totalorder %s328, %s344
      %p346 = scmp.eq.s32.totalorder %s44, 0
      %p347 = por %p345, %p346
      %s348 = ssub.s32 %s45, %s57
      %p349 = scmp.eq.s32.totalorder %s348, 0
      %s351 = sadd.s32 %s350, 1
      %s352 = scalar_select %p349, %s350, %s351
      %p355 = pneg %p349
      %p356 = scmp.eq.s32.totalorder %s38, 3
      %p357 = por %p355, %p356
      %p358 = scmp.ne.s32.totalorder %s350, %s353
      %p359 = scmp.eq.s32.totalorder %s38, 0
      %p360 = por %p358, %p359
      %p361 = scmp.ne.s32.totalorder %s350, %s353
      %p362 = scmp.eq.s32.totalorder %s43, 3
      %p363 = por %p361, %p362
      %p364 = scmp.ne.s32.totalorder %s353, %s354
      %p365 = scmp.eq.s32.totalorder %s43, 0
      %p366 = por %p364, %p365
      %p367 = scmp.ne.s32.totalorder %s353, %s354
      %p368 = scmp.eq.s32.totalorder %s44, 3
      %p369 = por %p367, %p368
      %p371 = scmp.ne.s32.totalorder %s354, %s370
      %p372 = scmp.eq.s32.totalorder %s44, 0
      %p373 = por %p371, %p372
      %p374 = scmp.le.s32.totalorder 1, %s38
      %p375 = scmp.lt.s32.totalorder %s38, 5
      %p376 = pnand %p374, %p375
      %p377 = pneg %p376
      // Predicated region
      $region9: #{adaln_pint_forward.9} parent=5 // pred_check
        _
      $region10: #{adaln_pint_forward.9} parent=5 // pred_check_branch
        %379 = sbr.rel (%p376) target = $region12
      $region11: #{adaln_pint_forward.9} parent=5 // pred_region
        %s380 = ssub.s32 %s38, 1
      $region12: #{adaln_pint_forward.9} parent=5 // pred_fallthru
        _
      %p381 = scmp.lt.s32.totalorder %s38, 4
      // Predicated region
      $region13: #{adaln_pint_forward.9} parent=5 // pred_check
        %p382 = pneg %p381
      $region14: #{adaln_pint_forward.9} parent=5 // pred_check_branch
        %384 = sbr.rel (%p382) target = $region16
      $region15: #{adaln_pint_forward.9} parent=5 // pred_region
        // Predicated region
        $region17: #{adaln_pint_forward.9} parent=15 // pred_check
          %p385 = pneg %p70
        $region18: #{adaln_pint_forward.9} parent=15 // pred_check_branch
          %387 = sbr.rel (%p385) target = $region20
        $region19: #{adaln_pint_forward.9} parent=15 // pred_region
          %s388 = sand.u32 %s60, 1
          %s389 = scalar_lea.sflag [#allocation3], %s388
          %s390 = sand.u32 %s60, 1
          %s391 = smul.addr %s390, 24
          %s392 = scalar_lea.vmem [#allocation2], %s391
          %s394 = ssub.s32 384, 384
          %395 = vsyncadd %s389, %s394
          %s396 = smul.addr %s45, 3
          %s397 = smul.addr %s396, 128
          %s398 = scalar_lea.hbm %s0, %s397
          %s399 = sshll.u32 %s392, 4
          %s400 = int_to_ptr.vmem [resolvable:$true] %s399
          %405 = dma.hbm_to_vmem [thread:$0]  %s398, 384, %s400, %s389, 128, 128, 8
        $region20: #{adaln_pint_forward.9} parent=15 // pred_fallthru
          _
        // Predicated region
        $region21: #{adaln_pint_forward.9} parent=15 // pred_check
          %p406 = pneg %p100
        $region22: #{adaln_pint_forward.9} parent=15 // pred_check_branch
          %408 = sbr.rel (%p406) target = $region24
        $region23: #{adaln_pint_forward.9} parent=15 // pred_region
          %s409 = sand.u32 %s38, 1
          %s410 = scalar_lea.sflag [#allocation6], %s409
          %s411 = sand.u32 %s90, 1
          %s412 = smul.addr %s411, 8
          %s413 = scalar_lea.vmem [#allocation5], %s412
          %s414 = smul.u32 %s46, 2
          %s415 = sadd.s32 %s414, %s45
          %s417 = ssub.s32 128, 128
          %418 = vsyncadd %s410, %s417
          %s419 = smul.addr %s415, 128
          %s420 = scalar_lea.hbm %s1, %s419
          %s422 = sshll.u32 %s413, 4
          %s423 = int_to_ptr.vmem [resolvable:$true] %s422
          %425 = dma.hbm_to_vmem [thread:$0]  %s420, 128, %s423, %s410
        $region24: #{adaln_pint_forward.9} parent=15 // pred_fallthru
          _
        // Predicated region
        $region25: #{adaln_pint_forward.9} parent=15 // pred_check
          %p426 = pneg %p126
        $region26: #{adaln_pint_forward.9} parent=15 // pred_check_branch
          %428 = sbr.rel (%p426) target = $region28
        $region27: #{adaln_pint_forward.9} parent=15 // pred_region
          %s429 = sand.u32 %s38, 1
          %s430 = scalar_lea.sflag [#allocation6], %s429
          %s431 = sand.u32 %s116, 1
          %s432 = smul.addr %s431, 96
          %s433 = scalar_lea.vmem [#allocation7], %s432
          %s434 = smul.u32 4, %s46
          %s436 = ssub.s32 1536, 1536
          %437 = vsyncadd %s430, %s436
          %s438 = smul.addr %s434, 3
          %s439 = smul.addr %s438, 128
          %s440 = scalar_lea.hbm %s2, %s439
          %s441 = sshll.u32 %s433, 4
          %s442 = int_to_ptr.vmem [resolvable:$true] %s441
          %447 = dma.hbm_to_vmem [thread:$0]  %s440, 1536, %s442, %s430, 128, 128, 8
        $region28: #{adaln_pint_forward.9} parent=15 // pred_fallthru
          _
        // Predicated region
        $region29: #{adaln_pint_forward.9} parent=15 // pred_check
          %p448 = pneg %p152
        $region30: #{adaln_pint_forward.9} parent=15 // pred_check_branch
          %450 = sbr.rel (%p448) target = $region32
        $region31: #{adaln_pint_forward.9} parent=15 // pred_region
          %s451 = sand.u32 %s38, 1
          %s452 = scalar_lea.sflag [#allocation9], %s451
          %s453 = sand.u32 %s142, 1
          %s454 = smul.addr %s453, 16
          %s455 = scalar_lea.vmem [#allocation8], %s454
          %s457 = ssub.s32 256, 256
          %458 = vsyncadd %s452, %s457
          %s459 = smul.addr %s46, 4
          %s460 = smul.addr %s459, 64
          %s461 = scalar_lea.hbm %s3, %s460
          %s462 = sshll.u32 %s455, 4
          %s463 = int_to_ptr.vmem [resolvable:$true] %s462
          %468 = dma.hbm_to_vmem [thread:$0]  %s461, 256, %s463, %s452, 64, 64, 4
        $region32: #{adaln_pint_forward.9} parent=15 // pred_fallthru
          _
        // Predicated region
        $region33: #{adaln_pint_forward.9} parent=15 // pred_check
          %p469 = pneg %p178
        $region34: #{adaln_pint_forward.9} parent=15 // pred_check_branch
          %471 = sbr.rel (%p469) target = $region36
        $region35: #{adaln_pint_forward.9} parent=15 // pred_region
          %s472 = sand.u32 %s38, 1
          %s473 = scalar_lea.sflag [#allocation9], %s472
          %s474 = sand.u32 %s168, 1
          %s475 = scalar_lea.vmem [#allocation10], %s474
          %s477 = ssub.s32 16, 16
          %478 = vsyncadd %s473, %s477
          %s479 = smul.addr %s46, 16
          %s480 = scalar_lea.hbm %s4, %s479
          %s482 = sshll.u32 %s475, 4
          %s483 = int_to_ptr.vmem [resolvable:$true] %s482
          %485 = dma.hbm_to_vmem [thread:$0]  %s480, 16, %s483, %s473
        $region36: #{adaln_pint_forward.9} parent=15 // pred_fallthru
          _
        // Predicated region
        $region37: #{adaln_pint_forward.9} parent=15 // pred_check
          %p486 = pneg %p204
        $region38: #{adaln_pint_forward.9} parent=15 // pred_check_branch
          %488 = sbr.rel (%p486) target = $region40
        $region39: #{adaln_pint_forward.9} parent=15 // pred_region
          %s489 = sand.u32 %s38, 1
          %s490 = scalar_lea.sflag [#allocation12], %s489
          %s491 = sand.u32 %s194, 1
          %s492 = smul.addr %s491, 16
          %s493 = scalar_lea.vmem [#allocation11], %s492
          %s495 = ssub.s32 256, 256
          %496 = vsyncadd %s490, %s495
          %s497 = smul.addr %s46, 4
          %s498 = smul.addr %s497, 64
          %s499 = scalar_lea.hbm %s5, %s498
          %s500 = sshll.u32 %s493, 4
          %s501 = int_to_ptr.vmem [resolvable:$true] %s500
          %506 = dma.hbm_to_vmem [thread:$0]  %s499, 256, %s501, %s490, 64, 64, 4
        $region40: #{adaln_pint_forward.9} parent=15 // pred_fallthru
          _
        // Predicated region
        $region41: #{adaln_pint_forward.9} parent=15 // pred_check
          %p507 = pneg %p230
        $region42: #{adaln_pint_forward.9} parent=15 // pred_check_branch
          %509 = sbr.rel (%p507) target = $region44
        $region43: #{adaln_pint_forward.9} parent=15 // pred_region
          %s510 = sand.u32 %s38, 1
          %s511 = scalar_lea.sflag [#allocation12], %s510
          %s512 = sand.u32 %s220, 1
          %s513 = scalar_lea.vmem [#allocation13], %s512
          %s515 = ssub.s32 16, 16
          %516 = vsyncadd %s511, %s515
          %s517 = smul.addr %s46, 16
          %s518 = scalar_lea.hbm %s6, %s517
          %s520 = sshll.u32 %s513, 4
          %s521 = int_to_ptr.vmem [resolvable:$true] %s520
          %523 = dma.hbm_to_vmem [thread:$0]  %s518, 16, %s521, %s511
        $region44: #{adaln_pint_forward.9} parent=15 // pred_fallthru
          _
        // Predicated region
        $region45: #{adaln_pint_forward.9} parent=15 // pred_check
          %p524 = pneg %p256
        $region46: #{adaln_pint_forward.9} parent=15 // pred_check_branch
          %526 = sbr.rel (%p524) target = $region48
        $region47: #{adaln_pint_forward.9} parent=15 // pred_region
          %s527 = sand.u32 %s38, 1
          %s528 = scalar_lea.sflag [#allocation15], %s527
          %s529 = sand.u32 %s246, 1
          %s530 = smul.addr %s529, 16
          %s531 = scalar_lea.vmem [#allocation14], %s530
          %s533 = ssub.s32 256, 256
          %534 = vsyncadd %s528, %s533
          %s535 = smul.addr %s46, 4
          %s536 = smul.addr %s535, 64
          %s537 = scalar_lea.hbm %s7, %s536
          %s538 = sshll.u32 %s531, 4
          %s539 = int_to_ptr.vmem [resolvable:$true] %s538
          %544 = dma.hbm_to_vmem [thread:$0]  %s537, 256, %s539, %s528, 64, 64, 4
        $region48: #{adaln_pint_forward.9} parent=15 // pred_fallthru
          _
        // Predicated region
        $region49: #{adaln_pint_forward.9} parent=15 // pred_check
          %p545 = pneg %p282
        $region50: #{adaln_pint_forward.9} parent=15 // pred_check_branch
          %547 = sbr.rel (%p545) target = $region52
        $region51: #{adaln_pint_forward.9} parent=15 // pred_region
          %s548 = sand.u32 %s38, 1
          %s549 = scalar_lea.sflag [#allocation15], %s548
          %s550 = sand.u32 %s272, 1
          %s551 = scalar_lea.vmem [#allocation16], %s550
          %s553 = ssub.s32 16, 16
          %554 = vsyncadd %s549, %s553
          %s555 = smul.addr %s46, 16
          %s556 = scalar_lea.hbm %s8, %s555
          %s558 = sshll.u32 %s551, 4
          %s559 = int_to_ptr.vmem [resolvable:$true] %s558
          %561 = dma.hbm_to_vmem [thread:$0]  %s556, 16, %s559, %s549
        $region52: #{adaln_pint_forward.9} parent=15 // pred_fallthru
          _
        // Predicated region
        $region53: #{adaln_pint_forward.9} parent=15 // pred_check
          %p562 = pneg %p308
        $region54: #{adaln_pint_forward.9} parent=15 // pred_check_branch
          %564 = sbr.rel (%p562) target = $region56
        $region55: #{adaln_pint_forward.9} parent=15 // pred_region
          %s565 = sand.u32 %s38, 1
          %s566 = scalar_lea.sflag [#allocation18], %s565
          %s567 = sand.u32 %s298, 1
          %s568 = smul.addr %s567, 64
          %s569 = scalar_lea.vmem [#allocation17], %s568
          %s571 = ssub.s32 1024, 1024
          %572 = vsyncadd %s566, %s571
          %s573 = smul.addr %s46, 16
          %s574 = smul.addr %s573, 64
          %s575 = scalar_lea.hbm %s9, %s574
          %s576 = sshll.u32 %s569, 4
          %s577 = int_to_ptr.vmem [resolvable:$true] %s576
          %582 = dma.hbm_to_vmem [thread:$0]  %s575, 1024, %s577, %s566, 64, 64, 4
        $region56: #{adaln_pint_forward.9} parent=15 // pred_fallthru
          _
        // Predicated region
        $region57: #{adaln_pint_forward.9} parent=15 // pred_check
          %p583 = pneg %p334
        $region58: #{adaln_pint_forward.9} parent=15 // pred_check_branch
          %585 = sbr.rel (%p583) target = $region60
        $region59: #{adaln_pint_forward.9} parent=15 // pred_region
          %s586 = sand.u32 %s38, 1
          %s587 = scalar_lea.sflag [#allocation18], %s586
          %s588 = sand.u32 %s324, 1
          %s589 = scalar_lea.vmem [#allocation19], %s588
          %s591 = ssub.s32 16, 16
          %592 = vsyncadd %s587, %s591
          %s593 = smul.addr %s46, 16
          %s594 = scalar_lea.hbm %s10, %s593
          %s596 = sshll.u32 %s589, 4
          %s597 = int_to_ptr.vmem [resolvable:$true] %s596
          %599 = dma.hbm_to_vmem [thread:$0]  %s594, 16, %s597, %s587
        $region60: #{adaln_pint_forward.9} parent=15 // pred_fallthru
          _
      $region16: #{adaln_pint_forward.9} parent=5 // pred_fallthru
        _
      %p600 = scmp.le.s32.totalorder 1, %s38
      %p601 = scmp.lt.s32.totalorder %s38, 5
      %p602 = pnand %p600, %p601
      %p603 = pneg %p602
      // Predicated region
      $region61: #{adaln_pint_forward.9} parent=5 // pred_check
        _
      $region62: #{adaln_pint_forward.9} parent=5 // pred_check_branch
        %605 = sbr.rel (%p602) target = $region64
      $region63: #{adaln_pint_forward.9} parent=5 // pred_region
        %s606 = ssub.s32 %s38, 1
        %s607 = sand.u32 %s63, 1
        %s608 = scalar_lea.sflag [#allocation3], %s607
        %s609 = sand.u32 %s63, 1
        %s610 = smul.addr %s609, 24
        %s611 = scalar_lea.vmem [#allocation2], %s610
        // Predicated region
        $region65: #{adaln_pint_forward.9} parent=63 // pred_check
          %p612 = pneg %p76
        $region66: #{adaln_pint_forward.9} parent=63 // pred_check_branch
          %614 = sbr.rel (%p612) target = $region68
        $region67: #{adaln_pint_forward.9} parent=63 // pred_region
          %615 = dma.done %s608, 384
        $region68: #{adaln_pint_forward.9} parent=63 // pred_fallthru
          _
        %s616 = sand.u32 %s43, 1
        %s617 = scalar_lea.sflag [#allocation6], %s616
        %s618 = sand.u32 %s93, 1
        %s619 = smul.addr %s618, 8
        %s620 = scalar_lea.vmem [#allocation5], %s619
        // Predicated region
        $region69: #{adaln_pint_forward.9} parent=63 // pred_check
          %p621 = pneg %p106
        $region70: #{adaln_pint_forward.9} parent=63 // pred_check_branch
          %623 = sbr.rel (%p621) target = $region72
        $region71: #{adaln_pint_forward.9} parent=63 // pred_region
          %624 = dma.done %s617, 128
        $region72: #{adaln_pint_forward.9} parent=63 // pred_fallthru
          _
        %s625 = sand.u32 %s43, 1
        %s626 = scalar_lea.sflag [#allocation6], %s625
        %s627 = sand.u32 %s119, 1
        %s628 = smul.addr %s627, 96
        %s629 = scalar_lea.vmem [#allocation7], %s628
        // Predicated region
        $region73: #{adaln_pint_forward.9} parent=63 // pred_check
          %p630 = pneg %p132
        $region74: #{adaln_pint_forward.9} parent=63 // pred_check_branch
          %632 = sbr.rel (%p630) target = $region76
        $region75: #{adaln_pint_forward.9} parent=63 // pred_region
          %633 = dma.done %s626, 1536
        $region76: #{adaln_pint_forward.9} parent=63 // pred_fallthru
          _
        %s634 = sand.u32 %s43, 1
        %s635 = scalar_lea.sflag [#allocation9], %s634
        %s636 = sand.u32 %s145, 1
        %s637 = smul.addr %s636, 16
        %s638 = scalar_lea.vmem [#allocation8], %s637
        // Predicated region
        $region77: #{adaln_pint_forward.9} parent=63 // pred_check
          %p639 = pneg %p158
        $region78: #{adaln_pint_forward.9} parent=63 // pred_check_branch
          %641 = sbr.rel (%p639) target = $region80
        $region79: #{adaln_pint_forward.9} parent=63 // pred_region
          %642 = dma.done %s635, 256
        $region80: #{adaln_pint_forward.9} parent=63 // pred_fallthru
          _
        %s643 = sand.u32 %s43, 1
        %s644 = scalar_lea.sflag [#allocation9], %s643
        %s645 = sand.u32 %s171, 1
        %s646 = scalar_lea.vmem [#allocation10], %s645
        // Predicated region
        $region81: #{adaln_pint_forward.9} parent=63 // pred_check
          %p647 = pneg %p184
        $region82: #{adaln_pint_forward.9} parent=63 // pred_check_branch
          %649 = sbr.rel (%p647) target = $region84
        $region83: #{adaln_pint_forward.9} parent=63 // pred_region
          %650 = dma.done %s644, 16
        $region84: #{adaln_pint_forward.9} parent=63 // pred_fallthru
          _
        %s651 = sand.u32 %s43, 1
        %s652 = scalar_lea.sflag [#allocation12], %s651
        %s653 = sand.u32 %s197, 1
        %s654 = smul.addr %s653, 16
        %s655 = scalar_lea.vmem [#allocation11], %s654
        // Predicated region
        $region85: #{adaln_pint_forward.9} parent=63 // pred_check
          %p656 = pneg %p210
        $region86: #{adaln_pint_forward.9} parent=63 // pred_check_branch
          %658 = sbr.rel (%p656) target = $region88
        $region87: #{adaln_pint_forward.9} parent=63 // pred_region
          %659 = dma.done %s652, 256
        $region88: #{adaln_pint_forward.9} parent=63 // pred_fallthru
          _
        %s660 = sand.u32 %s43, 1
        %s661 = scalar_lea.sflag [#allocation12], %s660
        %s662 = sand.u32 %s223, 1
        %s663 = scalar_lea.vmem [#allocation13], %s662
        // Predicated region
        $region89: #{adaln_pint_forward.9} parent=63 // pred_check
          %p664 = pneg %p236
        $region90: #{adaln_pint_forward.9} parent=63 // pred_check_branch
          %666 = sbr.rel (%p664) target = $region92
        $region91: #{adaln_pint_forward.9} parent=63 // pred_region
          %667 = dma.done %s661, 16
        $region92: #{adaln_pint_forward.9} parent=63 // pred_fallthru
          _
        %s668 = sand.u32 %s43, 1
        %s669 = scalar_lea.sflag [#allocation15], %s668
        %s670 = sand.u32 %s249, 1
        %s671 = smul.addr %s670, 16
        %s672 = scalar_lea.vmem [#allocation14], %s671
        // Predicated region
        $region93: #{adaln_pint_forward.9} parent=63 // pred_check
          %p673 = pneg %p262
        $region94: #{adaln_pint_forward.9} parent=63 // pred_check_branch
          %675 = sbr.rel (%p673) target = $region96
        $region95: #{adaln_pint_forward.9} parent=63 // pred_region
          %676 = dma.done %s669, 256
        $region96: #{adaln_pint_forward.9} parent=63 // pred_fallthru
          _
        %s677 = sand.u32 %s43, 1
        %s678 = scalar_lea.sflag [#allocation15], %s677
        %s679 = sand.u32 %s275, 1
        %s680 = scalar_lea.vmem [#allocation16], %s679
        // Predicated region
        $region97: #{adaln_pint_forward.9} parent=63 // pred_check
          %p681 = pneg %p288
        $region98: #{adaln_pint_forward.9} parent=63 // pred_check_branch
          %683 = sbr.rel (%p681) target = $region100
        $region99: #{adaln_pint_forward.9} parent=63 // pred_region
          %684 = dma.done %s678, 16
        $region100: #{adaln_pint_forward.9} parent=63 // pred_fallthru
          _
        %s685 = sand.u32 %s43, 1
        %s686 = scalar_lea.sflag [#allocation18], %s685
        %s687 = sand.u32 %s301, 1
        %s688 = smul.addr %s687, 64
        %s689 = scalar_lea.vmem [#allocation17], %s688
        // Predicated region
        $region101: #{adaln_pint_forward.9} parent=63 // pred_check
          %p690 = pneg %p314
        $region102: #{adaln_pint_forward.9} parent=63 // pred_check_branch
          %692 = sbr.rel (%p690) target = $region104
        $region103: #{adaln_pint_forward.9} parent=63 // pred_region
          %693 = dma.done %s686, 1024
        $region104: #{adaln_pint_forward.9} parent=63 // pred_fallthru
          _
        %s694 = sand.u32 %s43, 1
        %s695 = scalar_lea.sflag [#allocation18], %s694
        %s696 = sand.u32 %s327, 1
        %s697 = scalar_lea.vmem [#allocation19], %s696
        // Predicated region
        $region105: #{adaln_pint_forward.9} parent=63 // pred_check
          %p698 = pneg %p340
        $region106: #{adaln_pint_forward.9} parent=63 // pred_check_branch
          %700 = sbr.rel (%p698) target = $region108
        $region107: #{adaln_pint_forward.9} parent=63 // pred_region
          %701 = dma.done %s695, 16
        $region108: #{adaln_pint_forward.9} parent=63 // pred_fallthru
          _
        %s702 = sand.u32 %s63, 1
        %s703 = scalar_lea.sflag [#allocation3], %s702
        %s704 = sand.u32 %s63, 1
        %s705 = smul.addr %s704, 24
        %s706 = scalar_lea.vmem [#allocation2], %s705
        %p707 = pneg %p76
        %p708 = pneg %p73
        %s709 = sand.u32 %s43, 1
        %s710 = scalar_lea.sflag [#allocation6], %s709
        %s711 = sand.u32 %s93, 1
        %s712 = smul.addr %s711, 8
        %s713 = scalar_lea.vmem [#allocation5], %s712
        %p714 = pneg %p106
        %p715 = pneg %p103
        %s716 = sand.u32 %s43, 1
        %s717 = scalar_lea.sflag [#allocation6], %s716
        %s718 = sand.u32 %s119, 1
        %s719 = smul.addr %s718, 96
        %s720 = scalar_lea.vmem [#allocation7], %s719
        %p721 = pneg %p132
        %p722 = pneg %p129
        %s723 = sand.u32 %s43, 1
        %s724 = scalar_lea.sflag [#allocation9], %s723
        %s725 = sand.u32 %s145, 1
        %s726 = smul.addr %s725, 16
        %s727 = scalar_lea.vmem [#allocation8], %s726
        %p728 = pneg %p158
        %p729 = pneg %p155
        %s730 = sand.u32 %s43, 1
        %s731 = scalar_lea.sflag [#allocation9], %s730
        %s732 = sand.u32 %s171, 1
        %s733 = scalar_lea.vmem [#allocation10], %s732
        %p734 = pneg %p184
        %p735 = pneg %p181
        %s736 = sand.u32 %s43, 1
        %s737 = scalar_lea.sflag [#allocation12], %s736
        %s738 = sand.u32 %s197, 1
        %s739 = smul.addr %s738, 16
        %s740 = scalar_lea.vmem [#allocation11], %s739
        %p741 = pneg %p210
        %p742 = pneg %p207
        %s743 = sand.u32 %s43, 1
        %s744 = scalar_lea.sflag [#allocation12], %s743
        %s745 = sand.u32 %s223, 1
        %s746 = scalar_lea.vmem [#allocation13], %s745
        %p747 = pneg %p236
        %p748 = pneg %p233
        %s749 = sand.u32 %s43, 1
        %s750 = scalar_lea.sflag [#allocation15], %s749
        %s751 = sand.u32 %s249, 1
        %s752 = smul.addr %s751, 16
        %s753 = scalar_lea.vmem [#allocation14], %s752
        %p754 = pneg %p262
        %p755 = pneg %p259
        %s756 = sand.u32 %s43, 1
        %s757 = scalar_lea.sflag [#allocation15], %s756
        %s758 = sand.u32 %s275, 1
        %s759 = scalar_lea.vmem [#allocation16], %s758
        %p760 = pneg %p288
        %p761 = pneg %p285
        %s762 = sand.u32 %s43, 1
        %s763 = scalar_lea.sflag [#allocation18], %s762
        %s764 = sand.u32 %s301, 1
        %s765 = smul.addr %s764, 64
        %s766 = scalar_lea.vmem [#allocation17], %s765
        %p767 = pneg %p314
        %p768 = pneg %p311
        %s769 = sand.u32 %s43, 1
        %s770 = scalar_lea.sflag [#allocation18], %s769
        %s771 = sand.u32 %s327, 1
        %s772 = scalar_lea.vmem [#allocation19], %s771
        %p773 = pneg %p340
        %p774 = pneg %p337
        %p775 = pneg %p366
        %p776 = pneg %p363
        %s777 = sand.u32 %s353, 1
        %s778 = scalar_lea.sflag [#allocation4], %s777
        %s779 = sand.u32 %s353, 1
        %s780 = smul.addr %s779, 24
        %s781 = scalar_lea.vmem [#allocation20], %s780
        %s782 = smul.u32 %s48, 2
        %s783 = sadd.s32 %s782, %s47
        %s784 = smul.u32 4, %s48
        %p786 = scmp.eq.s32.totalorder %s48, 0
        // Predicated region
        $region109: #{adaln_pint_forward.9} parent=63 // pred_check
          %p787 = pneg %p786
        $region110: #{adaln_pint_forward.9} parent=63 // pred_check_branch
          %789 = sbr.rel (%p787) target = $region112
        $region111: #{adaln_pint_forward.9} parent=63 // pred_region
          %v790 = vld [vmem:[%s611] sm:$0xff]
          %v791 = vld [vmem:[%s611 + $0x8] sm:$0xff]
          %v792 = vld [vmem:[%s611 + $0x10] sm:$0xff]
          %vm793 = vcmask 261120
          %794 = vst.msk [vmem:[%s781] sm:$0xff] %vm793, %v790
          %795 = vst.msk [vmem:[%s781 + $0x8] sm:$0xff] %vm793, %v791
          %796 = vst.msk [vmem:[%s781 + $0x10] sm:$0xff] %vm793, %v792
        $region112: #{adaln_pint_forward.9} parent=63 // pred_fallthru
          _
        %v797 = vld [vmem:[%s781] sm:$0xff]
        %v798 = vld [vmem:[%s781 + $0x8] sm:$0xff]
        %v799 = vld [vmem:[%s781 + $0x10] sm:$0xff]
        %v800 = vld [vmem:[%s620] sm:$0x3f]
        %vm801 = vcmask 261120
        %v802 = vsel %vm801, %v797, 0.0
        %803 = vadd.xlane.f32.xlu0 %v802
        %v804 = vpop.xlane.xlu0 %803
        %v805 = vsel %vm801, %v798, 0.0
        %806 = vadd.xlane.f32.xlu0 %v805
        %v807 = vpop.xlane.xlu0 %806
        %v808 = vsel %vm801, %v799, 0.0
        %809 = vadd.xlane.f32.xlu0 %v808
        %v810 = vpop.xlane.xlu0 %809
        %v811 = vrcp.pop 32.0
        %v812 = vmul.f32 %v804, %v811
        %v813 = vmul.f32 %v807, %v811
        %v814 = vmul.f32 %v810, %v811
        %v815 = vsub.f32 %v797, %v812
        %v816 = vsub.f32 %v798, %v813
        %v817 = vsub.f32 %v799, %v814
        %v818 = vmul.f32 %v815, %v815
        %v819 = vmul.f32 %v816, %v816
        %v820 = vmul.f32 %v817, %v817
        %v821 = vsel %vm801, %v818, 0.0
        %822 = vadd.xlane.f32.xlu0 %v821
        %v823 = vpop.xlane.xlu0 %822
        %v824 = vsel %vm801, %v819, 0.0
        %825 = vadd.xlane.f32.xlu0 %v824
        %v826 = vpop.xlane.xlu0 %825
        %v827 = vsel %vm801, %v820, 0.0
        %828 = vadd.xlane.f32.xlu0 %v827
        %v829 = vpop.xlane.xlu0 %828
        %v830 = vmul.f32 %v823, %v811
        %v831 = vmul.f32 %v826, %v811
        %v832 = vmul.f32 %v829, %v811
        %v833 = vadd.f32 %v830, 1e-05
        %v834 = vadd.f32 %v831, 1e-05
        %v835 = vadd.f32 %v832, 1e-05
        %v836 = vrsqrt.pop %v833
        %v837 = vrsqrt.pop %v834
        %v838 = vrsqrt.pop %v835
        %v839 = vmul.f32 %v815, %v836
        %v840 = vmul.f32 %v816, %v837
        %v841 = vmul.f32 %v817, %v838
        %v842 = vadd.f32 %v800, 1.0
        %v843 = vlaneseq
        %v844 = vshrl.u32 %v843, 7
        %v845 = vsub.s32 1, %v844
        %v846 = vrot.slane %v842, %v845
        %v847 = vmul.f32 %v839, %v846
        %v848 = vmul.f32 %v840, %v846
        %v849 = vmul.f32 %v841, %v846
        %v850 = vlaneseq
        %v851 = vshrl.u32 %v850, 7
        %v852 = vsub.s32 0, %v851
        %v853 = vrot.slane %v800, %v852
        %v854 = vadd.f32 %v847, %v853
        %v855 = vadd.f32 %v848, %v853
        %v856 = vadd.f32 %v849, %v853
        %v857 = vpack.c.bf16 %v855, %v854
        %v858 = vpack.c.bf16 %v856, %v856
        %v859 = vld [vmem:[%s638] sm:$0xf]
        %v860 = vld [vmem:[%s638 + $0x4] sm:$0xf]
        %v861 = vld [vmem:[%s638 + $0x8] sm:$0xf]
        %v862 = vld [vmem:[%s638 + $0xc] sm:$0xf]
        %v863 = vld [vmem:[%s646] sm:$0x1]
        %v865 = vlaneseq
        %v866 = vshrl.u32 %v865, 7
        %v867 = vsub.s32 0, %v866
        %v868 = vrot.slane %v863, %v867
        %v874 = vunpack.c.l.b16 %v859
        %v875 = vunpack.c.l.b16 %v860
        %v876 = vunpack.c.l.b16 %v861
        %v877 = vunpack.c.l.b16 %v862
        %v878 = vpack.c.b16 %v875, %v874
        %v879 = vpack.c.b16 %v877, %v876
        %v883 = vsel %vm801, %v857, 0
        %v886 = vsel %vm801, %v858, 0
        %888 = vmatprep.subr.bf16.mxu0 0
        %889 = vmatpush1.bf16.msra.mxu0 %v878
        %890 = vmatprep.subr.bf16.mxu0 0
        %891 = vmatpush1.bf16.msra.mxu0 %v879
        %892 = vmatprep.subr.bf16.mxu0 0
        %893 = vmatpush1.bf16.msra.mxu0 0
        %894 = vmatprep.subr.bf16.mxu0 0
        %895 = vmatpush1.bf16.msra.mxu0 0
        %896 = vmatprep.subr.bf16.mxu0 0
        %897 = vmatpush1.bf16.msra.mxu0 0
        %898 = vmatprep.subr.bf16.mxu0 0
        %899 = vmatpush1.bf16.msra.mxu0 0
        %900 = vmatprep.subr.bf16.mxu0 0
        %901 = vmatpush1.bf16.msra.mxu0 0
        %902 = vmatprep.subr.bf16.mxu0 0
        %903 = vmatpush1.bf16.msra.mxu0 0
        %904 = vmatprep.subr.bf16.mxu0 0
        %905 = vmatpush1.bf16.msra.mxu0 0
        %906 = vmatprep.subr.bf16.mxu0 0
        %907 = vmatpush1.bf16.msra.mxu0 0
        %908 = vmatprep.subr.bf16.mxu0 0
        %909 = vmatpush1.bf16.msra.mxu0 0
        %910 = vmatprep.subr.bf16.mxu0 0
        %911 = vmatpush1.bf16.msra.mxu0 0
        %912 = vmatprep.subr.bf16.mxu0 0
        %913 = vmatpush1.bf16.msra.mxu0 0
        %914 = vmatprep.subr.bf16.mxu0 0
        %915 = vmatpush1.bf16.msra.mxu0 0
        %916 = vmatprep.subr.bf16.mxu0 0
        %917 = vmatpush1.bf16.msra.mxu0 0
        %918 = vmatprep.subr.bf16.mxu0 0
        %919 = vmatpush1.bf16.msra.mxu0 0
        %920 = vmatprep.mubr.bf16.mxu0 0
        %921 = vmatmul.mubr.bf16.gmra.mrb[0].mxu0 %v883
        %v922 = vpop.f32.mrb[0].mxu0
        %v923 = vadd.f32 %v868, %v922
        %v924 = vpop.f32.mrb[0].mxu0
        %v925 = vpop.f32.mrb[0].mxu0
        %v926 = vadd.f32 %v868, %v925
        %v927 = vpop.f32.mrb[0].mxu0
        %928 = vmatprep.mubr.bf16.mxu0 0
        %929 = vmatmul.mubr.bf16.gmra.mrb[0].mxu0 %v886
        %v930 = vpop.f32.mrb[0].mxu0
        %v931 = vadd.f32 %v868, %v930
        %v932 = vpop.f32.mrb[0].mxu0
        %v933 = vpop.f32.mrb[0].mxu0
        %v934 = vpop.f32.mrb[0].mxu0
        %935 = vdwg.mxu0
        %v936 = vpack.c.bf16 %v926, %v923
        %v937 = vpack.c.bf16 %v931, %v931
        %940 = vrot.lane.b32.xlu0 %v936, 96
        %v941 = vpop.permute.xlu0 %940
        %942 = vrot.lane.b32.xlu0 %v937, 96
        %v943 = vpop.permute.xlu0 %942
        %vm944 = vcmask 64512
        %v946 = vsel %vm944, %v936, 0
        %v949 = vsel %vm944, %v937, 0
        %v952 = vsel %vm944, %v941, 0
        %v955 = vsel %vm944, %v943, 0
        %957 = vmatprep.subr.bf16.mxu0 0
        %958 = vmatpush1.bf16.xpose.msra.mxu0 %v952
        %959 = vmatprep.subr.bf16.mxu0 0
        %960 = vmatpush1.bf16.xpose.msra.mxu0 %v955
        %961 = vmatprep.subr.bf16.mxu0 0
        %962 = vmatpush1.bf16.xpose.msra.mxu0 0
        %963 = vmatprep.subr.bf16.mxu0 0
        %964 = vmatpush1.bf16.xpose.msra.mxu0 0
        %965 = vmatprep.subr.bf16.mxu0 0
        %966 = vmatpush1.bf16.xpose.msra.mxu0 0
        %967 = vmatprep.subr.bf16.mxu0 0
        %968 = vmatpush1.bf16.xpose.msra.mxu0 0
        %969 = vmatprep.subr.bf16.mxu0 0
        %970 = vmatpush1.bf16.xpose.msra.mxu0 0
        %971 = vmatprep.subr.bf16.mxu0 0
        %972 = vmatpush1.bf16.xpose.msra.mxu0 0
        %973 = vmatprep.subr.bf16.mxu0 0
        %974 = vmatpush1.bf16.xpose.msra.mxu0 0
        %975 = vmatprep.subr.bf16.mxu0 0
        %976 = vmatpush1.bf16.xpose.msra.mxu0 0
        %977 = vmatprep.subr.bf16.mxu0 0
        %978 = vmatpush1.bf16.xpose.msra.mxu0 0
        %979 = vmatprep.subr.bf16.mxu0 0
        %980 = vmatpush1.bf16.xpose.msra.mxu0 0
        %981 = vmatprep.subr.bf16.mxu0 0
        %982 = vmatpush1.bf16.xpose.msra.mxu0 0
        %983 = vmatprep.subr.bf16.mxu0 0
        %984 = vmatpush1.bf16.xpose.msra.mxu0 0
        %985 = vmatprep.subr.bf16.mxu0 0
        %986 = vmatpush1.bf16.xpose.msra.mxu0 0
        %987 = vmatprep.subr.bf16.mxu0 0
        %988 = vmatpush1.bf16.xpose.msra.mxu0 0
        %989 = vmatprep.mubr.bf16.mxu0 0
        %990 = vmatmul.mubr.bf16.gmra.mrb[0].mxu0 %v946
        %v991 = vpop.f32.mrb[0].mxu0
        %v992 = vadd.f32 0.0, %v991
        %v993 = vpop.f32.mrb[0].mxu0
        %v994 = vpop.f32.mrb[0].mxu0
        %v995 = vadd.f32 0.0, %v994
        %v996 = vpop.f32.mrb[0].mxu0
        %997 = vmatprep.mubr.bf16.mxu0 0
        %998 = vmatmul.mubr.bf16.gmra.mrb[0].mxu0 %v949
        %v999 = vpop.f32.mrb[0].mxu0
        %v1000 = vadd.f32 0.0, %v999
        %v1001 = vpop.f32.mrb[0].mxu0
        %v1002 = vpop.f32.mrb[0].mxu0
        %v1003 = vpop.f32.mrb[0].mxu0
        %1004 = vdwg.mxu0
        %v1005 = vmul.f32 %v992, 0.35355338
        %v1006 = vmul.f32 %v995, 0.35355338
        %v1007 = vmul.f32 %v1000, 0.35355338
        %v1008 = vld [vmem:[%s629] sm:$0xff]
        %v1009 = vld [vmem:[%s629 + $0x8] sm:$0xff]
        %v1010 = vld [vmem:[%s629 + $0x10] sm:$0xff]
        %v1011 = vadd.f32 %v1005, %v1008
        %v1012 = vadd.f32 %v1006, %v1009
        %v1013 = vadd.f32 %v1007, %v1010
        %vm1014 = vcmask 195584
        %v1015 = vsel %vm1014, %v1011, -inf
        %1016 = vmax.xlane.f32.xlu0 %v1015
        %v1017 = vpop.xlane.xlu0 %1016
        %v1018 = vsel %vm1014, %v1012, -inf
        %1019 = vmax.xlane.f32.xlu0 %v1018
        %v1020 = vpop.xlane.xlu0 %1019
        %v1021 = vsel %vm1014, %v1013, -inf
        %1022 = vmax.xlane.f32.xlu0 %v1021
        %v1023 = vpop.xlane.xlu0 %1022
        %v1024 = vsub.f32 %v1011, %v1017
        %v1025 = vsub.f32 %v1012, %v1020
        %v1026 = vsub.f32 %v1013, %v1023
        %v1027 = vmul.f32 %v1024, 1.442695
        %v1028 = vpow.pop %v1027
        %v1029 = vmul.f32 %v1025, 1.442695
        %v1030 = vpow.pop %v1029
        %v1031 = vmul.f32 %v1026, 1.442695
        %v1032 = vpow.pop %v1031
        %v1033 = vsel %vm1014, %v1028, 0.0
        %1034 = vadd.xlane.f32.xlu0 %v1033
        %v1035 = vpop.xlane.xlu0 %1034
        %v1036 = vsel %vm1014, %v1030, 0.0
        %1037 = vadd.xlane.f32.xlu0 %v1036
        %v1038 = vpop.xlane.xlu0 %1037
        %v1039 = vsel %vm1014, %v1032, 0.0
        %1040 = vadd.xlane.f32.xlu0 %v1039
        %v1041 = vpop.xlane.xlu0 %1040
        %v1042 = vrcp.pop %v1035
        %v1043 = vrcp.pop %v1038
        %v1044 = vrcp.pop %v1041
        %v1045 = vmul.f32 %v1028, %v1042
        %v1046 = vmul.f32 %v1030, %v1043
        %v1047 = vmul.f32 %v1032, %v1044
        %v1048 = vpack.c.bf16 %v1046, %v1045
        %v1049 = vpack.c.bf16 %v1047, %v1047
        %1050 = vrot.lane.b32.xlu0 %v936, 64
        %v1051 = vpop.permute.xlu0 %1050
        %1052 = vrot.lane.b32.xlu0 %v937, 64
        %v1053 = vpop.permute.xlu0 %1052
        %v1056 = vsel %vm1014, %v1048, 0
        %v1059 = vsel %vm1014, %v1049, 0
        %vm1061 = vcmask 1043456
        %v1063 = vsel %vm1061, %v1053, 0
        %1065 = vmatprep.subr.bf16.mxu0 0
        %1066 = vmatpush1.bf16.msra.mxu0 %v1051
        %1067 = vmatprep.subr.bf16.mxu0 0
        %1068 = vmatpush1.bf16.msra.mxu0 %v1063
        %1069 = vmatprep.subr.bf16.mxu0 0
        %1070 = vmatpush1.bf16.msra.mxu0 0
        %1071 = vmatprep.subr.bf16.mxu0 0
        %1072 = vmatpush1.bf16.msra.mxu0 0
        %1073 = vmatprep.subr.bf16.mxu0 0
        %1074 = vmatpush1.bf16.msra.mxu0 0
        %1075 = vmatprep.subr.bf16.mxu0 0
        %1076 = vmatpush1.bf16.msra.mxu0 0
        %1077 = vmatprep.subr.bf16.mxu0 0
        %1078 = vmatpush1.bf16.msra.mxu0 0
        %1079 = vmatprep.subr.bf16.mxu0 0
        %1080 = vmatpush1.bf16.msra.mxu0 0
        %1081 = vmatprep.subr.bf16.mxu0 0
        %1082 = vmatpush1.bf16.msra.mxu0 0
        %1083 = vmatprep.subr.bf16.mxu0 0
        %1084 = vmatpush1.bf16.msra.mxu0 0
        %1085 = vmatprep.subr.bf16.mxu0 0
        %1086 = vmatpush1.bf16.msra.mxu0 0
        %1087 = vmatprep.subr.bf16.mxu0 0
        %1088 = vmatpush1.bf16.msra.mxu0 0
        %1089 = vmatprep.subr.bf16.mxu0 0
        %1090 = vmatpush1.bf16.msra.mxu0 0
        %1091 = vmatprep.subr.bf16.mxu0 0
        %1092 = vmatpush1.bf16.msra.mxu0 0
        %1093 = vmatprep.subr.bf16.mxu0 0
        %1094 = vmatpush1.bf16.msra.mxu0 0
        %1095 = vmatprep.subr.bf16.mxu0 0
        %1096 = vmatpush1.bf16.msra.mxu0 0
        %1097 = vmatprep.mubr.bf16.mxu0 0
        %1098 = vmatmul.mubr.bf16.gmra.mrb[0].mxu0 %v1056
        %v1099 = vpop.f32.mrb[0].mxu0
        %v1100 = vadd.f32 0.0, %v1099
        %v1101 = vpop.f32.mrb[0].mxu0
        %v1102 = vpop.f32.mrb[0].mxu0
        %v1103 = vadd.f32 0.0, %v1102
        %v1104 = vpop.f32.mrb[0].mxu0
        %1105 = vmatprep.mubr.bf16.mxu0 0
        %1106 = vmatmul.mubr.bf16.gmra.mrb[0].mxu0 %v1059
        %v1107 = vpop.f32.mrb[0].mxu0
        %v1108 = vadd.f32 0.0, %v1107
        %v1109 = vpop.f32.mrb[0].mxu0
        %v1110 = vpop.f32.mrb[0].mxu0
        %v1111 = vpop.f32.mrb[0].mxu0
        %1112 = vdwg.mxu0
        %1113 = vrot.lane.b32.xlu0 %v936, 120
        %v1114 = vpop.permute.xlu0 %1113
        %1115 = vrot.lane.b32.xlu0 %v937, 120
        %v1116 = vpop.permute.xlu0 %1115
        %1117 = vrot.lane.b32.xlu0 %v936, 88
        %v1118 = vpop.permute.xlu0 %1117
        %1119 = vrot.lane.b32.xlu0 %v937, 88
        %v1120 = vpop.permute.xlu0 %1119
        %v1122 = vsel %vm944, %v1114, 0
        %v1125 = vsel %vm944, %v1116, 0
        %v1128 = vsel %vm944, %v1118, 0
        %v1131 = vsel %vm944, %v1120, 0
        %1133 = vmatprep.subr.bf16.mxu0 0
        %1134 = vmatpush1.bf16.xpose.msra.mxu0 %v1128
        %1135 = vmatprep.subr.bf16.mxu0 0
        %1136 = vmatpush1.bf16.xpose.msra.mxu0 %v1131
        %1137 = vmatprep.subr.bf16.mxu0 0
        %1138 = vmatpush1.bf16.xpose.msra.mxu0 0
        %1139 = vmatprep.subr.bf16.mxu0 0
        %1140 = vmatpush1.bf16.xpose.msra.mxu0 0
        %1141 = vmatprep.subr.bf16.mxu0 0
        %1142 = vmatpush1.bf16.xpose.msra.mxu0 0
        %1143 = vmatprep.subr.bf16.mxu0 0
        %1144 = vmatpush1.bf16.xpose.msra.mxu0 0
        %1145 = vmatprep.subr.bf16.mxu0 0
        %1146 = vmatpush1.bf16.xpose.msra.mxu0 0
        %1147 = vmatprep.subr.bf16.mxu0 0
        %1148 = vmatpush1.bf16.xpose.msra.mxu0 0
        %1149 = vmatprep.subr.bf16.mxu0 0
        %1150 = vmatpush1.bf16.xpose.msra.mxu0 0
        %1151 = vmatprep.subr.bf16.mxu0 0
        %1152 = vmatpush1.bf16.xpose.msra.mxu0 0
        %1153 = vmatprep.subr.bf16.mxu0 0
        %1154 = vmatpush1.bf16.xpose.msra.mxu0 0
        %1155 = vmatprep.subr.bf16.mxu0 0
        %1156 = vmatpush1.bf16.xpose.msra.mxu0 0
        %1157 = vmatprep.subr.bf16.mxu0 0
        %1158 = vmatpush1.bf16.xpose.msra.mxu0 0
        %1159 = vmatprep.subr.bf16.mxu0 0
        %1160 = vmatpush1.bf16.xpose.msra.mxu0 0
        %1161 = vmatprep.subr.bf16.mxu0 0
        %1162 = vmatpush1.bf16.xpose.msra.mxu0 0
        %1163 = vmatprep.subr.bf16.mxu0 0
        %1164 = vmatpush1.bf16.xpose.msra.mxu0 0
        %1165 = vmatprep.mubr.bf16.mxu0 0
        %1166 = vmatmul.mubr.bf16.gmra.mrb[0].mxu0 %v1122
        %v1167 = vpop.f32.mrb[0].mxu0
        %v1168 = vadd.f32 0.0, %v1167
        %v1169 = vpop.f32.mrb[0].mxu0
        %v1170 = vpop.f32.mrb[0].mxu0
        %v1171 = vadd.f32 0.0, %v1170
        %v1172 = vpop.f32.mrb[0].mxu0
        %1173 = vmatprep.mubr.bf16.mxu0 0
        %1174 = vmatmul.mubr.bf16.gmra.mrb[0].mxu0 %v1125
        %v1175 = vpop.f32.mrb[0].mxu0
        %v1176 = vadd.f32 0.0, %v1175
        %v1177 = vpop.f32.mrb[0].mxu0
        %v1178 = vpop.f32.mrb[0].mxu0
        %v1179 = vpop.f32.mrb[0].mxu0
        %1180 = vdwg.mxu0
        %v1181 = vmul.f32 %v1168, 0.35355338
        %v1182 = vmul.f32 %v1171, 0.35355338
        %v1183 = vmul.f32 %v1176, 0.35355338
        %s1184 = scalar_lea.vmem %s629, 24 [#allocation7]
        %v1185 = vld [vmem:[%s1184] sm:$0xff]
        %v1186 = vld [vmem:[%s1184 + $0x8] sm:$0xff]
        %v1187 = vld [vmem:[%s1184 + $0x10] sm:$0xff]
        %v1188 = vadd.f32 %v1181, %v1185
        %v1189 = vadd.f32 %v1182, %v1186
        %v1190 = vadd.f32 %v1183, %v1187
        %v1191 = vsel %vm1014, %v1188, -inf
        %1192 = vmax.xlane.f32.xlu0 %v1191
        %v1193 = vpop.xlane.xlu0 %1192
        %v1194 = vsel %vm1014, %v1189, -inf
        %1195 = vmax.xlane.f32.xlu0 %v1194
        %v1196 = vpop.xlane.xlu0 %1195
        %v1197 = vsel %vm1014, %v1190, -inf
        %1198 = vmax.xlane.f32.xlu0 %v1197
        %v1199 = vpop.xlane.xlu0 %1198
        %v1200 = vsub.f32 %v1188, %v1193
        %v1201 = vsub.f32 %v1189, %v1196
        %v1202 = vsub.f32 %v1190, %v1199
        %v1203 = vmul.f32 %v1200, 1.442695
        %v1204 = vpow.pop %v1203
        %v1205 = vmul.f32 %v1201, 1.442695
        %v1206 = vpow.pop %v1205
        %v1207 = vmul.f32 %v1202, 1.442695
        %v1208 = vpow.pop %v1207
        %v1209 = vsel %vm1014, %v1204, 0.0
        %1210 = vadd.xlane.f32.xlu0 %v1209
        %v1211 = vpop.xlane.xlu0 %1210
        %v1212 = vsel %vm1014, %v1206, 0.0
        %1213 = vadd.xlane.f32.xlu0 %v1212
        %v1214 = vpop.xlane.xlu0 %1213
        %v1215 = vsel %vm1014, %v1208, 0.0
        %1216 = vadd.xlane.f32.xlu0 %v1215
        %v1217 = vpop.xlane.xlu0 %1216
        %v1218 = vrcp.pop %v1211
        %v1219 = vrcp.pop %v1214
        %v1220 = vrcp.pop %v1217
        %v1221 = vmul.f32 %v1204, %v1218
        %v1222 = vmul.f32 %v1206, %v1219
        %v1223 = vmul.f32 %v1208, %v1220
        %v1224 = vpack.c.bf16 %v1222, %v1221
        %v1225 = vpack.c.bf16 %v1223, %v1223
        %1226 = vrot.lane.b32.xlu0 %v936, 56
        %v1227 = vpop.permute.xlu0 %1226
        %1228 = vrot.lane.b32.xlu0 %v937, 56
        %v1229 = vpop.permute.xlu0 %1228
        %v1232 = vsel %vm1014, %v1224, 0
        %v1235 = vsel %vm1014, %v1225, 0
        %v1238 = vsel %vm1061, %v1229, 0
        %1240 = vmatprep.subr.bf16.mxu0 0
        %1241 = vmatpush1.bf16.msra.mxu0 %v1227
        %1242 = vmatprep.subr.bf16.mxu0 0
        %1243 = vmatpush1.bf16.msra.mxu0 %v1238
        %1244 = vmatprep.subr.bf16.mxu0 0
        %1245 = vmatpush1.bf16.msra.mxu0 0
        %1246 = vmatprep.subr.bf16.mxu0 0
        %1247 = vmatpush1.bf16.msra.mxu0 0
        %1248 = vmatprep.subr.bf16.mxu0 0
        %1249 = vmatpush1.bf16.msra.mxu0 0
        %1250 = vmatprep.subr.bf16.mxu0 0
        %1251 = vmatpush1.bf16.msra.mxu0 0
        %1252 = vmatprep.subr.bf16.mxu0 0
        %1253 = vmatpush1.bf16.msra.mxu0 0
        %1254 = vmatprep.subr.bf16.mxu0 0
        %1255 = vmatpush1.bf16.msra.mxu0 0
        %1256 = vmatprep.subr.bf16.mxu0 0
        %1257 = vmatpush1.bf16.msra.mxu0 0
        %1258 = vmatprep.subr.bf16.mxu0 0
        %1259 = vmatpush1.bf16.msra.mxu0 0
        %1260 = vmatprep.subr.bf16.mxu0 0
        %1261 = vmatpush1.bf16.msra.mxu0 0
        %1262 = vmatprep.subr.bf16.mxu0 0
        %1263 = vmatpush1.bf16.msra.mxu0 0
        %1264 = vmatprep.subr.bf16.mxu0 0
        %1265 = vmatpush1.bf16.msra.mxu0 0
        %1266 = vmatprep.subr.bf16.mxu0 0
        %1267 = vmatpush1.bf16.msra.mxu0 0
        %1268 = vmatprep.subr.bf16.mxu0 0
        %1269 = vmatpush1.bf16.msra.mxu0 0
        %1270 = vmatprep.subr.bf16.mxu0 0
        %1271 = vmatpush1.bf16.msra.mxu0 0
        %1272 = vmatprep.mubr.bf16.mxu0 0
        %1273 = vmatmul.mubr.bf16.gmra.mrb[0].mxu0 %v1232
        %v1274 = vpop.f32.mrb[0].mxu0
        %v1275 = vadd.f32 0.0, %v1274
        %v1276 = vpop.f32.mrb[0].mxu0
        %v1277 = vpop.f32.mrb[0].mxu0
        %v1278 = vadd.f32 0.0, %v1277
        %v1279 = vpop.f32.mrb[0].mxu0
        %1280 = vmatprep.mubr.bf16.mxu0 0
        %1281 = vmatmul.mubr.bf16.gmra.mrb[0].mxu0 %v1235
        %v1282 = vpop.f32.mrb[0].mxu0
        %v1283 = vadd.f32 0.0, %v1282
        %v1284 = vpop.f32.mrb[0].mxu0
        %v1285 = vpop.f32.mrb[0].mxu0
        %v1286 = vpop.f32.mrb[0].mxu0
        %1287 = vdwg.mxu0
        %1288 = vrot.lane.b32.xlu0 %v936, 112
        %v1289 = vpop.permute.xlu0 %1288
        %1290 = vrot.lane.b32.xlu0 %v937, 112
        %v1291 = vpop.permute.xlu0 %1290
        %1292 = vrot.lane.b32.xlu0 %v936, 80
        %v1293 = vpop.permute.xlu0 %1292
        %1294 = vrot.lane.b32.xlu0 %v937, 80
        %v1295 = vpop.permute.xlu0 %1294
        %v1297 = vsel %vm944, %v1289, 0
        %v1300 = vsel %vm944, %v1291, 0
        %v1303 = vsel %vm944, %v1293, 0
        %v1306 = vsel %vm944, %v1295, 0
        %1308 = vmatprep.subr.bf16.mxu0 0
        %1309 = vmatpush1.bf16.xpose.msra.mxu0 %v1303
        %1310 = vmatprep.subr.bf16.mxu0 0
        %1311 = vmatpush1.bf16.xpose.msra.mxu0 %v1306
        %1312 = vmatprep.subr.bf16.mxu0 0
        %1313 = vmatpush1.bf16.xpose.msra.mxu0 0
        %1314 = vmatprep.subr.bf16.mxu0 0
        %1315 = vmatpush1.bf16.xpose.msra.mxu0 0
        %1316 = vmatprep.subr.bf16.mxu0 0
        %1317 = vmatpush1.bf16.xpose.msra.mxu0 0
        %1318 = vmatprep.subr.bf16.mxu0 0
        %1319 = vmatpush1.bf16.xpose.msra.mxu0 0
        %1320 = vmatprep.subr.bf16.mxu0 0
        %1321 = vmatpush1.bf16.xpose.msra.mxu0 0
        %1322 = vmatprep.subr.bf16.mxu0 0
        %1323 = vmatpush1.bf16.xpose.msra.mxu0 0
        %1324 = vmatprep.subr.bf16.mxu0 0
        %1325 = vmatpush1.bf16.xpose.msra.mxu0 0
        %1326 = vmatprep.subr.bf16.mxu0 0
        %1327 = vmatpush1.bf16.xpose.msra.mxu0 0
        %1328 = vmatprep.subr.bf16.mxu0 0
        %1329 = vmatpush1.bf16.xpose.msra.mxu0 0
        %1330 = vmatprep.subr.bf16.mxu0 0
        %1331 = vmatpush1.bf16.xpose.msra.mxu0 0
        %1332 = vmatprep.subr.bf16.mxu0 0
        %1333 = vmatpush1.bf16.xpose.msra.mxu0 0
        %1334 = vmatprep.subr.bf16.mxu0 0
        %1335 = vmatpush1.bf16.xpose.msra.mxu0 0
        %1336 = vmatprep.subr.bf16.mxu0 0
        %1337 = vmatpush1.bf16.xpose.msra.mxu0 0
        %1338 = vmatprep.subr.bf16.mxu0 0
        %1339 = vmatpush1.bf16.xpose.msra.mxu0 0
        %1340 = vmatprep.mubr.bf16.mxu0 0
        %1341 = vmatmul.mubr.bf16.gmra.mrb[0].mxu0 %v1297
        %v1342 = vpop.f32.mrb[0].mxu0
        %v1343 = vadd.f32 0.0, %v1342
        %v1344 = vpop.f32.mrb[0].mxu0
        %v1345 = vpop.f32.mrb[0].mxu0
        %v1346 = vadd.f32 0.0, %v1345
        %v1347 = vpop.f32.mrb[0].mxu0
        %1348 = vmatprep.mubr.bf16.mxu0 0
        %1349 = vmatmul.mubr.bf16.gmra.mrb[0].mxu0 %v1300
        %v1350 = vpop.f32.mrb[0].mxu0
        %v1351 = vadd.f32 0.0, %v1350
        %v1352 = vpop.f32.mrb[0].mxu0
        %v1353 = vpop.f32.mrb[0].mxu0
        %v1354 = vpop.f32.mrb[0].mxu0
        %1355 = vdwg.mxu0
        %v1356 = vmul.f32 %v1343, 0.35355338
        %v1357 = vmul.f32 %v1346, 0.35355338
        %v1358 = vmul.f32 %v1351, 0.35355338
        %s1359 = scalar_lea.vmem %s629, 48 [#allocation7]
        %v1360 = vld [vmem:[%s1359] sm:$0xff]
        %v1361 = vld [vmem:[%s1359 + $0x8] sm:$0xff]
        %v1362 = vld [vmem:[%s1359 + $0x10] sm:$0xff]
        %v1363 = vadd.f32 %v1356, %v1360
        %v1364 = vadd.f32 %v1357, %v1361
        %v1365 = vadd.f32 %v1358, %v1362
        %v1366 = vsel %vm1014, %v1363, -inf
        %1367 = vmax.xlane.f32.xlu0 %v1366
        %v1368 = vpop.xlane.xlu0 %1367
        %v1369 = vsel %vm1014, %v1364, -inf
        %1370 = vmax.xlane.f32.xlu0 %v1369
        %v1371 = vpop.xlane.xlu0 %1370
        %v1372 = vsel %vm1014, %v1365, -inf
        %1373 = vmax.xlane.f32.xlu0 %v1372
        %v1374 = vpop.xlane.xlu0 %1373
        %v1375 = vsub.f32 %v1363, %v1368
        %v1376 = vsub.f32 %v1364, %v1371
        %v1377 = vsub.f32 %v1365, %v1374
        %v1378 = vmul.f32 %v1375, 1.442695
        %v1379 = vpow.pop %v1378
        %v1380 = vmul.f32 %v1376, 1.442695
        %v1381 = vpow.pop %v1380
        %v1382 = vmul.f32 %v1377, 1.442695
        %v1383 = vpow.pop %v1382
        %v1384 = vsel %vm1014, %v1379, 0.0
        %1385 = vadd.xlane.f32.xlu0 %v1384
        %v1386 = vpop.xlane.xlu0 %1385
        %v1387 = vsel %vm1014, %v1381, 0.0
        %1388 = vadd.xlane.f32.xlu0 %v1387
        %v1389 = vpop.xlane.xlu0 %1388
        %v1390 = vsel %vm1014, %v1383, 0.0
        %1391 = vadd.xlane.f32.xlu0 %v1390
        %v1392 = vpop.xlane.xlu0 %1391
        %v1393 = vrcp.pop %v1386
        %v1394 = vrcp.pop %v1389
        %v1395 = vrcp.pop %v1392
        %v1396 = vmul.f32 %v1379, %v1393
        %v1397 = vmul.f32 %v1381, %v1394
        %v1398 = vmul.f32 %v1383, %v1395
        %v1399 = vpack.c.bf16 %v1397, %v1396
        %v1400 = vpack.c.bf16 %v1398, %v1398
        %1401 = vrot.lane.b32.xlu0 %v936, 48
        %v1402 = vpop.permute.xlu0 %1401
        %1403 = vrot.lane.b32.xlu0 %v937, 48
        %v1404 = vpop.permute.xlu0 %1403
        %v1407 = vsel %vm1014, %v1399, 0
        %v1410 = vsel %vm1014, %v1400, 0
        %v1413 = vsel %vm1061, %v1404, 0
        %1415 = vmatprep.subr.bf16.mxu0 0
        %1416 = vmatpush1.bf16.msra.mxu0 %v1402
        %1417 = vmatprep.subr.bf16.mxu0 0
        %1418 = vmatpush1.bf16.msra.mxu0 %v1413
        %1419 = vmatprep.subr.bf16.mxu0 0
        %1420 = vmatpush1.bf16.msra.mxu0 0
        %1421 = vmatprep.subr.bf16.mxu0 0
        %1422 = vmatpush1.bf16.msra.mxu0 0
        %1423 = vmatprep.subr.bf16.mxu0 0
        %1424 = vmatpush1.bf16.msra.mxu0 0
        %1425 = vmatprep.subr.bf16.mxu0 0
        %1426 = vmatpush1.bf16.msra.mxu0 0
        %1427 = vmatprep.subr.bf16.mxu0 0
        %1428 = vmatpush1.bf16.msra.mxu0 0
        %1429 = vmatprep.subr.bf16.mxu0 0
        %1430 = vmatpush1.bf16.msra.mxu0 0
        %1431 = vmatprep.subr.bf16.mxu0 0
        %1432 = vmatpush1.bf16.msra.mxu0 0
        %1433 = vmatprep.subr.bf16.mxu0 0
        %1434 = vmatpush1.bf16.msra.mxu0 0
        %1435 = vmatprep.subr.bf16.mxu0 0
        %1436 = vmatpush1.bf16.msra.mxu0 0
        %1437 = vmatprep.subr.bf16.mxu0 0
        %1438 = vmatpush1.bf16.msra.mxu0 0
        %1439 = vmatprep.subr.bf16.mxu0 0
        %1440 = vmatpush1.bf16.msra.mxu0 0
        %1441 = vmatprep.subr.bf16.mxu0 0
        %1442 = vmatpush1.bf16.msra.mxu0 0
        %1443 = vmatprep.subr.bf16.mxu0 0
        %1444 = vmatpush1.bf16.msra.mxu0 0
        %1445 = vmatprep.subr.bf16.mxu0 0
        %1446 = vmatpush1.bf16.msra.mxu0 0
        %1447 = vmatprep.mubr.bf16.mxu0 0
        %1448 = vmatmul.mubr.bf16.gmra.mrb[0].mxu0 %v1407
        %v1449 = vpop.f32.mrb[0].mxu0
        %v1450 = vadd.f32 0.0, %v1449
        %v1451 = vpop.f32.mrb[0].mxu0
        %v1452 = vpop.f32.mrb[0].mxu0
        %v1453 = vadd.f32 0.0, %v1452
        %v1454 = vpop.f32.mrb[0].mxu0
        %1455 = vmatprep.mubr.bf16.mxu0 0
        %1456 = vmatmul.mubr.bf16.gmra.mrb[0].mxu0 %v1410
        %v1457 = vpop.f32.mrb[0].mxu0
        %v1458 = vadd.f32 0.0, %v1457
        %v1459 = vpop.f32.mrb[0].mxu0
        %v1460 = vpop.f32.mrb[0].mxu0
        %v1461 = vpop.f32.mrb[0].mxu0
        %1462 = vdwg.mxu0
        %1463 = vrot.lane.b32.xlu0 %v936, 104
        %v1464 = vpop.permute.xlu0 %1463
        %1465 = vrot.lane.b32.xlu0 %v937, 104
        %v1466 = vpop.permute.xlu0 %1465
        %1467 = vrot.lane.b32.xlu0 %v936, 72
        %v1468 = vpop.permute.xlu0 %1467
        %1469 = vrot.lane.b32.xlu0 %v937, 72
        %v1470 = vpop.permute.xlu0 %1469
        %v1472 = vsel %vm944, %v1464, 0
        %v1475 = vsel %vm944, %v1466, 0
        %v1478 = vsel %vm944, %v1468, 0
        %v1481 = vsel %vm944, %v1470, 0
        %1483 = vmatprep.subr.bf16.mxu0 0
        %1484 = vmatpush1.bf16.xpose.msra.mxu0 %v1478
        %1485 = vmatprep.subr.bf16.mxu0 0
        %1486 = vmatpush1.bf16.xpose.msra.mxu0 %v1481
        %1487 = vmatprep.subr.bf16.mxu0 0
        %1488 = vmatpush1.bf16.xpose.msra.mxu0 0
        %1489 = vmatprep.subr.bf16.mxu0 0
        %1490 = vmatpush1.bf16.xpose.msra.mxu0 0
        %1491 = vmatprep.subr.bf16.mxu0 0
        %1492 = vmatpush1.bf16.xpose.msra.mxu0 0
        %1493 = vmatprep.subr.bf16.mxu0 0
        %1494 = vmatpush1.bf16.xpose.msra.mxu0 0
        %1495 = vmatprep.subr.bf16.mxu0 0
        %1496 = vmatpush1.bf16.xpose.msra.mxu0 0
        %1497 = vmatprep.subr.bf16.mxu0 0
        %1498 = vmatpush1.bf16.xpose.msra.mxu0 0
        %1499 = vmatprep.subr.bf16.mxu0 0
        %1500 = vmatpush1.bf16.xpose.msra.mxu0 0
        %1501 = vmatprep.subr.bf16.mxu0 0
        %1502 = vmatpush1.bf16.xpose.msra.mxu0 0
        %1503 = vmatprep.subr.bf16.mxu0 0
        %1504 = vmatpush1.bf16.xpose.msra.mxu0 0
        %1505 = vmatprep.subr.bf16.mxu0 0
        %1506 = vmatpush1.bf16.xpose.msra.mxu0 0
        %1507 = vmatprep.subr.bf16.mxu0 0
        %1508 = vmatpush1.bf16.xpose.msra.mxu0 0
        %1509 = vmatprep.subr.bf16.mxu0 0
        %1510 = vmatpush1.bf16.xpose.msra.mxu0 0
        %1511 = vmatprep.subr.bf16.mxu0 0
        %1512 = vmatpush1.bf16.xpose.msra.mxu0 0
        %1513 = vmatprep.subr.bf16.mxu0 0
        %1514 = vmatpush1.bf16.xpose.msra.mxu0 0
        %1515 = vmatprep.mubr.bf16.mxu0 0
        %1516 = vmatmul.mubr.bf16.gmra.mrb[0].mxu0 %v1472
        %v1517 = vpop.f32.mrb[0].mxu0
        %v1518 = vadd.f32 0.0, %v1517
        %v1519 = vpop.f32.mrb[0].mxu0
        %v1520 = vpop.f32.mrb[0].mxu0
        %v1521 = vadd.f32 0.0, %v1520
        %v1522 = vpop.f32.mrb[0].mxu0
        %1523 = vmatprep.mubr.bf16.mxu0 0
        %1524 = vmatmul.mubr.bf16.gmra.mrb[0].mxu0 %v1475
        %v1525 = vpop.f32.mrb[0].mxu0
        %v1526 = vadd.f32 0.0, %v1525
        %v1527 = vpop.f32.mrb[0].mxu0
        %v1528 = vpop.f32.mrb[0].mxu0
        %v1529 = vpop.f32.mrb[0].mxu0
        %1530 = vdwg.mxu0
        %v1531 = vmul.f32 %v1518, 0.35355338
        %v1532 = vmul.f32 %v1521, 0.35355338
        %v1533 = vmul.f32 %v1526, 0.35355338
        %s1534 = scalar_lea.vmem %s629, 72 [#allocation7]
        %v1535 = vld [vmem:[%s1534] sm:$0xff]
        %v1536 = vld [vmem:[%s1534 + $0x8] sm:$0xff]
        %v1537 = vld [vmem:[%s1534 + $0x10] sm:$0xff]
        %v1538 = vadd.f32 %v1531, %v1535
        %v1539 = vadd.f32 %v1532, %v1536
        %v1540 = vadd.f32 %v1533, %v1537
        %v1541 = vsel %vm1014, %v1538, -inf
        %1542 = vmax.xlane.f32.xlu0 %v1541
        %v1543 = vpop.xlane.xlu0 %1542
        %v1544 = vsel %vm1014, %v1539, -inf
        %1545 = vmax.xlane.f32.xlu0 %v1544
        %v1546 = vpop.xlane.xlu0 %1545
        %v1547 = vsel %vm1014, %v1540, -inf
        %1548 = vmax.xlane.f32.xlu0 %v1547
        %v1549 = vpop.xlane.xlu0 %1548
        %v1550 = vsub.f32 %v1538, %v1543
        %v1551 = vsub.f32 %v1539, %v1546
        %v1552 = vsub.f32 %v1540, %v1549
        %v1553 = vmul.f32 %v1550, 1.442695
        %v1554 = vpow.pop %v1553
        %v1555 = vmul.f32 %v1551, 1.442695
        %v1556 = vpow.pop %v1555
        %v1557 = vmul.f32 %v1552, 1.442695
        %v1558 = vpow.pop %v1557
        %v1559 = vsel %vm1014, %v1554, 0.0
        %1560 = vadd.xlane.f32.xlu0 %v1559
        %v1561 = vpop.xlane.xlu0 %1560
        %v1562 = vsel %vm1014, %v1556, 0.0
        %1563 = vadd.xlane.f32.xlu0 %v1562
        %v1564 = vpop.xlane.xlu0 %1563
        %v1565 = vsel %vm1014, %v1558, 0.0
        %1566 = vadd.xlane.f32.xlu0 %v1565
        %v1567 = vpop.xlane.xlu0 %1566
        %v1568 = vrcp.pop %v1561
        %v1569 = vrcp.pop %v1564
        %v1570 = vrcp.pop %v1567
        %v1571 = vmul.f32 %v1554, %v1568
        %v1572 = vmul.f32 %v1556, %v1569
        %v1573 = vmul.f32 %v1558, %v1570
        %v1574 = vpack.c.bf16 %v1572, %v1571
        %v1575 = vpack.c.bf16 %v1573, %v1573
        %1576 = vrot.lane.b32.xlu0 %v936, 40
        %v1577 = vpop.permute.xlu0 %1576
        %1578 = vrot.lane.b32.xlu0 %v937, 40
        %v1579 = vpop.permute.xlu0 %1578
        %v1582 = vsel %vm1014, %v1574, 0
        %v1585 = vsel %vm1014, %v1575, 0
        %v1588 = vsel %vm1061, %v1579, 0
        %1590 = vmatprep.subr.bf16.mxu0 0
        %1591 = vmatpush1.bf16.msra.mxu0 %v1577
        %1592 = vmatprep.subr.bf16.mxu0 0
        %1593 = vmatpush1.bf16.msra.mxu0 %v1588
        %1594 = vmatprep.subr.bf16.mxu0 0
        %1595 = vmatpush1.bf16.msra.mxu0 0
        %1596 = vmatprep.subr.bf16.mxu0 0
        %1597 = vmatpush1.bf16.msra.mxu0 0
        %1598 = vmatprep.subr.bf16.mxu0 0
        %1599 = vmatpush1.bf16.msra.mxu0 0
        %1600 = vmatprep.subr.bf16.mxu0 0
        %1601 = vmatpush1.bf16.msra.mxu0 0
        %1602 = vmatprep.subr.bf16.mxu0 0
        %1603 = vmatpush1.bf16.msra.mxu0 0
        %1604 = vmatprep.subr.bf16.mxu0 0
        %1605 = vmatpush1.bf16.msra.mxu0 0
        %1606 = vmatprep.subr.bf16.mxu0 0
        %1607 = vmatpush1.bf16.msra.mxu0 0
        %1608 = vmatprep.subr.bf16.mxu0 0
        %1609 = vmatpush1.bf16.msra.mxu0 0
        %1610 = vmatprep.subr.bf16.mxu0 0
        %1611 = vmatpush1.bf16.msra.mxu0 0
        %1612 = vmatprep.subr.bf16.mxu0 0
        %1613 = vmatpush1.bf16.msra.mxu0 0
        %1614 = vmatprep.subr.bf16.mxu0 0
        %1615 = vmatpush1.bf16.msra.mxu0 0
        %1616 = vmatprep.subr.bf16.mxu0 0
        %1617 = vmatpush1.bf16.msra.mxu0 0
        %1618 = vmatprep.subr.bf16.mxu0 0
        %1619 = vmatpush1.bf16.msra.mxu0 0
        %1620 = vmatprep.subr.bf16.mxu0 0
        %1621 = vmatpush1.bf16.msra.mxu0 0
        %1622 = vmatprep.mubr.bf16.mxu0 0
        %1623 = vmatmul.mubr.bf16.gmra.mrb[0].mxu0 %v1582
        %v1624 = vpop.f32.mrb[0].mxu0
        %v1625 = vadd.f32 0.0, %v1624
        %v1626 = vpop.f32.mrb[0].mxu0
        %v1627 = vpop.f32.mrb[0].mxu0
        %v1628 = vadd.f32 0.0, %v1627
        %v1629 = vpop.f32.mrb[0].mxu0
        %1630 = vmatprep.mubr.bf16.mxu0 0
        %1631 = vmatmul.mubr.bf16.gmra.mrb[0].mxu0 %v1585
        %v1632 = vpop.f32.mrb[0].mxu0
        %v1633 = vadd.f32 0.0, %v1632
        %v1634 = vpop.f32.mrb[0].mxu0
        %v1635 = vpop.f32.mrb[0].mxu0
        %v1636 = vpop.f32.mrb[0].mxu0
        %1637 = vdwg.mxu0
        %1641 = vrot.lane.b32.xlu0 %v1275, 8
        %v1642 = vpop.permute.xlu0 %1641
        %1643 = vrot.lane.b32.xlu0 %v1278, 8
        %v1644 = vpop.permute.xlu0 %1643
        %1645 = vrot.lane.b32.xlu0 %v1283, 8
        %v1646 = vpop.permute.xlu0 %1645
        %1653 = vrot.lane.b32.xlu0 %v1450, 16
        %v1654 = vpop.permute.xlu0 %1653
        %1655 = vrot.lane.b32.xlu0 %v1453, 16
        %v1656 = vpop.permute.xlu0 %1655
        %1657 = vrot.lane.b32.xlu0 %v1458, 16
        %v1658 = vpop.permute.xlu0 %1657
        %1665 = vrot.lane.b32.xlu0 %v1625, 24
        %v1666 = vpop.permute.xlu0 %1665
        %1667 = vrot.lane.b32.xlu0 %v1628, 24
        %v1668 = vpop.permute.xlu0 %1667
        %1669 = vrot.lane.b32.xlu0 %v1633, 24
        %v1670 = vpop.permute.xlu0 %1669
        %v1674 = vsel %vm944, %v1100, %v1642
        %v1675 = vsel %vm944, %v1103, %v1644
        %v1676 = vsel %vm944, %v1108, %v1646
        %vm1677 = vcmask 130048
        %v1678 = vsel %vm1677, %v1674, %v1654
        %v1679 = vsel %vm1677, %v1675, %v1656
        %v1680 = vsel %vm1677, %v1676, %v1658
        %v1681 = vsel %vm1014, %v1678, %v1666
        %v1682 = vsel %vm1014, %v1679, %v1668
        %v1683 = vsel %vm1014, %v1680, %v1670
        %v1684 = vpack.c.bf16 %v1682, %v1681
        %v1685 = vpack.c.bf16 %v1683, %v1683
        %v1686 = vld [vmem:[%s655] sm:$0xf]
        %v1687 = vld [vmem:[%s655 + $0x4] sm:$0xf]
        %v1688 = vld [vmem:[%s655 + $0x8] sm:$0xf]
        %v1689 = vld [vmem:[%s655 + $0xc] sm:$0xf]
        %v1690 = vld [vmem:[%s663] sm:$0x1]
        %v1692 = vlaneseq
        %v1693 = vshrl.u32 %v1692, 7
        %v1694 = vsub.s32 0, %v1693
        %v1695 = vrot.slane %v1690, %v1694
        %v1701 = vunpack.c.l.b16 %v1686
        %v1702 = vunpack.c.l.b16 %v1687
        %v1703 = vunpack.c.l.b16 %v1688
        %v1704 = vunpack.c.l.b16 %v1689
        %v1705 = vpack.c.b16 %v1702, %v1701
        %v1706 = vpack.c.b16 %v1704, %v1703
        %v1710 = vsel %vm801, %v1684, 0
        %v1713 = vsel %vm801, %v1685, 0
        %1715 = vmatprep.subr.bf16.mxu0 0
        %1716 = vmatpush1.bf16.msra.mxu0 %v1705
        %1717 = vmatprep.subr.bf16.mxu0 0
        %1718 = vmatpush1.bf16.msra.mxu0 %v1706
        %1719 = vmatprep.subr.bf16.mxu0 0
        %1720 = vmatpush1.bf16.msra.mxu0 0
        %1721 = vmatprep.subr.bf16.mxu0 0
        %1722 = vmatpush1.bf16.msra.mxu0 0
        %1723 = vmatprep.subr.bf16.mxu0 0
        %1724 = vmatpush1.bf16.msra.mxu0 0
        %1725 = vmatprep.subr.bf16.mxu0 0
        %1726 = vmatpush1.bf16.msra.mxu0 0
        %1727 = vmatprep.subr.bf16.mxu0 0
        %1728 = vmatpush1.bf16.msra.mxu0 0
        %1729 = vmatprep.subr.bf16.mxu0 0
        %1730 = vmatpush1.bf16.msra.mxu0 0
        %1731 = vmatprep.subr.bf16.mxu0 0
        %1732 = vmatpush1.bf16.msra.mxu0 0
        %1733 = vmatprep.subr.bf16.mxu0 0
        %1734 = vmatpush1.bf16.msra.mxu0 0
        %1735 = vmatprep.subr.bf16.mxu0 0
        %1736 = vmatpush1.bf16.msra.mxu0 0
        %1737 = vmatprep.subr.bf16.mxu0 0
        %1738 = vmatpush1.bf16.msra.mxu0 0
        %1739 = vmatprep.subr.bf16.mxu0 0
        %1740 = vmatpush1.bf16.msra.mxu0 0
        %1741 = vmatprep.subr.bf16.mxu0 0
        %1742 = vmatpush1.bf16.msra.mxu0 0
        %1743 = vmatprep.subr.bf16.mxu0 0
        %1744 = vmatpush1.bf16.msra.mxu0 0
        %1745 = vmatprep.subr.bf16.mxu0 0
        %1746 = vmatpush1.bf16.msra.mxu0 0
        %1747 = vmatprep.mubr.bf16.mxu0 0
        %1748 = vmatmul.mubr.bf16.gmra.mrb[0].mxu0 %v1710
        %v1749 = vpop.f32.mrb[0].mxu0
        %v1750 = vadd.f32 %v1695, %v1749
        %v1751 = vpop.f32.mrb[0].mxu0
        %v1752 = vpop.f32.mrb[0].mxu0
        %v1753 = vadd.f32 %v1695, %v1752
        %v1754 = vpop.f32.mrb[0].mxu0
        %1755 = vmatprep.mubr.bf16.mxu0 0
        %1756 = vmatmul.mubr.bf16.gmra.mrb[0].mxu0 %v1713
        %v1757 = vpop.f32.mrb[0].mxu0
        %v1758 = vadd.f32 %v1695, %v1757
        %v1759 = vpop.f32.mrb[0].mxu0
        %v1760 = vpop.f32.mrb[0].mxu0
        %v1761 = vpop.f32.mrb[0].mxu0
        %1762 = vdwg.mxu0
        %v1763 = vlaneseq
        %v1764 = vshrl.u32 %v1763, 7
        %v1765 = vsub.s32 2, %v1764
        %v1766 = vrot.slane %v800, %v1765
        %v1767 = vmul.f32 %v1766, %v1750
        %v1768 = vmul.f32 %v1766, %v1753
        %v1769 = vmul.f32 %v1766, %v1758
        %v1770 = vadd.f32 %v797, %v1767
        %v1771 = vadd.f32 %v798, %v1768
        %v1772 = vadd.f32 %v799, %v1769
        %v1773 = vsel %vm801, %v1770, 0.0
        %1774 = vadd.xlane.f32.xlu0 %v1773
        %v1775 = vpop.xlane.xlu0 %1774
        %v1776 = vsel %vm801, %v1771, 0.0
        %1777 = vadd.xlane.f32.xlu0 %v1776
        %v1778 = vpop.xlane.xlu0 %1777
        %v1779 = vsel %vm801, %v1772, 0.0
        %1780 = vadd.xlane.f32.xlu0 %v1779
        %v1781 = vpop.xlane.xlu0 %1780
        %v1782 = vmul.f32 %v1775, %v811
        %v1783 = vmul.f32 %v1778, %v811
        %v1784 = vmul.f32 %v1781, %v811
        %v1785 = vsub.f32 %v1770, %v1782
        %v1786 = vsub.f32 %v1771, %v1783
        %v1787 = vsub.f32 %v1772, %v1784
        %v1788 = vmul.f32 %v1785, %v1785
        %v1789 = vmul.f32 %v1786, %v1786
        %v1790 = vmul.f32 %v1787, %v1787
        %v1791 = vsel %vm801, %v1788, 0.0
        %1792 = vadd.xlane.f32.xlu0 %v1791
        %v1793 = vpop.xlane.xlu0 %1792
        %v1794 = vsel %vm801, %v1789, 0.0
        %1795 = vadd.xlane.f32.xlu0 %v1794
        %v1796 = vpop.xlane.xlu0 %1795
        %v1797 = vsel %vm801, %v1790, 0.0
        %1798 = vadd.xlane.f32.xlu0 %v1797
        %v1799 = vpop.xlane.xlu0 %1798
        %v1800 = vmul.f32 %v1793, %v811
        %v1801 = vmul.f32 %v1796, %v811
        %v1802 = vmul.f32 %v1799, %v811
        %v1803 = vadd.f32 %v1800, 1e-05
        %v1804 = vadd.f32 %v1801, 1e-05
        %v1805 = vadd.f32 %v1802, 1e-05
        %v1806 = vrsqrt.pop %v1803
        %v1807 = vrsqrt.pop %v1804
        %v1808 = vrsqrt.pop %v1805
        %v1809 = vmul.f32 %v1785, %v1806
        %v1810 = vmul.f32 %v1786, %v1807
        %v1811 = vmul.f32 %v1787, %v1808
        %v1812 = vlaneseq
        %v1813 = vshrl.u32 %v1812, 7
        %v1814 = vsub.s32 4, %v1813
        %v1815 = vrot.slane %v842, %v1814
        %v1816 = vmul.f32 %v1809, %v1815
        %v1817 = vmul.f32 %v1810, %v1815
        %v1818 = vmul.f32 %v1811, %v1815
        %v1819 = vlaneseq
        %v1820 = vshrl.u32 %v1819, 7
        %v1821 = vsub.s32 3, %v1820
        %v1822 = vrot.slane %v800, %v1821
        %v1823 = vadd.f32 %v1816, %v1822
        %v1824 = vadd.f32 %v1817, %v1822
        %v1825 = vadd.f32 %v1818, %v1822
        %v1826 = vpack.c.bf16 %v1824, %v1823
        %v1827 = vpack.c.bf16 %v1825, %v1825
        %v1828 = vld [vmem:[%s672] sm:$0xf]
        %v1829 = vld [vmem:[%s672 + $0x4] sm:$0xf]
        %v1830 = vld [vmem:[%s672 + $0x8] sm:$0xf]
        %v1831 = vld [vmem:[%s672 + $0xc] sm:$0xf]
        %v1832 = vld [vmem:[%s680] sm:$0x1]
        %v1834 = vlaneseq
        %v1835 = vshrl.u32 %v1834, 7
        %v1836 = vsub.s32 0, %v1835
        %v1837 = vrot.slane %v1832, %v1836
        %v1843 = vunpack.c.l.b16 %v1828
        %v1844 = vunpack.c.l.b16 %v1829
        %v1845 = vunpack.c.l.b16 %v1830
        %v1846 = vunpack.c.l.b16 %v1831
        %v1847 = vpack.c.b16 %v1844, %v1843
        %v1848 = vpack.c.b16 %v1846, %v1845
        %v1852 = vsel %vm801, %v1826, 0
        %v1855 = vsel %vm801, %v1827, 0
        %1857 = vmatprep.subr.bf16.mxu0 0
        %1858 = vmatpush1.bf16.msra.mxu0 %v1847
        %1859 = vmatprep.subr.bf16.mxu0 0
        %1860 = vmatpush1.bf16.msra.mxu0 %v1848
        %1861 = vmatprep.subr.bf16.mxu0 0
        %1862 = vmatpush1.bf16.msra.mxu0 0
        %1863 = vmatprep.subr.bf16.mxu0 0
        %1864 = vmatpush1.bf16.msra.mxu0 0
        %1865 = vmatprep.subr.bf16.mxu0 0
        %1866 = vmatpush1.bf16.msra.mxu0 0
        %1867 = vmatprep.subr.bf16.mxu0 0
        %1868 = vmatpush1.bf16.msra.mxu0 0
        %1869 = vmatprep.subr.bf16.mxu0 0
        %1870 = vmatpush1.bf16.msra.mxu0 0
        %1871 = vmatprep.subr.bf16.mxu0 0
        %1872 = vmatpush1.bf16.msra.mxu0 0
        %1873 = vmatprep.subr.bf16.mxu0 0
        %1874 = vmatpush1.bf16.msra.mxu0 0
        %1875 = vmatprep.subr.bf16.mxu0 0
        %1876 = vmatpush1.bf16.msra.mxu0 0
        %1877 = vmatprep.subr.bf16.mxu0 0
        %1878 = vmatpush1.bf16.msra.mxu0 0
        %1879 = vmatprep.subr.bf16.mxu0 0
        %1880 = vmatpush1.bf16.msra.mxu0 0
        %1881 = vmatprep.subr.bf16.mxu0 0
        %1882 = vmatpush1.bf16.msra.mxu0 0
        %1883 = vmatprep.subr.bf16.mxu0 0
        %1884 = vmatpush1.bf16.msra.mxu0 0
        %1885 = vmatprep.subr.bf16.mxu0 0
        %1886 = vmatpush1.bf16.msra.mxu0 0
        %1887 = vmatprep.subr.bf16.mxu0 0
        %1888 = vmatpush1.bf16.msra.mxu0 0
        %1889 = vmatprep.mubr.bf16.mxu0 0
        %1890 = vmatmul.mubr.bf16.gmra.mrb[0].mxu0 %v1852
        %v1891 = vpop.f32.mrb[0].mxu0
        %v1892 = vadd.f32 %v1837, %v1891
        %v1893 = vpop.f32.mrb[0].mxu0
        %v1894 = vpop.f32.mrb[0].mxu0
        %v1895 = vadd.f32 %v1837, %v1894
        %v1896 = vpop.f32.mrb[0].mxu0
        %1897 = vmatprep.mubr.bf16.mxu0 0
        %1898 = vmatmul.mubr.bf16.gmra.mrb[0].mxu0 %v1855
        %v1899 = vpop.f32.mrb[0].mxu0
        %v1900 = vadd.f32 %v1837, %v1899
        %v1901 = vpop.f32.mrb[0].mxu0
        %v1902 = vpop.f32.mrb[0].mxu0
        %v1903 = vpop.f32.mrb[0].mxu0
        %1904 = vdwg.mxu0
        %v1905 = vmul.f32 %v1892, 0.5
        %v1906 = vmul.f32 %v1895, 0.5
        %v1907 = vmul.f32 %v1900, 0.5
        %v1908 = vmul.f32 %v1892, 0.044715
        %v1909 = vmul.f32 %v1895, 0.044715
        %v1910 = vmul.f32 %v1900, 0.044715
        %v1911 = vmul.f32 %v1908, %v1892
        %v1912 = vmul.f32 %v1909, %v1895
        %v1913 = vmul.f32 %v1910, %v1900
        %v1914 = vmul.f32 %v1911, %v1892
        %v1915 = vmul.f32 %v1912, %v1895
        %v1916 = vmul.f32 %v1913, %v1900
        %v1917 = vadd.f32 %v1892, %v1914
        %v1918 = vadd.f32 %v1895, %v1915
        %v1919 = vadd.f32 %v1900, %v1916
        %v1920 = vmul.f32 %v1917, 0.7978846
        %v1921 = vmul.f32 %v1918, 0.7978846
        %v1922 = vmul.f32 %v1919, 0.7978846
        %v1923 = vtanh.pop %v1920
        %v1924 = vtanh.pop %v1921
        %v1925 = vtanh.pop %v1922
        %v1926 = vadd.f32 %v1923, 1.0
        %v1927 = vadd.f32 %v1924, 1.0
        %v1928 = vadd.f32 %v1925, 1.0
        %v1929 = vmul.f32 %v1905, %v1926
        %v1930 = vmul.f32 %v1906, %v1927
        %v1931 = vmul.f32 %v1907, %v1928
        %v1932 = vpack.c.bf16 %v1930, %v1929
        %v1933 = vpack.c.bf16 %v1931, %v1931
        %v1934 = vld [vmem:[%s689] sm:$0xf]
        %v1935 = vld [vmem:[%s689 + $0x4] sm:$0xf]
        %v1936 = vld [vmem:[%s689 + $0x8] sm:$0xf]
        %v1937 = vld [vmem:[%s689 + $0xc] sm:$0xf]
        %v1938 = vld [vmem:[%s689 + $0x10] sm:$0xf]
        %v1939 = vld [vmem:[%s689 + $0x14] sm:$0xf]
        %v1940 = vld [vmem:[%s689 + $0x18] sm:$0xf]
        %v1941 = vld [vmem:[%s689 + $0x1c] sm:$0xf]
        %v1942 = vld [vmem:[%s689 + $0x20] sm:$0xf]
        %v1943 = vld [vmem:[%s689 + $0x24] sm:$0xf]
        %v1944 = vld [vmem:[%s689 + $0x28] sm:$0xf]
        %v1945 = vld [vmem:[%s689 + $0x2c] sm:$0xf]
        %v1946 = vld [vmem:[%s689 + $0x30] sm:$0xf]
        %v1947 = vld [vmem:[%s689 + $0x34] sm:$0xf]
        %v1948 = vld [vmem:[%s689 + $0x38] sm:$0xf]
        %v1949 = vld [vmem:[%s689 + $0x3c] sm:$0xf]
        %v1950 = vld [vmem:[%s697] sm:$0x1]
        %v1952 = vlaneseq
        %v1953 = vshrl.u32 %v1952, 7
        %v1954 = vsub.s32 0, %v1953
        %v1955 = vrot.slane %v1950, %v1954
        %v1973 = vunpack.c.l.b16 %v1934
        %v1974 = vunpack.c.l.b16 %v1935
        %v1975 = vunpack.c.l.b16 %v1936
        %v1976 = vunpack.c.l.b16 %v1937
        %v1977 = vunpack.c.l.b16 %v1938
        %v1978 = vunpack.c.l.b16 %v1939
        %v1979 = vunpack.c.l.b16 %v1940
        %v1980 = vunpack.c.l.b16 %v1941
        %v1981 = vunpack.c.l.b16 %v1942
        %v1982 = vunpack.c.l.b16 %v1943
        %v1983 = vunpack.c.l.b16 %v1944
        %v1984 = vunpack.c.l.b16 %v1945
        %v1985 = vunpack.c.l.b16 %v1946
        %v1986 = vunpack.c.l.b16 %v1947
        %v1987 = vunpack.c.l.b16 %v1948
        %v1988 = vunpack.c.l.b16 %v1949
        %v1989 = vpack.c.b16 %v1974, %v1973
        %v1990 = vpack.c.b16 %v1976, %v1975
        %v1991 = vpack.c.b16 %v1978, %v1977
        %v1992 = vpack.c.b16 %v1980, %v1979
        %v1993 = vpack.c.b16 %v1982, %v1981
        %v1994 = vpack.c.b16 %v1984, %v1983
        %v1995 = vpack.c.b16 %v1986, %v1985
        %v1996 = vpack.c.b16 %v1988, %v1987
        %2005 = vmatprep.subr.bf16.mxu0 0
        %2006 = vmatpush1.bf16.msra.mxu0 %v1989
        %2007 = vmatprep.subr.bf16.mxu0 0
        %2008 = vmatpush1.bf16.msra.mxu0 %v1990
        %2009 = vmatprep.subr.bf16.mxu0 0
        %2010 = vmatpush1.bf16.msra.mxu0 %v1991
        %2011 = vmatprep.subr.bf16.mxu0 0
        %2012 = vmatpush1.bf16.msra.mxu0 %v1992
        %2013 = vmatprep.subr.bf16.mxu0 0
        %2014 = vmatpush1.bf16.msra.mxu0 %v1993
        %2015 = vmatprep.subr.bf16.mxu0 0
        %2016 = vmatpush1.bf16.msra.mxu0 %v1994
        %2017 = vmatprep.subr.bf16.mxu0 0
        %2018 = vmatpush1.bf16.msra.mxu0 %v1995
        %2019 = vmatprep.subr.bf16.mxu0 0
        %2020 = vmatpush1.bf16.msra.mxu0 %v1996
        %2021 = vmatprep.subr.bf16.mxu0 0
        %2022 = vmatpush1.bf16.msra.mxu0 0
        %2023 = vmatprep.subr.bf16.mxu0 0
        %2024 = vmatpush1.bf16.msra.mxu0 0
        %2025 = vmatprep.subr.bf16.mxu0 0
        %2026 = vmatpush1.bf16.msra.mxu0 0
        %2027 = vmatprep.subr.bf16.mxu0 0
        %2028 = vmatpush1.bf16.msra.mxu0 0
        %2029 = vmatprep.subr.bf16.mxu0 0
        %2030 = vmatpush1.bf16.msra.mxu0 0
        %2031 = vmatprep.subr.bf16.mxu0 0
        %2032 = vmatpush1.bf16.msra.mxu0 0
        %2033 = vmatprep.subr.bf16.mxu0 0
        %2034 = vmatpush1.bf16.msra.mxu0 0
        %2035 = vmatprep.subr.bf16.mxu0 0
        %2036 = vmatpush1.bf16.msra.mxu0 0
        %2037 = vmatprep.mubr.bf16.mxu0 0
        %2038 = vmatmul.mubr.bf16.gmra.mrb[0].mxu0 %v1932
        %v2039 = vpop.f32.mrb[0].mxu0
        %v2040 = vadd.f32 %v1955, %v2039
        %v2041 = vpop.f32.mrb[0].mxu0
        %v2042 = vpop.f32.mrb[0].mxu0
        %v2043 = vadd.f32 %v1955, %v2042
        %v2044 = vpop.f32.mrb[0].mxu0
        %2045 = vmatprep.mubr.bf16.mxu0 0
        %2046 = vmatmul.mubr.bf16.gmra.mrb[0].mxu0 %v1933
        %v2047 = vpop.f32.mrb[0].mxu0
        %v2048 = vadd.f32 %v1955, %v2047
        %v2049 = vpop.f32.mrb[0].mxu0
        %v2050 = vpop.f32.mrb[0].mxu0
        %v2051 = vpop.f32.mrb[0].mxu0
        %2052 = vdwg.mxu0
        %v2053 = vlaneseq
        %v2054 = vshrl.u32 %v2053, 7
        %v2055 = vsub.s32 5, %v2054
        %v2056 = vrot.slane %v800, %v2055
        %v2057 = vmul.f32 %v2056, %v2040
        %v2058 = vmul.f32 %v2056, %v2043
        %v2059 = vmul.f32 %v2056, %v2048
        %v2060 = vadd.f32 %v1770, %v2057
        %v2061 = vadd.f32 %v1771, %v2058
        %v2062 = vadd.f32 %v1772, %v2059
        %2063 = vst.msk [vmem:[%s781] sm:$0xff] %vm801, %v2060
        %2064 = vst.msk [vmem:[%s781 + $0x8] sm:$0xff] %vm801, %v2061
        %2065 = vst.msk [vmem:[%s781 + $0x10] sm:$0xff] %vm801, %v2062
        %s2066 = sand.u32 %s353, 1
        %s2067 = scalar_lea.sflag [#allocation4], %s2066
        %s2068 = sand.u32 %s353, 1
        %s2069 = smul.addr %s2068, 24
        %s2070 = scalar_lea.vmem [#allocation20], %s2069
        // Predicated region
        $region113: #{adaln_pint_forward.9} parent=63 // pred_check
          %p2071 = pneg %p363
        $region114: #{adaln_pint_forward.9} parent=63 // pred_check_branch
          %2073 = sbr.rel (%p2071) target = $region116
        $region115: #{adaln_pint_forward.9} parent=63 // pred_region
          %s2075 = ssub.s32 384, 384
          %2076 = vsyncadd %s2067, %s2075
          %s2077 = smul.addr %s47, 3
          %s2078 = smul.addr %s2077, 128
          %s2079 = scalar_lea.hbm %s11, %s2078
          %s2080 = sshll.u32 %s2070, 4
          %s2081 = int_to_ptr.vmem [resolvable:$true] %s2080
          %2086 = dma.vmem_to_hbm [thread:$0]  %s2081, 384, %s2079, %s2067, 128, 128, 8
        $region116: #{adaln_pint_forward.9} parent=63 // pred_fallthru
          _
      $region64: #{adaln_pint_forward.9} parent=5 // pred_fallthru
        _
      %p2087 = scmp.le.s32.totalorder 2, %s38
      // Predicated region
      $region117: #{adaln_pint_forward.9} parent=5 // pred_check
        %p2088 = pneg %p2087
      $region118: #{adaln_pint_forward.9} parent=5 // pred_check_branch
        %2090 = sbr.rel (%p2088) target = $region120
      $region119: #{adaln_pint_forward.9} parent=5 // pred_region
        %s2091 = ssub.s32 %s38, 2
        // Predicated region
        $region121: #{adaln_pint_forward.9} parent=119 // pred_check
          %p2092 = pneg %p369
        $region122: #{adaln_pint_forward.9} parent=119 // pred_check_branch
          %2094 = sbr.rel (%p2092) target = $region124
        $region123: #{adaln_pint_forward.9} parent=119 // pred_region
          %s2095 = sand.u32 %s354, 1
          %s2096 = scalar_lea.sflag [#allocation4], %s2095
          %s2097 = sand.u32 %s354, 1
          %s2098 = smul.addr %s2097, 24
          %s2099 = scalar_lea.vmem [#allocation20], %s2098
          %2100 = dma.done %s2096, 384
        $region124: #{adaln_pint_forward.9} parent=119 // pred_fallthru
          _
      $region120: #{adaln_pint_forward.9} parent=5 // pred_fallthru
        _
    $region6: #{adaln_pint_forward.9} parent=1 // loop_footer
      %s42 = sadd.s32 1, %s38
    $region7: #{adaln_pint_forward.9} parent=1 // loop_footer_branch
      %37 = sbr.rel target = $region3
    $region8: #{adaln_pint_forward.9} parent=1 // loop_exit
      _
    %2101 = vsyncpa [#allocation3], 1
    %s2102 = scalar_lea.sflag [#allocation3], 1
    %2103 = vsyncpa %s2102, 1
    %2104 = vsyncpa [#allocation6], 1
    %s2105 = scalar_lea.sflag [#allocation6], 1
    %2106 = vsyncpa %s2105, 1
    %2107 = vsyncpa [#allocation9], 1
    %s2108 = scalar_lea.sflag [#allocation9], 1
    %2109 = vsyncpa %s2108, 1
    %2110 = vsyncpa [#allocation12], 1
    %s2111 = scalar_lea.sflag [#allocation12], 1
    %2112 = vsyncpa %s2111, 1
    %2113 = vsyncpa [#allocation15], 1
    %s2114 = scalar_lea.sflag [#allocation15], 1
    %2115 = vsyncpa %s2114, 1
    %2116 = vsyncpa [#allocation18], 1
    %s2117 = scalar_lea.sflag [#allocation18], 1
    %2118 = vsyncpa %s2117, 1
    %2119 = vsyncpa [#allocation4], 1
    %s2120 = scalar_lea.sflag [#allocation4], 1
    %2121 = vsyncpa %s2120, 1

</llo_original>
